<compile_context>
chip_gen: v7x
topology: tpu7x:2x2x1
jax: 0.10.0
libtpu: 0.0.40
codegen_flags: <defaults>
</compile_context>

<pallas_src>
import jax
import jax.numpy as jnp
from jax import lax
from jax.experimental import pallas as pl
from jax.experimental.pallas import tpu as pltpu


def _convbn_kernel(x_ref, w_ref, bias_ref, out_ref, xpad_ref, patch_ref):
    """Fused 3x3 conv (s1, p1) + folded-BN bias for ONE image (NHWC, C padded).

    x_ref    : (1, H, W, Cp)    bf16 input block (one image), VMEM
    w_ref    : (9*Cp, Cp)       bf16 weights, (kh, kw, ci)-major, BN scale folded in
    bias_ref : (1, Cp)          f32 folded BN bias
    out_ref  : (1, H, W, Cp)    f32 output block
    xpad_ref : (H+2, W+2, Cp)   bf16 scratch: spatially padded image
    patch_ref: (H*W, 9*Cp)      bf16 scratch: im2col patches (lane-aligned blocks)
    """
    _, H, W, Cp = x_ref.shape

    # padding=1 handled entirely in VMEM (no padded copy of x in HBM).
    xpad_ref[...] = jnp.zeros_like(xpad_ref)
    xpad_ref[1:H + 1, 1:W + 1, :] = x_ref[0]

    # im2col: pack the 9 shifted (H*W, Cp) windows side by side along lanes.
    for t in range(9):
        dh, dw = divmod(t, 3)
        patch_ref[:, t * Cp:(t + 1) * Cp] = (
            xpad_ref[dh:dh + H, dw:dw + W, :].reshape(H * W, Cp))

    # Single large-K MXU matmul: (H*W, 9*Cp) @ (9*Cp, Cp), f32 accumulate.
    acc = jnp.dot(patch_ref[...], w_ref[...],
                  preferred_element_type=jnp.float32)

    # Folded-BN bias + Identity activation; f32 epilogue, lane-dense store.
    y = acc + bias_ref[...]
    out_ref[...] = y.reshape(1, H, W, Cp).astype(out_ref.dtype)


def convbn_forward(x_nchw, weight_oihw, gamma, beta, running_mean, running_var,
                   eps=1e-5):
    """ConvBN forward (inference-form BN). x_nchw: (N, C, H, W) f32 -> (N, C, H, W) f32."""
    N, C, H, W = x_nchw.shape
    KH, KW = weight_oihw.shape[2], weight_oihw.shape[3]
    assert (KH, KW) == (3, 3), "kernel implements the 3x3 / stride 1 / padding 1 case"

    Cp = max(128, ((C + 127) // 128) * 128)            # lane-dense channel axis

    # ---- glue (cheap, fused by XLA): layout + channel pad + bf16 cast --------
    x_nhwc = jnp.transpose(x_nchw, (0, 2, 3, 1))                    # NCHW -> NHWC
    x_p = jnp.zeros((N, H, W, Cp), jnp.bfloat16)
    x_p = x_p.at[..., :C].set(x_nhwc.astype(jnp.bfloat16))

    # BN folding (inference form): y = scale*conv(x) + bias,
    #   scale = gamma/sqrt(var+eps), bias = beta - mean*scale.
    # Fold scale into the conv weights (exact); keep only bias for the epilogue.
    scale = gamma / jnp.sqrt(running_var + eps)                     # (C,)
    bias = beta - running_mean * scale                              # (C,)
    w_hwio = jnp.transpose(weight_oihw, (2, 3, 1, 0))               # OIHW -> (3,3,Cin,Cout)
    w_folded = (w_hwio * scale[None, None, None, :]).astype(jnp.float32)
    w_p = jnp.zeros((3, 3, Cp, Cp), jnp.float32)
    w_p = w_p.at[:, :, :C, :C].set(w_folded)
    w_2d = w_p.reshape(9 * Cp, Cp).astype(jnp.bfloat16)             # (kh,kw,ci)-major K
    bias_p = jnp.zeros((1, Cp), jnp.float32).at[0, :C].set(bias.astype(jnp.float32))

    # ---- hot path: Pallas kernel; grid over batch, pipelined + megacore ------
    grid_spec = pltpu.PrefetchScalarGridSpec(
        num_scalar_prefetch=0,
        grid=(N,),
        in_specs=[
            pl.BlockSpec((1, H, W, Cp), lambda n: (n, 0, 0, 0)),    # image n
            pl.BlockSpec((9 * Cp, Cp), lambda n: (0, 0)),           # weights (stay resident)
            pl.BlockSpec((1, Cp), lambda n: (0, 0)),                # bias (stays resident)
        ],
        out_specs=pl.BlockSpec((1, H, W, Cp), lambda n: (n, 0, 0, 0)),
        scratch_shapes=[
            pltpu.VMEM((H + 2, W + 2, Cp), jnp.bfloat16),           # padded image
            pltpu.VMEM((H * W, 9 * Cp), jnp.bfloat16),              # im2col patches
        ],
    )
    out_p = pl.pallas_call(
        _convbn_kernel,
        out_shape=jax.ShapeDtypeStruct((N, H, W, Cp), jnp.float32),
        grid_spec=grid_spec,
        compiler_params=pltpu.CompilerParams(
            dimension_semantics=("parallel",)),
    )(x_p, w_2d, bias_p)

    out_nhwc = out_p[..., :C]                                       # drop channel pad
    return jnp.transpose(out_nhwc, (0, 3, 1, 2))                    # NHWC -> NCHW


def convbn_reference(x_nchw, weight_oihw, gamma, beta, running_mean,
                     running_var, eps=1e-5):
    """Pure-JAX f32 reference (lax conv + BN) for correctness checking."""
    y = lax.conv_general_dilated(
        x_nchw, weight_oihw, window_strides=(1, 1), padding=((1, 1), (1, 1)),
        dimension_numbers=("NCHW", "OIHW", "NCHW"))
    scale = gamma / jnp.sqrt(running_var + eps)
    bias = beta - running_mean * scale
    return y * scale[None, :, None, None] + bias[None, :, None, None]


if __name__ == "__main__":
    key = jax.random.PRNGKey(0)
    k_x, k_w, k_g, k_b, k_m, k_v = jax.random.split(key, 6)

    N, C, H, W = 2, 8, 16, 16            # ConvBN: in_channels == out_channels
    KH = KW = 3

    x = jax.random.normal(k_x, (N, C, H, W), dtype=jnp.float32)
    weight = jax.random.normal(k_w, (C, C, KH, KW), dtype=jnp.float32) * 0.1
    gamma = jax.random.normal(k_g, (C,), dtype=jnp.float32) * 0.1 + 1.0
    beta = jax.random.normal(k_b, (C,), dtype=jnp.float32) * 0.1
    running_mean = jax.random.normal(k_m, (C,), dtype=jnp.float32) * 0.1
    running_var = jax.random.uniform(k_v, (C,), dtype=jnp.float32,
                                     minval=0.5, maxval=1.5)

    out = convbn_forward(x, weight, gamma, beta, running_mean, running_var)
    out = jax.block_until_ready(out)

    ref = convbn_reference(x, weight, gamma, beta, running_mean, running_var)
    ref = jax.block_until_ready(ref)

    assert out.shape == (N, C, H, W)
    # bf16 MXU inputs vs f32 reference -> slightly looser tolerance.
    if not jnp.allclose(out, ref, atol=5e-2, rtol=5e-2):
        max_err = jnp.max(jnp.abs(out - ref))
        raise AssertionError(
            f"Pallas ConvBN does not match reference (max|err|={max_err})")

    print("KERNEL_OK")
</pallas_src>

<mosaic_0001>
module attributes {stable_mosaic.version = 11 : i64} {
  func.func @_convbn_kernel(%arg0: i32, %arg1: memref<1x16x16x128xbf16, #tpu.memory_space<vmem>>, %arg2: memref<1152x128xbf16, #tpu.memory_space<vmem>>, %arg3: memref<1x128xf32, #tpu.memory_space<vmem>>, %arg4: memref<1x16x16x128xf32, #tpu.memory_space<vmem>>, %arg5: memref<18x18x128xbf16, #tpu.memory_space<vmem>>, %arg6: memref<256x1152xbf16, #tpu.memory_space<vmem>>) attributes {dimension_semantics = [#tpu.dimension_semantics<parallel>], iteration_bounds = array<i64: 2>, scalar_prefetch = 0 : i64, scratch_operands = 2 : i64, tpu.core_type = #tpu.core_type<tc>, window_params = [{transform_indices = @transform_0, window_bounds = array<i64: 1, 16, 16, 128>}, {pipeline_mode = #tpu.pipeline_mode<synchronous>, transform_indices = @transform_1, window_bounds = array<i64: 1152, 128>}, {pipeline_mode = #tpu.pipeline_mode<synchronous>, transform_indices = @transform_2, window_bounds = array<i64: 1, 128>}, {transform_indices = @transform_3, window_bounds = array<i64: 1, 16, 16, 128>}]} {
    %cst = arith.constant 0.000000e+00 : bf16
    %0 = vector.broadcast %cst : bf16 to vector<18x18x128xbf16>
    %c0 = arith.constant 0 : index
    %c0_0 = arith.constant 0 : index
    %c0_1 = arith.constant 0 : index
    %1 = vector.load %arg5[%c0, %c0_0, %c0_1] : memref<18x18x128xbf16, #tpu.memory_space<vmem>>, vector<18x18x128xbf16>
    tpu.vector_store %arg5[%c0, %c0_0, %c0_1], %0 {strides = array<i32>} : memref<18x18x128xbf16, #tpu.memory_space<vmem>>, vector<18x18x128xbf16>,
    %c0_2 = arith.constant 0 : index
    %c0_3 = arith.constant 0 : index
    %c0_4 = arith.constant 0 : index
    %c0_5 = arith.constant 0 : index
    %2 = vector.load %arg1[%c0_2, %c0_3, %c0_4, %c0_5] : memref<1x16x16x128xbf16, #tpu.memory_space<vmem>>, vector<1x16x16x128xbf16>
    %3 = vector.shape_cast %2 : vector<1x16x16x128xbf16> to vector<16x16x128xbf16>
    %c1 = arith.constant 1 : index
    %c1_6 = arith.constant 1 : index
    %c0_7 = arith.constant 0 : index
    %4 = vector.load %arg5[%c1, %c1_6, %c0_7] : memref<18x18x128xbf16, #tpu.memory_space<vmem>>, vector<16x16x128xbf16>
    tpu.vector_store %arg5[%c1, %c1_6, %c0_7], %3 {strides = array<i32>} : memref<18x18x128xbf16, #tpu.memory_space<vmem>>, vector<16x16x128xbf16>,
    %c0_8 = arith.constant 0 : index
    %c0_9 = arith.constant 0 : index
    %c0_10 = arith.constant 0 : index
    %5 = vector.load %arg5[%c0_8, %c0_9, %c0_10] : memref<18x18x128xbf16, #tpu.memory_space<vmem>>, vector<16x16x128xbf16>
    %6 = vector.shape_cast %5 : vector<16x16x128xbf16> to vector<256x128xbf16>
    %c0_11 = arith.constant 0 : index
    %c0_12 = arith.constant 0 : index
    %7 = vector.load %arg6[%c0_11, %c0_12] : memref<256x1152xbf16, #tpu.memory_space<vmem>>, vector<256x128xbf16>
    tpu.vector_store %arg6[%c0_11, %c0_12], %6 {strides = array<i32>} : memref<256x1152xbf16, #tpu.memory_space<vmem>>, vector<256x128xbf16>,
    %c0_13 = arith.constant 0 : index
    %c1_14 = arith.constant 1 : index
    %c0_15 = arith.constant 0 : index
    %8 = vector.load %arg5[%c0_13, %c1_14, %c0_15] : memref<18x18x128xbf16, #tpu.memory_space<vmem>>, vector<16x16x128xbf16>
    %9 = vector.shape_cast %8 : vector<16x16x128xbf16> to vector<256x128xbf16>
    %c0_16 = arith.constant 0 : index
    %c128 = arith.constant 128 : index
    %10 = vector.load %arg6[%c0_16, %c128] : memref<256x1152xbf16, #tpu.memory_space<vmem>>, vector<256x128xbf16>
    tpu.vector_store %arg6[%c0_16, %c128], %9 {strides = array<i32>} : memref<256x1152xbf16, #tpu.memory_space<vmem>>, vector<256x128xbf16>,
    %c0_17 = arith.constant 0 : index
    %c2 = arith.constant 2 : index
    %c0_18 = arith.constant 0 : index
    %11 = vector.load %arg5[%c0_17, %c2, %c0_18] : memref<18x18x128xbf16, #tpu.memory_space<vmem>>, vector<16x16x128xbf16>
    %12 = vector.shape_cast %11 : vector<16x16x128xbf16> to vector<256x128xbf16>
    %c0_19 = arith.constant 0 : index
    %c256 = arith.constant 256 : index
    %13 = vector.load %arg6[%c0_19, %c256] : memref<256x1152xbf16, #tpu.memory_space<vmem>>, vector<256x128xbf16>
    tpu.vector_store %arg6[%c0_19, %c256], %12 {strides = array<i32>} : memref<256x1152xbf16, #tpu.memory_space<vmem>>, vector<256x128xbf16>,
    %c1_20 = arith.constant 1 : index
    %c0_21 = arith.constant 0 : index
    %c0_22 = arith.constant 0 : index
    %14 = vector.load %arg5[%c1_20, %c0_21, %c0_22] : memref<18x18x128xbf16, #tpu.memory_space<vmem>>, vector<16x16x128xbf16>
    %15 = vector.shape_cast %14 : vector<16x16x128xbf16> to vector<256x128xbf16>
    %c0_23 = arith.constant 0 : index
    %c384 = arith.constant 384 : index
    %16 = vector.load %arg6[%c0_23, %c384] : memref<256x1152xbf16, #tpu.memory_space<vmem>>, vector<256x128xbf16>
    tpu.vector_store %arg6[%c0_23, %c384], %15 {strides = array<i32>} : memref<256x1152xbf16, #tpu.memory_space<vmem>>, vector<256x128xbf16>,
    %c1_24 = arith.constant 1 : index
    %c1_25 = arith.constant 1 : index
    %c0_26 = arith.constant 0 : index
    %17 = vector.load %arg5[%c1_24, %c1_25, %c0_26] : memref<18x18x128xbf16, #tpu.memory_space<vmem>>, vector<16x16x128xbf16>
    %18 = vector.shape_cast %17 : vector<16x16x128xbf16> to vector<256x128xbf16>
    %c0_27 = arith.constant 0 : index
    %c512 = arith.constant 512 : index
    %19 = vector.load %arg6[%c0_27, %c512] : memref<256x1152xbf16, #tpu.memory_space<vmem>>, vector<256x128xbf16>
    tpu.vector_store %arg6[%c0_27, %c512], %18 {strides = array<i32>} : memref<256x1152xbf16, #tpu.memory_space<vmem>>, vector<256x128xbf16>,
    %c1_28 = arith.constant 1 : index
    %c2_29 = arith.constant 2 : index
    %c0_30 = arith.constant 0 : index
    %20 = vector.load %arg5[%c1_28, %c2_29, %c0_30] : memref<18x18x128xbf16, #tpu.memory_space<vmem>>, vector<16x16x128xbf16>
    %21 = vector.shape_cast %20 : vector<16x16x128xbf16> to vector<256x128xbf16>
    %c0_31 = arith.constant 0 : index
    %c640 = arith.constant 640 : index
    %22 = vector.load %arg6[%c0_31, %c640] : memref<256x1152xbf16, #tpu.memory_space<vmem>>, vector<256x128xbf16>
    tpu.vector_store %arg6[%c0_31, %c640], %21 {strides = array<i32>} : memref<256x1152xbf16, #tpu.memory_space<vmem>>, vector<256x128xbf16>,
    %c2_32 = arith.constant 2 : index
    %c0_33 = arith.constant 0 : index
    %c0_34 = arith.constant 0 : index
    %23 = vector.load %arg5[%c2_32, %c0_33, %c0_34] : memref<18x18x128xbf16, #tpu.memory_space<vmem>>, vector<16x16x128xbf16>
    %24 = vector.shape_cast %23 : vector<16x16x128xbf16> to vector<256x128xbf16>
    %c0_35 = arith.constant 0 : index
    %c768 = arith.constant 768 : index
    %25 = vector.load %arg6[%c0_35, %c768] : memref<256x1152xbf16, #tpu.memory_space<vmem>>, vector<256x128xbf16>
    tpu.vector_store %arg6[%c0_35, %c768], %24 {strides = array<i32>} : memref<256x1152xbf16, #tpu.memory_space<vmem>>, vector<256x128xbf16>,
    %c2_36 = arith.constant 2 : index
    %c1_37 = arith.constant 1 : index
    %c0_38 = arith.constant 0 : index
    %26 = vector.load %arg5[%c2_36, %c1_37, %c0_38] : memref<18x18x128xbf16, #tpu.memory_space<vmem>>, vector<16x16x128xbf16>
    %27 = vector.shape_cast %26 : vector<16x16x128xbf16> to vector<256x128xbf16>
    %c0_39 = arith.constant 0 : index
    %c896 = arith.constant 896 : index
    %28 = vector.load %arg6[%c0_39, %c896] : memref<256x1152xbf16, #tpu.memory_space<vmem>>, vector<256x128xbf16>
    tpu.vector_store %arg6[%c0_39, %c896], %27 {strides = array<i32>} : memref<256x1152xbf16, #tpu.memory_space<vmem>>, vector<256x128xbf16>,
    %c2_40 = arith.constant 2 : index
    %c2_41 = arith.constant 2 : index
    %c0_42 = arith.constant 0 : index
    %29 = vector.load %arg5[%c2_40, %c2_41, %c0_42] : memref<18x18x128xbf16, #tpu.memory_space<vmem>>, vector<16x16x128xbf16>
    %30 = vector.shape_cast %29 : vector<16x16x128xbf16> to vector<256x128xbf16>
    %c0_43 = arith.constant 0 : index
    %c1024 = arith.constant 1024 : index
    %31 = vector.load %arg6[%c0_43, %c1024] : memref<256x1152xbf16, #tpu.memory_space<vmem>>, vector<256x128xbf16>
    tpu.vector_store %arg6[%c0_43, %c1024], %30 {strides = array<i32>} : memref<256x1152xbf16, #tpu.memory_space<vmem>>, vector<256x128xbf16>,
    %c0_44 = arith.constant 0 : index
    %c0_45 = arith.constant 0 : index
    %32 = vector.load %arg6[%c0_44, %c0_45] : memref<256x1152xbf16, #tpu.memory_space<vmem>>, vector<256x1152xbf16>
    %c0_46 = arith.constant 0 : index
    %c0_47 = arith.constant 0 : index
    %33 = vector.load %arg2[%c0_46, %c0_47] : memref<1152x128xbf16, #tpu.memory_space<vmem>>, vector<1152x128xbf16>
    %cst_48 = arith.constant dense<0.000000e+00> : vector<256x128xf32>
    %34 = tpu.matmul %32, %33, %cst_48 {dimension_numbers = #tpu.dot_dimension_numbers<[1], [0], [0], [1], [0, 0, 1, 1], [], []>} : vector<256x1152xbf16>, vector<1152x128xbf16>, vector<256x128xf32> -> vector<256x128xf32>
    %c0_49 = arith.constant 0 : index
    %c0_50 = arith.constant 0 : index
    %35 = vector.load %arg3[%c0_49, %c0_50] : memref<1x128xf32, #tpu.memory_space<vmem>>, vector<1x128xf32>
    %36 = vector.broadcast %35 : vector<1x128xf32> to vector<256x128xf32>
    %37 = arith.addf %34, %36 : vector<256x128xf32>
    %38 = vector.shape_cast %37 : vector<256x128xf32> to vector<1x16x16x128xf32>
    %c0_51 = arith.constant 0 : index
    %c0_52 = arith.constant 0 : index
    %c0_53 = arith.constant 0 : index
    %c0_54 = arith.constant 0 : index
    %39 = vector.load %arg4[%c0_51, %c0_52, %c0_53, %c0_54] : memref<1x16x16x128xf32, #tpu.memory_space<vmem>>, vector<1x16x16x128xf32>
    tpu.vector_store %arg4[%c0_51, %c0_52, %c0_53, %c0_54], %38 {strides = array<i32>} : memref<1x16x16x128xf32, #tpu.memory_space<vmem>>, vector<1x16x16x128xf32>,
    return
  }
  func.func @transform_0(%arg0: i32) -> (i32, i32, i32, i32) {
    %c0_i32 = arith.constant 0 : i32
    %c0_i32_0 = arith.constant 0 : i32
    %c0_i32_1 = arith.constant 0 : i32
    %c0_i32_2 = arith.constant 0 : i32
    return %arg0, %c0_i32, %c0_i32_0, %c0_i32_1 : i32, i32, i32, i32
  }
  func.func @transform_1(%arg0: i32) -> (i32, i32) {
    %c0_i32 = arith.constant 0 : i32
    %c0_i32_0 = arith.constant 0 : i32
    %c0_i32_1 = arith.constant 0 : i32
    return %c0_i32, %c0_i32_0 : i32, i32
  }
  func.func @transform_2(%arg0: i32) -> (i32, i32) {
    %c0_i32 = arith.constant 0 : i32
    %c0_i32_0 = arith.constant 0 : i32
    %c0_i32_1 = arith.constant 0 : i32
    return %c0_i32, %c0_i32_0 : i32, i32
  }
  func.func @transform_3(%arg0: i32) -> (i32, i32, i32, i32) {
    %c0_i32 = arith.constant 0 : i32
    %c0_i32_0 = arith.constant 0 : i32
    %c0_i32_1 = arith.constant 0 : i32
    %c0_i32_2 = arith.constant 0 : i32
    return %arg0, %c0_i32, %c0_i32_0, %c0_i32_1 : i32, i32, i32, i32
  }
}

</mosaic_0001>

<llo_original>
// kernel: tpu_custom_call.1
$region0: #{tpu_custom_call.1}
  #allocation0 [shape = 'u32[]', space=smem, size = 0x4, offset = 0x4, fixed_abs, tag = 'smem constant byte address 0x4 - core index']
  #allocation1 [shape = 'u32[144,128]{1,0:T(1,128)}', space=vmem, size = 0x12000, scoped, tag = 'internal scratch']
  #allocation2 [shape = 'bf16[18,18,128]{2,1,0:T(8,128)(2,1)}', space=vmem, size = 0x1b000, scoped, tag = 'scratch operand']
  #allocation3 [shape = 'bf16[256,1152]{1,0:T(16,128)(2,1)}', space=vmem, size = 0x90000, scoped, tag = 'scratch operand']
  %s0 = inlined_call_operand.hbm [shape: bf16[2,16,16,128], index: 0, kind: input, shape index: {}]
  %s1 = inlined_call_operand.hbm [shape: bf16[1152,128], index: 1, kind: input, shape index: {}]
  %s2 = inlined_call_operand.vmem [shape: f32[1,128], index: 2, kind: input, shape index: {}]
  %s3 = inlined_call_operand.hbm [shape: f32[2,16,16,128], index: 3, kind: output, shape index: {}]
  %s4 = sld [smem:[#allocation0]]
  $region53: #{tpu_custom_call.1} parent=0
    _
  %s6 = ssub.s32 1, %s4
  %s7 = scalar_select 0, %s6, %s4
  $region1: #{tpu_custom_call.1} parent=0
    #allocation4 [shape = 'u8[131072]{0}', space=vmem, size = 0x20000, scoped, tag = 'input window, operand 0']
    #allocation5 [shape = 's32[2]{0}', space=sflag, size = 0x8, scoped, tag = 'scoped memory for tpu_custom_call.1']
    #allocation6 [shape = 's32[2]{0}', space=sflag, size = 0x8, scoped, tag = 'scoped memory for tpu_custom_call.1']
    #allocation7 [shape = 'u8[294912]{0}', space=vmem, size = 0x48000, scoped, tag = 'input window, operand 1, single buffered']
    #allocation8 [shape = 's32[1]{0}', space=sflag, size = 0x4, scoped, tag = 'scoped memory for tpu_custom_call.1']
    #allocation9 [shape = 'u8[262144]{0}', space=vmem, size = 0x40000, scoped, tag = 'output window, operand 0']
    %8 = vsyncpa [#allocation5], 0
    %s9 = scalar_lea.sflag [#allocation5], 1
    %10 = vsyncpa %s9, 0
    %11 = vsyncpa [#allocation8], 0
    %12 = vsyncpa [#allocation6], 0
    %s13 = scalar_lea.sflag [#allocation6], 1
    %14 = vsyncpa %s13, 0
    loop: start=0, step=1, limit=4
    $region2: #{tpu_custom_call.1} parent=1 // loop_pre_header
      _
    $region3: #{tpu_custom_call.1} parent=1 // loop_header
      %s16 = sphi 0, %s20
      %p17 = scmp.ge.s32.totalorder %s16, 4
      %s26 = sphi 0, %s28
      %s29 = sphi 0, %s26
      %s30 = sphi 0, %s29
      %s46 = sphi 0, %s30
      %s50 = sphi 0, %s50
      %s52 = sphi 0, %s50
      %s53 = sphi 0, %s52
      %s67 = sphi 0, %s53
      %s71 = sphi 0, %s71
      %s73 = sphi 0, %s71
      %s74 = sphi 0, %s73
      %s88 = sphi 0, %s74
      %s94 = sphi 0, %s96
      %s97 = sphi 0, %s94
      %s98 = sphi 0, %s97
      %s114 = sphi 0, %s98
    $region4: #{tpu_custom_call.1} parent=1 // loop_header_branch
      %19 = sbr.rel (%p17) target = $region8
    $region5: #{tpu_custom_call.1} parent=1 // loop_body
      %s21 = ssub.s32 %s16, 1
      %s22 = ssub.s32 %s16, 2
      %s23 = sadd.s32 %s16, 1
      %s24 = ssub.s32 %s16, %s23
      %p25 = scmp.eq.s32.totalorder %s24, 0
      %s27 = sadd.s32 %s26, 1
      %s28 = scalar_select %p25, %s26, %s27
      %p31 = pneg %p25
      %p32 = scmp.eq.s32.totalorder %s16, 1
      %p33 = por %p31, %p32
      %p34 = scmp.ne.s32.totalorder %s26, %s29
      %p35 = scmp.eq.s32.totalorder %s16, 0
      %p36 = por %p34, %p35
      %p37 = scmp.ne.s32.totalorder %s26, %s29
      %p38 = scmp.eq.s32.totalorder %s21, 1
      %p39 = por %p37, %p38
      %p40 = scmp.ne.s32.totalorder %s29, %s30
      %p41 = scmp.eq.s32.totalorder %s21, 0
      %p42 = por %p40, %p41
      %p43 = scmp.ne.s32.totalorder %s29, %s30
      %p44 = scmp.eq.s32.totalorder %s22, 1
      %p45 = por %p43, %p44
      %p47 = scmp.ne.s32.totalorder %s30, %s46
      %p48 = scmp.eq.s32.totalorder %s22, 0
      %p49 = por %p47, %p48
      %s51 = sadd.s32 %s50, 1
      %p54 = scmp.eq.s32.totalorder %s16, 1
      %p55 = scmp.ne.s32.totalorder %s50, %s52
      %p56 = scmp.eq.s32.totalorder %s16, 0
      %p57 = por %p55, %p56
      %p58 = scmp.ne.s32.totalorder %s50, %s52
      %p59 = scmp.eq.s32.totalorder %s21, 1
      %p60 = por %p58, %p59
      %p61 = scmp.ne.s32.totalorder %s52, %s53
      %p62 = scmp.eq.s32.totalorder %s21, 0
      %p63 = por %p61, %p62
      %p64 = scmp.ne.s32.totalorder %s52, %s53
      %p65 = scmp.eq.s32.totalorder %s22, 1
      %p66 = por %p64, %p65
      %p68 = scmp.ne.s32.totalorder %s53, %s67
      %p69 = scmp.eq.s32.totalorder %s22, 0
      %p70 = por %p68, %p69
      %s72 = sadd.s32 %s71, 1
      %p75 = scmp.eq.s32.totalorder %s16, 1
      %p76 = scmp.ne.s32.totalorder %s71, %s73
      %p77 = scmp.eq.s32.totalorder %s16, 0
      %p78 = por %p76, %p77
      %p79 = scmp.ne.s32.totalorder %s71, %s73
      %p80 = scmp.eq.s32.totalorder %s21, 1
      %p81 = por %p79, %p80
      %p82 = scmp.ne.s32.totalorder %s73, %s74
      %p83 = scmp.eq.s32.totalorder %s21, 0
      %p84 = por %p82, %p83
      %p85 = scmp.ne.s32.totalorder %s73, %s74
      %p86 = scmp.eq.s32.totalorder %s22, 1
      %p87 = por %p85, %p86
      %p89 = scmp.ne.s32.totalorder %s74, %s88
      %p90 = scmp.eq.s32.totalorder %s22, 0
      %p91 = por %p89, %p90
      %s92 = ssub.s32 %s16, %s23
      %p93 = scmp.eq.s32.totalorder %s92, 0
      %s95 = sadd.s32 %s94, 1
      %s96 = scalar_select %p93, %s94, %s95
      %p99 = pneg %p93
      %p100 = scmp.eq.s32.totalorder %s16, 1
      %p101 = por %p99, %p100
      %p102 = scmp.ne.s32.totalorder %s94, %s97
      %p103 = scmp.eq.s32.totalorder %s16, 0
      %p104 = por %p102, %p103
      %p105 = scmp.ne.s32.totalorder %s94, %s97
      %p106 = scmp.eq.s32.totalorder %s21, 1
      %p107 = por %p105, %p106
      %p108 = scmp.ne.s32.totalorder %s97, %s98
      %p109 = scmp.eq.s32.totalorder %s21, 0
      %p110 = por %p108, %p109
      %p111 = scmp.ne.s32.totalorder %s97, %s98
      %p112 = scmp.eq.s32.totalorder %s22, 1
      %p113 = por %p111, %p112
      %p115 = scmp.ne.s32.totalorder %s98, %s114
      %p116 = scmp.eq.s32.totalorder %s22, 0
      %p117 = por %p115, %p116
      %p118 = scmp.le.s32.totalorder 1, %s16
      %p119 = scmp.lt.s32.totalorder %s16, 3
      %p120 = pnand %p118, %p119
      %p121 = pneg %p120
      // Predicated region
      $region9: #{tpu_custom_call.1} parent=5 // pred_check
        _
      $region10: #{tpu_custom_call.1} parent=5 // pred_check_branch
        %123 = sbr.rel (%p120) target = $region12
      $region11: #{tpu_custom_call.1} parent=5 // pred_region
        %s124 = ssub.s32 %s16, 1
        // Predicated region
        $region13: #{tpu_custom_call.1} parent=11 // pred_check
          %p125 = pneg %p63
        $region14: #{tpu_custom_call.1} parent=11 // pred_check_branch
          %127 = sbr.rel (%p125) target = $region16
        $region15: #{tpu_custom_call.1} parent=11 // pred_region
          %s129 = ssub.s32 9216, 9216
          %130 = vsyncadd [#allocation8], %s129
          %s131 = sshll.u32 [#allocation7], 4
          %s132 = int_to_ptr.vmem [resolvable:$true] %s131
          %137 = dma.hbm_to_vmem [thread:$0]  %s1, 9216, %s132, [#allocation8], 64, 64, 4
        $region16: #{tpu_custom_call.1} parent=11 // pred_fallthru
          _
        // Predicated region
        $region17: #{tpu_custom_call.1} parent=11 // pred_check
          %p138 = pneg %p84
        $region18: #{tpu_custom_call.1} parent=11 // pred_check_branch
          %140 = sbr.rel (%p138) target = $region20
        $region19: #{tpu_custom_call.1} parent=11 // pred_region
          _
        $region20: #{tpu_custom_call.1} parent=11 // pred_fallthru
          _
      $region12: #{tpu_custom_call.1} parent=5 // pred_fallthru
        _
      %p141 = scmp.lt.s32.totalorder %s16, 2
      // Predicated region
      $region21: #{tpu_custom_call.1} parent=5 // pred_check
        %p142 = pneg %p141
      $region22: #{tpu_custom_call.1} parent=5 // pred_check_branch
        %144 = sbr.rel (%p142) target = $region24
      $region23: #{tpu_custom_call.1} parent=5 // pred_region
        // Predicated region
        $region25: #{tpu_custom_call.1} parent=23 // pred_check
          %p145 = pneg %p36
        $region26: #{tpu_custom_call.1} parent=23 // pred_check_branch
          %147 = sbr.rel (%p145) target = $region28
        $region27: #{tpu_custom_call.1} parent=23 // pred_region
          %s148 = sand.u32 %s26, 1
          %s149 = scalar_lea.sflag [#allocation5], %s148
          %s150 = sand.u32 %s26, 1
          %s151 = smul.addr %s150, 128
          %s152 = scalar_lea.vmem [#allocation4], %s151
          %s154 = ssub.s32 2048, 2048
          %155 = vsyncadd %s149, %s154
          %s156 = smul.addr %s16, 32
          %s157 = smul.addr %s156, 64
          %s158 = scalar_lea.hbm %s0, %s157
          %s159 = sshll.u32 %s152, 4
          %s160 = int_to_ptr.vmem [resolvable:$true] %s159
          %165 = dma.hbm_to_vmem [thread:$0]  %s158, 2048, %s160, %s149, 64, 64, 4
        $region28: #{tpu_custom_call.1} parent=23 // pred_fallthru
          _
      $region24: #{tpu_custom_call.1} parent=5 // pred_fallthru
        _
      %p166 = scmp.le.s32.totalorder 1, %s16
      %p167 = scmp.lt.s32.totalorder %s16, 3
      %p168 = pnand %p166, %p167
      %p169 = pneg %p168
      // Predicated region
      $region29: #{tpu_custom_call.1} parent=5 // pred_check
        _
      $region30: #{tpu_custom_call.1} parent=5 // pred_check_branch
        %171 = sbr.rel (%p168) target = $region32
      $region31: #{tpu_custom_call.1} parent=5 // pred_region
        %s172 = ssub.s32 %s16, 1
        %s173 = sand.u32 %s29, 1
        %s174 = scalar_lea.sflag [#allocation5], %s173
        %s175 = sand.u32 %s29, 1
        %s176 = smul.addr %s175, 128
        %s177 = scalar_lea.vmem [#allocation4], %s176
        // Predicated region
        $region33: #{tpu_custom_call.1} parent=31 // pred_check
          %p178 = pneg %p42
        $region34: #{tpu_custom_call.1} parent=31 // pred_check_branch
          %180 = sbr.rel (%p178) target = $region36
        $region35: #{tpu_custom_call.1} parent=31 // pred_region
          %181 = dma.done %s174, 2048
        $region36: #{tpu_custom_call.1} parent=31 // pred_fallthru
          _
        // Predicated region
        $region37: #{tpu_custom_call.1} parent=31 // pred_check
          %p182 = pneg %p63
        $region38: #{tpu_custom_call.1} parent=31 // pred_check_branch
          %184 = sbr.rel (%p182) target = $region40
        $region39: #{tpu_custom_call.1} parent=31 // pred_region
          %185 = dma.done [#allocation8], 9216
        $region40: #{tpu_custom_call.1} parent=31 // pred_fallthru
          _
        %s186 = sand.u32 %s29, 1
        %s187 = scalar_lea.sflag [#allocation5], %s186
        %s188 = sand.u32 %s29, 1
        %s189 = smul.addr %s188, 128
        %s190 = scalar_lea.vmem [#allocation4], %s189
        %p191 = pneg %p42
        %p192 = pneg %p39
        %p193 = pneg %p63
        %p194 = pneg %p60
        %p195 = pneg %p84
        %p196 = pneg %p81
        %p197 = pneg %p110
        %p198 = pneg %p107
        %s199 = sand.u32 %s97, 1
        %s200 = scalar_lea.sflag [#allocation6], %s199
        %s201 = sand.u32 %s97, 1
        %s202 = smul.addr %s201, 256
        %s203 = scalar_lea.vmem [#allocation9], %s202
        %205 = vst [vmem:[#allocation2] sm:$0xf] 0
        %206 = vst [vmem:[#allocation2 + $0x4] sm:$0xf] 0
        %207 = vst [vmem:[#allocation2 + $0x8] sm:$0x1] 0
        %208 = vst [vmem:[#allocation2 + $0xc] sm:$0xf] 0
        %209 = vst [vmem:[#allocation2 + $0x10] sm:$0xf] 0
        %210 = vst [vmem:[#allocation2 + $0x14] sm:$0x1] 0
        %211 = vst [vmem:[#allocation2 + $0x18] sm:$0xf] 0
        %212 = vst [vmem:[#allocation2 + $0x1c] sm:$0xf] 0
        %213 = vst [vmem:[#allocation2 + $0x20] sm:$0x1] 0
        %214 = vst [vmem:[#allocation2 + $0x24] sm:$0xf] 0
        %215 = vst [vmem:[#allocation2 + $0x28] sm:$0xf] 0
        %216 = vst [vmem:[#allocation2 + $0x2c] sm:$0x1] 0
        %217 = vst [vmem:[#allocation2 + $0x30] sm:$0xf] 0
        %218 = vst [vmem:[#allocation2 + $0x34] sm:$0xf] 0
        %219 = vst [vmem:[#allocation2 + $0x38] sm:$0x1] 0
        %220 = vst [vmem:[#allocation2 + $0x3c] sm:$0xf] 0
        %221 = vst [vmem:[#allocation2 + $0x40] sm:$0xf] 0
        %222 = vst [vmem:[#allocation2 + $0x44] sm:$0x1] 0
        %223 = vst [vmem:[#allocation2 + $0x48] sm:$0xf] 0
        %224 = vst [vmem:[#allocation2 + $0x4c] sm:$0xf] 0
        %225 = vst [vmem:[#allocation2 + $0x50] sm:$0x1] 0
        %226 = vst [vmem:[#allocation2 + $0x54] sm:$0xf] 0
        %227 = vst [vmem:[#allocation2 + $0x58] sm:$0xf] 0
        %228 = vst [vmem:[#allocation2 + $0x5c] sm:$0x1] 0
        %229 = vst [vmem:[#allocation2 + $0x60] sm:$0xf] 0
        %230 = vst [vmem:[#allocation2 + $0x64] sm:$0xf] 0
        %231 = vst [vmem:[#allocation2 + $0x68] sm:$0x1] 0
        %232 = vst [vmem:[#allocation2 + $0x6c] sm:$0xf] 0
        %233 = vst [vmem:[#allocation2 + $0x70] sm:$0xf] 0
        %234 = vst [vmem:[#allocation2 + $0x74] sm:$0x1] 0
        %235 = vst [vmem:[#allocation2 + $0x78] sm:$0xf] 0
        %236 = vst [vmem:[#allocation2 + $0x7c] sm:$0xf] 0
        %237 = vst [vmem:[#allocation2 + $0x80] sm:$0x1] 0
        %238 = vst [vmem:[#allocation2 + $0x84] sm:$0xf] 0
        %239 = vst [vmem:[#allocation2 + $0x88] sm:$0xf] 0
        %240 = vst [vmem:[#allocation2 + $0x8c] sm:$0x1] 0
        %241 = vst [vmem:[#allocation2 + $0x90] sm:$0xf] 0
        %242 = vst [vmem:[#allocation2 + $0x94] sm:$0xf] 0
        %243 = vst [vmem:[#allocation2 + $0x98] sm:$0x1] 0
        %244 = vst [vmem:[#allocation2 + $0x9c] sm:$0xf] 0
        %245 = vst [vmem:[#allocation2 + $0xa0] sm:$0xf] 0
        %246 = vst [vmem:[#allocation2 + $0xa4] sm:$0x1] 0
        %247 = vst [vmem:[#allocation2 + $0xa8] sm:$0xf] 0
        %248 = vst [vmem:[#allocation2 + $0xac] sm:$0xf] 0
        %249 = vst [vmem:[#allocation2 + $0xb0] sm:$0x1] 0
        %250 = vst [vmem:[#allocation2 + $0xb4] sm:$0xf] 0
        %251 = vst [vmem:[#allocation2 + $0xb8] sm:$0xf] 0
        %252 = vst [vmem:[#allocation2 + $0xbc] sm:$0x1] 0
        %253 = vst [vmem:[#allocation2 + $0xc0] sm:$0xf] 0
        %254 = vst [vmem:[#allocation2 + $0xc4] sm:$0xf] 0
        %255 = vst [vmem:[#allocation2 + $0xc8] sm:$0x1] 0
        %256 = vst [vmem:[#allocation2 + $0xcc] sm:$0xf] 0
        %257 = vst [vmem:[#allocation2 + $0xd0] sm:$0xf] 0
        %258 = vst [vmem:[#allocation2 + $0xd4] sm:$0x1] 0
        %v259 = vld [vmem:[%s177] sm:$0xf]
        %v260 = vld [vmem:[%s177 + $0x4] sm:$0xf]
        %v261 = vld [vmem:[%s177 + $0x8] sm:$0xf]
        %v262 = vld [vmem:[%s177 + $0xc] sm:$0xf]
        %v263 = vld [vmem:[%s177 + $0x10] sm:$0xf]
        %v264 = vld [vmem:[%s177 + $0x14] sm:$0xf]
        %v265 = vld [vmem:[%s177 + $0x18] sm:$0xf]
        %v266 = vld [vmem:[%s177 + $0x1c] sm:$0xf]
        %v267 = vld [vmem:[%s177 + $0x20] sm:$0xf]
        %v268 = vld [vmem:[%s177 + $0x24] sm:$0xf]
        %v269 = vld [vmem:[%s177 + $0x28] sm:$0xf]
        %v270 = vld [vmem:[%s177 + $0x2c] sm:$0xf]
        %v271 = vld [vmem:[%s177 + $0x30] sm:$0xf]
        %v272 = vld [vmem:[%s177 + $0x34] sm:$0xf]
        %v273 = vld [vmem:[%s177 + $0x38] sm:$0xf]
        %v274 = vld [vmem:[%s177 + $0x3c] sm:$0xf]
        %v275 = vld [vmem:[%s177 + $0x40] sm:$0xf]
        %v276 = vld [vmem:[%s177 + $0x44] sm:$0xf]
        %v277 = vld [vmem:[%s177 + $0x48] sm:$0xf]
        %v278 = vld [vmem:[%s177 + $0x4c] sm:$0xf]
        %v279 = vld [vmem:[%s177 + $0x50] sm:$0xf]
        %v280 = vld [vmem:[%s177 + $0x54] sm:$0xf]
        %v281 = vld [vmem:[%s177 + $0x58] sm:$0xf]
        %v282 = vld [vmem:[%s177 + $0x5c] sm:$0xf]
        %v283 = vld [vmem:[%s177 + $0x60] sm:$0xf]
        %v284 = vld [vmem:[%s177 + $0x64] sm:$0xf]
        %v285 = vld [vmem:[%s177 + $0x68] sm:$0xf]
        %v286 = vld [vmem:[%s177 + $0x6c] sm:$0xf]
        %v287 = vld [vmem:[%s177 + $0x70] sm:$0xf]
        %v288 = vld [vmem:[%s177 + $0x74] sm:$0xf]
        %v289 = vld [vmem:[%s177 + $0x78] sm:$0xf]
        %v290 = vld [vmem:[%s177 + $0x7c] sm:$0xf]
        %vm291 = vsmask.f32 256
        %vm292 = vsmask.f32 4368
        %vm293 = vmor %vm291, %vm292
        %v295 = vshrl.u32 %v259, 16
        %v297 = vrot.slane %v295, 7
        %v298 = vshll.u32 %v259, 16
        %v300 = vor.u32 %v297, %v298
        %v301 = vrot.slane %v297, 4
        %v303 = vshrl.u32 %v260, 16
        %v305 = vrot.slane %v303, 7
        %v306 = vshll.u32 %v260, 16
        %v308 = vor.u32 %v305, %v306
        %v309 = vsel %vm293, %v301, %v308
        %v310 = vrot.slane %v305, 4
        %v312 = vshrl.u32 %v261, 16
        %v314 = vrot.slane %v312, 7
        %v315 = vshll.u32 %v261, 16
        %v317 = vor.u32 %v314, %v315
        %v318 = vrot.slane %v314, 4
        %v320 = vshrl.u32 %v262, 16
        %v322 = vrot.slane %v320, 7
        %v323 = vshll.u32 %v262, 16
        %v325 = vor.u32 %v322, %v323
        %v326 = vsel %vm293, %v318, %v325
        %v327 = vrot.slane %v322, 4
        %v329 = vshrl.u32 %v263, 16
        %v331 = vrot.slane %v329, 7
        %v332 = vshll.u32 %v263, 16
        %v334 = vor.u32 %v331, %v332
        %v335 = vrot.slane %v331, 4
        %v337 = vshrl.u32 %v264, 16
        %v339 = vrot.slane %v337, 7
        %v340 = vshll.u32 %v264, 16
        %v342 = vor.u32 %v339, %v340
        %v343 = vsel %vm293, %v335, %v342
        %v344 = vrot.slane %v339, 4
        %v346 = vshrl.u32 %v265, 16
        %v348 = vrot.slane %v346, 7
        %v349 = vshll.u32 %v265, 16
        %v351 = vor.u32 %v348, %v349
        %v352 = vrot.slane %v348, 4
        %v354 = vshrl.u32 %v266, 16
        %v356 = vrot.slane %v354, 7
        %v357 = vshll.u32 %v266, 16
        %v359 = vor.u32 %v356, %v357
        %v360 = vsel %vm293, %v352, %v359
        %v361 = vrot.slane %v356, 4
        %v363 = vshrl.u32 %v267, 16
        %v365 = vrot.slane %v363, 7
        %v366 = vshll.u32 %v267, 16
        %v368 = vor.u32 %v365, %v366
        %v369 = vrot.slane %v365, 4
        %v371 = vshrl.u32 %v268, 16
        %v373 = vrot.slane %v371, 7
        %v374 = vshll.u32 %v268, 16
        %v376 = vor.u32 %v373, %v374
        %v377 = vsel %vm293, %v369, %v376
        %v378 = vrot.slane %v373, 4
        %v380 = vshrl.u32 %v269, 16
        %v382 = vrot.slane %v380, 7
        %v383 = vshll.u32 %v269, 16
        %v385 = vor.u32 %v382, %v383
        %v386 = vrot.slane %v382, 4
        %v388 = vshrl.u32 %v270, 16
        %v390 = vrot.slane %v388, 7
        %v391 = vshll.u32 %v270, 16
        %v393 = vor.u32 %v390, %v391
        %v394 = vsel %vm293, %v386, %v393
        %v395 = vrot.slane %v390, 4
        %v397 = vshrl.u32 %v271, 16
        %v399 = vrot.slane %v397, 7
        %v400 = vshll.u32 %v271, 16
        %v402 = vor.u32 %v399, %v400
        %v403 = vrot.slane %v399, 4
        %v405 = vshrl.u32 %v272, 16
        %v407 = vrot.slane %v405, 7
        %v408 = vshll.u32 %v272, 16
        %v410 = vor.u32 %v407, %v408
        %v411 = vsel %vm293, %v403, %v410
        %v412 = vrot.slane %v407, 4
        %v414 = vshrl.u32 %v273, 16
        %v416 = vrot.slane %v414, 7
        %v417 = vshll.u32 %v273, 16
        %v419 = vor.u32 %v416, %v417
        %v420 = vrot.slane %v416, 4
        %v422 = vshrl.u32 %v274, 16
        %v424 = vrot.slane %v422, 7
        %v425 = vshll.u32 %v274, 16
        %v427 = vor.u32 %v424, %v425
        %v428 = vsel %vm293, %v420, %v427
        %v429 = vrot.slane %v424, 4
        %v431 = vshrl.u32 %v275, 16
        %v433 = vrot.slane %v431, 7
        %v434 = vshll.u32 %v275, 16
        %v436 = vor.u32 %v433, %v434
        %v437 = vrot.slane %v433, 4
        %v439 = vshrl.u32 %v276, 16
        %v441 = vrot.slane %v439, 7
        %v442 = vshll.u32 %v276, 16
        %v444 = vor.u32 %v441, %v442
        %v445 = vsel %vm293, %v437, %v444
        %v446 = vrot.slane %v441, 4
        %v448 = vshrl.u32 %v277, 16
        %v450 = vrot.slane %v448, 7
        %v451 = vshll.u32 %v277, 16
        %v453 = vor.u32 %v450, %v451
        %v454 = vrot.slane %v450, 4
        %v456 = vshrl.u32 %v278, 16
        %v458 = vrot.slane %v456, 7
        %v459 = vshll.u32 %v278, 16
        %v461 = vor.u32 %v458, %v459
        %v462 = vsel %vm293, %v454, %v461
        %v463 = vrot.slane %v458, 4
        %v465 = vshrl.u32 %v279, 16
        %v467 = vrot.slane %v465, 7
        %v468 = vshll.u32 %v279, 16
        %v470 = vor.u32 %v467, %v468
        %v471 = vrot.slane %v467, 4
        %v473 = vshrl.u32 %v280, 16
        %v475 = vrot.slane %v473, 7
        %v476 = vshll.u32 %v280, 16
        %v478 = vor.u32 %v475, %v476
        %v479 = vsel %vm293, %v471, %v478
        %v480 = vrot.slane %v475, 4
        %v482 = vshrl.u32 %v281, 16
        %v484 = vrot.slane %v482, 7
        %v485 = vshll.u32 %v281, 16
        %v487 = vor.u32 %v484, %v485
        %v488 = vrot.slane %v484, 4
        %v490 = vshrl.u32 %v282, 16
        %v492 = vrot.slane %v490, 7
        %v493 = vshll.u32 %v282, 16
        %v495 = vor.u32 %v492, %v493
        %v496 = vsel %vm293, %v488, %v495
        %v497 = vrot.slane %v492, 4
        %v499 = vshrl.u32 %v283, 16
        %v501 = vrot.slane %v499, 7
        %v502 = vshll.u32 %v283, 16
        %v504 = vor.u32 %v501, %v502
        %v505 = vrot.slane %v501, 4
        %v507 = vshrl.u32 %v284, 16
        %v509 = vrot.slane %v507, 7
        %v510 = vshll.u32 %v284, 16
        %v512 = vor.u32 %v509, %v510
        %v513 = vsel %vm293, %v505, %v512
        %v514 = vrot.slane %v509, 4
        %v516 = vshrl.u32 %v285, 16
        %v518 = vrot.slane %v516, 7
        %v519 = vshll.u32 %v285, 16
        %v521 = vor.u32 %v518, %v519
        %v522 = vrot.slane %v518, 4
        %v524 = vshrl.u32 %v286, 16
        %v526 = vrot.slane %v524, 7
        %v527 = vshll.u32 %v286, 16
        %v529 = vor.u32 %v526, %v527
        %v530 = vsel %vm293, %v522, %v529
        %v531 = vrot.slane %v526, 4
        %v533 = vshrl.u32 %v287, 16
        %v535 = vrot.slane %v533, 7
        %v536 = vshll.u32 %v287, 16
        %v538 = vor.u32 %v535, %v536
        %v539 = vrot.slane %v535, 4
        %v541 = vshrl.u32 %v288, 16
        %v543 = vrot.slane %v541, 7
        %v544 = vshll.u32 %v288, 16
        %v546 = vor.u32 %v543, %v544
        %v547 = vsel %vm293, %v539, %v546
        %v548 = vrot.slane %v543, 4
        %v550 = vshrl.u32 %v289, 16
        %v552 = vrot.slane %v550, 7
        %v553 = vshll.u32 %v289, 16
        %v555 = vor.u32 %v552, %v553
        %v556 = vrot.slane %v552, 4
        %v558 = vshrl.u32 %v290, 16
        %v560 = vrot.slane %v558, 7
        %v561 = vshll.u32 %v290, 16
        %v563 = vor.u32 %v560, %v561
        %v564 = vsel %vm293, %v556, %v563
        %v565 = vrot.slane %v560, 4
        %s614 = scalar_lea.vmem [#allocation2], 12
        %vm615 = vcmask 1043456
        %vm616 = vsmask.f32 7938
        %vm617 = vmand %vm615, %vm616
        %v618 = vld [vmem:[%s614] sm:$0xf]
        %v619 = vsel %vm617, %v300, %v618
        %620 = vst [vmem:[%s614] sm:$0xf] %v619
        %621 = vst [vmem:[%s614 + $0x4] sm:$0xf] %v309
        %vm622 = vcmask 1040384
        %vm623 = vmand %vm622, %vm291
        %v624 = vld [vmem:[%s614 + $0x8] sm:$0x1]
        %v625 = vsel %vm623, %v310, %v624
        %626 = vst [vmem:[%s614 + $0x8] sm:$0x1] %v625
        %v627 = vld [vmem:[%s614 + $0xc] sm:$0xf]
        %v628 = vsel %vm617, %v317, %v627
        %629 = vst [vmem:[%s614 + $0xc] sm:$0xf] %v628
        %630 = vst [vmem:[%s614 + $0x10] sm:$0xf] %v326
        %v631 = vld [vmem:[%s614 + $0x14] sm:$0x1]
        %v632 = vsel %vm623, %v327, %v631
        %633 = vst [vmem:[%s614 + $0x14] sm:$0x1] %v632
        %v634 = vld [vmem:[%s614 + $0x18] sm:$0xf]
        %v635 = vsel %vm617, %v334, %v634
        %636 = vst [vmem:[%s614 + $0x18] sm:$0xf] %v635
        %637 = vst [vmem:[%s614 + $0x1c] sm:$0xf] %v343
        %v638 = vld [vmem:[%s614 + $0x20] sm:$0x1]
        %v639 = vsel %vm623, %v344, %v638
        %640 = vst [vmem:[%s614 + $0x20] sm:$0x1] %v639
        %v641 = vld [vmem:[%s614 + $0x24] sm:$0xf]
        %v642 = vsel %vm617, %v351, %v641
        %643 = vst [vmem:[%s614 + $0x24] sm:$0xf] %v642
        %644 = vst [vmem:[%s614 + $0x28] sm:$0xf] %v360
        %v645 = vld [vmem:[%s614 + $0x2c] sm:$0x1]
        %v646 = vsel %vm623, %v361, %v645
        %647 = vst [vmem:[%s614 + $0x2c] sm:$0x1] %v646
        %v648 = vld [vmem:[%s614 + $0x30] sm:$0xf]
        %v649 = vsel %vm617, %v368, %v648
        %650 = vst [vmem:[%s614 + $0x30] sm:$0xf] %v649
        %651 = vst [vmem:[%s614 + $0x34] sm:$0xf] %v377
        %v652 = vld [vmem:[%s614 + $0x38] sm:$0x1]
        %v653 = vsel %vm623, %v378, %v652
        %654 = vst [vmem:[%s614 + $0x38] sm:$0x1] %v653
        %v655 = vld [vmem:[%s614 + $0x3c] sm:$0xf]
        %v656 = vsel %vm617, %v385, %v655
        %657 = vst [vmem:[%s614 + $0x3c] sm:$0xf] %v656
        %658 = vst [vmem:[%s614 + $0x40] sm:$0xf] %v394
        %v659 = vld [vmem:[%s614 + $0x44] sm:$0x1]
        %v660 = vsel %vm623, %v395, %v659
        %661 = vst [vmem:[%s614 + $0x44] sm:$0x1] %v660
        %v662 = vld [vmem:[%s614 + $0x48] sm:$0xf]
        %v663 = vsel %vm617, %v402, %v662
        %664 = vst [vmem:[%s614 + $0x48] sm:$0xf] %v663
        %665 = vst [vmem:[%s614 + $0x4c] sm:$0xf] %v411
        %v666 = vld [vmem:[%s614 + $0x50] sm:$0x1]
        %v667 = vsel %vm623, %v412, %v666
        %668 = vst [vmem:[%s614 + $0x50] sm:$0x1] %v667
        %v669 = vld [vmem:[%s614 + $0x54] sm:$0xf]
        %v670 = vsel %vm617, %v419, %v669
        %671 = vst [vmem:[%s614 + $0x54] sm:$0xf] %v670
        %672 = vst [vmem:[%s614 + $0x58] sm:$0xf] %v428
        %v673 = vld [vmem:[%s614 + $0x5c] sm:$0x1]
        %v674 = vsel %vm623, %v429, %v673
        %675 = vst [vmem:[%s614 + $0x5c] sm:$0x1] %v674
        %v676 = vld [vmem:[%s614 + $0x60] sm:$0xf]
        %v677 = vsel %vm617, %v436, %v676
        %678 = vst [vmem:[%s614 + $0x60] sm:$0xf] %v677
        %679 = vst [vmem:[%s614 + $0x64] sm:$0xf] %v445
        %v680 = vld [vmem:[%s614 + $0x68] sm:$0x1]
        %v681 = vsel %vm623, %v446, %v680
        %682 = vst [vmem:[%s614 + $0x68] sm:$0x1] %v681
        %v683 = vld [vmem:[%s614 + $0x6c] sm:$0xf]
        %v684 = vsel %vm617, %v453, %v683
        %685 = vst [vmem:[%s614 + $0x6c] sm:$0xf] %v684
        %686 = vst [vmem:[%s614 + $0x70] sm:$0xf] %v462
        %v687 = vld [vmem:[%s614 + $0x74] sm:$0x1]
        %v688 = vsel %vm623, %v463, %v687
        %689 = vst [vmem:[%s614 + $0x74] sm:$0x1] %v688
        %v690 = vld [vmem:[%s614 + $0x78] sm:$0xf]
        %v691 = vsel %vm617, %v470, %v690
        %692 = vst [vmem:[%s614 + $0x78] sm:$0xf] %v691
        %693 = vst [vmem:[%s614 + $0x7c] sm:$0xf] %v479
        %v694 = vld [vmem:[%s614 + $0x80] sm:$0x1]
        %v695 = vsel %vm623, %v480, %v694
        %696 = vst [vmem:[%s614 + $0x80] sm:$0x1] %v695
        %v697 = vld [vmem:[%s614 + $0x84] sm:$0xf]
        %v698 = vsel %vm617, %v487, %v697
        %699 = vst [vmem:[%s614 + $0x84] sm:$0xf] %v698
        %700 = vst [vmem:[%s614 + $0x88] sm:$0xf] %v496
        %v701 = vld [vmem:[%s614 + $0x8c] sm:$0x1]
        %v702 = vsel %vm623, %v497, %v701
        %703 = vst [vmem:[%s614 + $0x8c] sm:$0x1] %v702
        %v704 = vld [vmem:[%s614 + $0x90] sm:$0xf]
        %v705 = vsel %vm617, %v504, %v704
        %706 = vst [vmem:[%s614 + $0x90] sm:$0xf] %v705
        %707 = vst [vmem:[%s614 + $0x94] sm:$0xf] %v513
        %v708 = vld [vmem:[%s614 + $0x98] sm:$0x1]
        %v709 = vsel %vm623, %v514, %v708
        %710 = vst [vmem:[%s614 + $0x98] sm:$0x1] %v709
        %v711 = vld [vmem:[%s614 + $0x9c] sm:$0xf]
        %v712 = vsel %vm617, %v521, %v711
        %713 = vst [vmem:[%s614 + $0x9c] sm:$0xf] %v712
        %714 = vst [vmem:[%s614 + $0xa0] sm:$0xf] %v530
        %v715 = vld [vmem:[%s614 + $0xa4] sm:$0x1]
        %v716 = vsel %vm623, %v531, %v715
        %717 = vst [vmem:[%s614 + $0xa4] sm:$0x1] %v716
        %v718 = vld [vmem:[%s614 + $0xa8] sm:$0xf]
        %v719 = vsel %vm617, %v538, %v718
        %720 = vst [vmem:[%s614 + $0xa8] sm:$0xf] %v719
        %721 = vst [vmem:[%s614 + $0xac] sm:$0xf] %v547
        %v722 = vld [vmem:[%s614 + $0xb0] sm:$0x1]
        %v723 = vsel %vm623, %v548, %v722
        %724 = vst [vmem:[%s614 + $0xb0] sm:$0x1] %v723
        %v725 = vld [vmem:[%s614 + $0xb4] sm:$0xf]
        %v726 = vsel %vm617, %v555, %v725
        %727 = vst [vmem:[%s614 + $0xb4] sm:$0xf] %v726
        %728 = vst [vmem:[%s614 + $0xb8] sm:$0xf] %v564
        %v729 = vld [vmem:[%s614 + $0xbc] sm:$0x1]
        %v730 = vsel %vm623, %v565, %v729
        %731 = vst [vmem:[%s614 + $0xbc] sm:$0x1] %v730
        %v732 = vld [vmem:[#allocation2] sm:$0xf]
        %v733 = vld [vmem:[#allocation2 + $0x4] sm:$0xf]
        %v734 = vld [vmem:[#allocation2 + $0xc] sm:$0xf]
        %v735 = vld [vmem:[#allocation2 + $0x10] sm:$0xf]
        %v736 = vld [vmem:[#allocation2 + $0x18] sm:$0xf]
        %v737 = vld [vmem:[#allocation2 + $0x1c] sm:$0xf]
        %v738 = vld [vmem:[#allocation2 + $0x24] sm:$0xf]
        %v739 = vld [vmem:[#allocation2 + $0x28] sm:$0xf]
        %v740 = vld [vmem:[#allocation2 + $0x30] sm:$0xf]
        %v741 = vld [vmem:[#allocation2 + $0x34] sm:$0xf]
        %v742 = vld [vmem:[#allocation2 + $0x3c] sm:$0xf]
        %v743 = vld [vmem:[#allocation2 + $0x40] sm:$0xf]
        %v744 = vld [vmem:[#allocation2 + $0x48] sm:$0xf]
        %v745 = vld [vmem:[#allocation2 + $0x4c] sm:$0xf]
        %v746 = vld [vmem:[#allocation2 + $0x54] sm:$0xf]
        %v747 = vld [vmem:[#allocation2 + $0x58] sm:$0xf]
        %v748 = vld [vmem:[#allocation2 + $0x60] sm:$0xf]
        %v749 = vld [vmem:[#allocation2 + $0x64] sm:$0xf]
        %v750 = vld [vmem:[#allocation2 + $0x6c] sm:$0xf]
        %v751 = vld [vmem:[#allocation2 + $0x70] sm:$0xf]
        %v752 = vld [vmem:[#allocation2 + $0x78] sm:$0xf]
        %v753 = vld [vmem:[#allocation2 + $0x7c] sm:$0xf]
        %v754 = vld [vmem:[#allocation2 + $0x84] sm:$0xf]
        %v755 = vld [vmem:[#allocation2 + $0x88] sm:$0xf]
        %v756 = vld [vmem:[#allocation2 + $0x90] sm:$0xf]
        %v757 = vld [vmem:[#allocation2 + $0x94] sm:$0xf]
        %v758 = vld [vmem:[#allocation2 + $0x9c] sm:$0xf]
        %v759 = vld [vmem:[#allocation2 + $0xa0] sm:$0xf]
        %v760 = vld [vmem:[#allocation2 + $0xa8] sm:$0xf]
        %v761 = vld [vmem:[#allocation2 + $0xac] sm:$0xf]
        %v762 = vld [vmem:[#allocation2 + $0xb4] sm:$0xf]
        %v763 = vld [vmem:[#allocation2 + $0xb8] sm:$0xf]
        %v796 = vunpack.c.l.b16 %v732
        %v797 = vunpack.c.l.b16 %v733
        %v798 = vunpack.c.l.b16 %v734
        %v799 = vunpack.c.l.b16 %v735
        %v800 = vunpack.c.l.b16 %v736
        %v801 = vunpack.c.l.b16 %v737
        %v802 = vunpack.c.l.b16 %v738
        %v803 = vunpack.c.l.b16 %v739
        %v804 = vunpack.c.l.b16 %v740
        %v805 = vunpack.c.l.b16 %v741
        %v806 = vunpack.c.l.b16 %v742
        %v807 = vunpack.c.l.b16 %v743
        %v808 = vunpack.c.l.b16 %v744
        %v809 = vunpack.c.l.b16 %v745
        %v810 = vunpack.c.l.b16 %v746
        %v811 = vunpack.c.l.b16 %v747
        %v812 = vunpack.c.l.b16 %v748
        %v813 = vunpack.c.l.b16 %v749
        %v814 = vunpack.c.l.b16 %v750
        %v815 = vunpack.c.l.b16 %v751
        %v816 = vunpack.c.l.b16 %v752
        %v817 = vunpack.c.l.b16 %v753
        %v818 = vunpack.c.l.b16 %v754
        %v819 = vunpack.c.l.b16 %v755
        %v820 = vunpack.c.l.b16 %v756
        %v821 = vunpack.c.l.b16 %v757
        %v822 = vunpack.c.l.b16 %v758
        %v823 = vunpack.c.l.b16 %v759
        %v824 = vunpack.c.l.b16 %v760
        %v825 = vunpack.c.l.b16 %v761
        %v826 = vunpack.c.l.b16 %v762
        %v827 = vunpack.c.l.b16 %v763
        %v828 = vpack.c.b16 %v797, %v796
        %v829 = vpack.c.b16 %v799, %v798
        %v830 = vpack.c.b16 %v801, %v800
        %v831 = vpack.c.b16 %v803, %v802
        %v832 = vpack.c.b16 %v805, %v804
        %v833 = vpack.c.b16 %v807, %v806
        %v834 = vpack.c.b16 %v809, %v808
        %v835 = vpack.c.b16 %v811, %v810
        %v836 = vpack.c.b16 %v813, %v812
        %v837 = vpack.c.b16 %v815, %v814
        %v838 = vpack.c.b16 %v817, %v816
        %v839 = vpack.c.b16 %v819, %v818
        %v840 = vpack.c.b16 %v821, %v820
        %v841 = vpack.c.b16 %v823, %v822
        %v842 = vpack.c.b16 %v825, %v824
        %v843 = vpack.c.b16 %v827, %v826
        %860 = vst [vmem:[#allocation3] sm:$0xff] %v828
        %861 = vst [vmem:[#allocation3 + $0x48] sm:$0xff] %v829
        %862 = vst [vmem:[#allocation3 + $0x90] sm:$0xff] %v830
        %863 = vst [vmem:[#allocation3 + $0xd8] sm:$0xff] %v831
        %864 = vst [vmem:[#allocation3 + $0x120] sm:$0xff] %v832
        %865 = vst [vmem:[#allocation3 + $0x168] sm:$0xff] %v833
        %866 = vst [vmem:[#allocation3 + $0x1b0] sm:$0xff] %v834
        %867 = vst [vmem:[#allocation3 + $0x1f8] sm:$0xff] %v835
        %868 = vst [vmem:[#allocation3 + $0x240] sm:$0xff] %v836
        %869 = vst [vmem:[#allocation3 + $0x288] sm:$0xff] %v837
        %870 = vst [vmem:[#allocation3 + $0x2d0] sm:$0xff] %v838
        %871 = vst [vmem:[#allocation3 + $0x318] sm:$0xff] %v839
        %872 = vst [vmem:[#allocation3 + $0x360] sm:$0xff] %v840
        %873 = vst [vmem:[#allocation3 + $0x3a8] sm:$0xff] %v841
        %874 = vst [vmem:[#allocation3 + $0x3f0] sm:$0xff] %v842
        %875 = vst [vmem:[#allocation3 + $0x438] sm:$0xff] %v843
        %v876 = vld [vmem:[#allocation2] sm:$0xf]
        %v877 = vld [vmem:[#allocation2 + $0x4] sm:$0xf]
        %v878 = vld [vmem:[#allocation2 + $0x8] sm:$0x1]
        %v879 = vld [vmem:[#allocation2 + $0xc] sm:$0xf]
        %v880 = vld [vmem:[#allocation2 + $0x10] sm:$0xf]
        %v881 = vld [vmem:[#allocation2 + $0x14] sm:$0x1]
        %v882 = vld [vmem:[#allocation2 + $0x18] sm:$0xf]
        %v883 = vld [vmem:[#allocation2 + $0x1c] sm:$0xf]
        %v884 = vld [vmem:[#allocation2 + $0x20] sm:$0x1]
        %v885 = vld [vmem:[#allocation2 + $0x24] sm:$0xf]
        %v886 = vld [vmem:[#allocation2 + $0x28] sm:$0xf]
        %v887 = vld [vmem:[#allocation2 + $0x2c] sm:$0x1]
        %v888 = vld [vmem:[#allocation2 + $0x30] sm:$0xf]
        %v889 = vld [vmem:[#allocation2 + $0x34] sm:$0xf]
        %v890 = vld [vmem:[#allocation2 + $0x38] sm:$0x1]
        %v891 = vld [vmem:[#allocation2 + $0x3c] sm:$0xf]
        %v892 = vld [vmem:[#allocation2 + $0x40] sm:$0xf]
        %v893 = vld [vmem:[#allocation2 + $0x44] sm:$0x1]
        %v894 = vld [vmem:[#allocation2 + $0x48] sm:$0xf]
        %v895 = vld [vmem:[#allocation2 + $0x4c] sm:$0xf]
        %v896 = vld [vmem:[#allocation2 + $0x50] sm:$0x1]
        %v897 = vld [vmem:[#allocation2 + $0x54] sm:$0xf]
        %v898 = vld [vmem:[#allocation2 + $0x58] sm:$0xf]
        %v899 = vld [vmem:[#allocation2 + $0x5c] sm:$0x1]
        %v900 = vld [vmem:[#allocation2 + $0x60] sm:$0xf]
        %v901 = vld [vmem:[#allocation2 + $0x64] sm:$0xf]
        %v902 = vld [vmem:[#allocation2 + $0x68] sm:$0x1]
        %v903 = vld [vmem:[#allocation2 + $0x6c] sm:$0xf]
        %v904 = vld [vmem:[#allocation2 + $0x70] sm:$0xf]
        %v905 = vld [vmem:[#allocation2 + $0x74] sm:$0x1]
        %v906 = vld [vmem:[#allocation2 + $0x78] sm:$0xf]
        %v907 = vld [vmem:[#allocation2 + $0x7c] sm:$0xf]
        %v908 = vld [vmem:[#allocation2 + $0x80] sm:$0x1]
        %v909 = vld [vmem:[#allocation2 + $0x84] sm:$0xf]
        %v910 = vld [vmem:[#allocation2 + $0x88] sm:$0xf]
        %v911 = vld [vmem:[#allocation2 + $0x8c] sm:$0x1]
        %v912 = vld [vmem:[#allocation2 + $0x90] sm:$0xf]
        %v913 = vld [vmem:[#allocation2 + $0x94] sm:$0xf]
        %v914 = vld [vmem:[#allocation2 + $0x98] sm:$0x1]
        %v915 = vld [vmem:[#allocation2 + $0x9c] sm:$0xf]
        %v916 = vld [vmem:[#allocation2 + $0xa0] sm:$0xf]
        %v917 = vld [vmem:[#allocation2 + $0xa4] sm:$0x1]
        %v918 = vld [vmem:[#allocation2 + $0xa8] sm:$0xf]
        %v919 = vld [vmem:[#allocation2 + $0xac] sm:$0xf]
        %v920 = vld [vmem:[#allocation2 + $0xb0] sm:$0x1]
        %v921 = vld [vmem:[#allocation2 + $0xb4] sm:$0xf]
        %v922 = vld [vmem:[#allocation2 + $0xb8] sm:$0xf]
        %v923 = vld [vmem:[#allocation2 + $0xbc] sm:$0x1]
        %vm924 = vsmask.f32 3328
        %vm925 = vsmask.f32 7440
        %vm926 = vmor %vm924, %vm925
        %v928 = vshrl.u32 %v876, 16
        %v930 = vrot.slane %v928, 4
        %v931 = vshll.u32 %v876, 16
        %v933 = vrot.slane %v931, 5
        %v934 = vor.u32 %v930, %v933
        %v935 = vrot.slane %v934, 4
        %v937 = vshll.u32 %v877, 16
        %v939 = vrot.slane %v937, 5
        %v940 = vsel %vm926, %v935, %v939
        %v941 = vshrl.u32 %v877, 16
        %v943 = vrot.slane %v941, 4
        %v944 = vor.u32 %v943, %v939
        %v945 = vrot.slane %v944, 4
        %v947 = vshll.u32 %v878, 16
        %v949 = vrot.slane %v947, 5
        %v950 = vsel %vm926, %v945, %v949
        %v952 = vshrl.u32 %v879, 16
        %v954 = vrot.slane %v952, 4
        %v955 = vshll.u32 %v879, 16
        %v957 = vrot.slane %v955, 5
        %v958 = vor.u32 %v954, %v957
        %v959 = vrot.slane %v958, 4
        %v961 = vshll.u32 %v880, 16
        %v963 = vrot.slane %v961, 5
        %v964 = vsel %vm926, %v959, %v963
        %v965 = vshrl.u32 %v880, 16
        %v967 = vrot.slane %v965, 4
        %v968 = vor.u32 %v967, %v963
        %v969 = vrot.slane %v968, 4
        %v971 = vshll.u32 %v881, 16
        %v973 = vrot.slane %v971, 5
        %v974 = vsel %vm926, %v969, %v973
        %v976 = vshrl.u32 %v882, 16
        %v978 = vrot.slane %v976, 4
        %v979 = vshll.u32 %v882, 16
        %v981 = vrot.slane %v979, 5
        %v982 = vor.u32 %v978, %v981
        %v983 = vrot.slane %v982, 4
        %v985 = vshll.u32 %v883, 16
        %v987 = vrot.slane %v985, 5
        %v988 = vsel %vm926, %v983, %v987
        %v989 = vshrl.u32 %v883, 16
        %v991 = vrot.slane %v989, 4
        %v992 = vor.u32 %v991, %v987
        %v993 = vrot.slane %v992, 4
        %v995 = vshll.u32 %v884, 16
        %v997 = vrot.slane %v995, 5
        %v998 = vsel %vm926, %v993, %v997
        %v1000 = vshrl.u32 %v885, 16
        %v1002 = vrot.slane %v1000, 4
        %v1003 = vshll.u32 %v885, 16
        %v1005 = vrot.slane %v1003, 5
        %v1006 = vor.u32 %v1002, %v1005
        %v1007 = vrot.slane %v1006, 4
        %v1009 = vshll.u32 %v886, 16
        %v1011 = vrot.slane %v1009, 5
        %v1012 = vsel %vm926, %v1007, %v1011
        %v1013 = vshrl.u32 %v886, 16
        %v1015 = vrot.slane %v1013, 4
        %v1016 = vor.u32 %v1015, %v1011
        %v1017 = vrot.slane %v1016, 4
        %v1019 = vshll.u32 %v887, 16
        %v1021 = vrot.slane %v1019, 5
        %v1022 = vsel %vm926, %v1017, %v1021
        %v1024 = vshrl.u32 %v888, 16
        %v1026 = vrot.slane %v1024, 4
        %v1027 = vshll.u32 %v888, 16
        %v1029 = vrot.slane %v1027, 5
        %v1030 = vor.u32 %v1026, %v1029
        %v1031 = vrot.slane %v1030, 4
        %v1033 = vshll.u32 %v889, 16
        %v1035 = vrot.slane %v1033, 5
        %v1036 = vsel %vm926, %v1031, %v1035
        %v1037 = vshrl.u32 %v889, 16
        %v1039 = vrot.slane %v1037, 4
        %v1040 = vor.u32 %v1039, %v1035
        %v1041 = vrot.slane %v1040, 4
        %v1043 = vshll.u32 %v890, 16
        %v1045 = vrot.slane %v1043, 5
        %v1046 = vsel %vm926, %v1041, %v1045
        %v1048 = vshrl.u32 %v891, 16
        %v1050 = vrot.slane %v1048, 4
        %v1051 = vshll.u32 %v891, 16
        %v1053 = vrot.slane %v1051, 5
        %v1054 = vor.u32 %v1050, %v1053
        %v1055 = vrot.slane %v1054, 4
        %v1057 = vshll.u32 %v892, 16
        %v1059 = vrot.slane %v1057, 5
        %v1060 = vsel %vm926, %v1055, %v1059
        %v1061 = vshrl.u32 %v892, 16
        %v1063 = vrot.slane %v1061, 4
        %v1064 = vor.u32 %v1063, %v1059
        %v1065 = vrot.slane %v1064, 4
        %v1067 = vshll.u32 %v893, 16
        %v1069 = vrot.slane %v1067, 5
        %v1070 = vsel %vm926, %v1065, %v1069
        %v1072 = vshrl.u32 %v894, 16
        %v1074 = vrot.slane %v1072, 4
        %v1075 = vshll.u32 %v894, 16
        %v1077 = vrot.slane %v1075, 5
        %v1078 = vor.u32 %v1074, %v1077
        %v1079 = vrot.slane %v1078, 4
        %v1081 = vshll.u32 %v895, 16
        %v1083 = vrot.slane %v1081, 5
        %v1084 = vsel %vm926, %v1079, %v1083
        %v1085 = vshrl.u32 %v895, 16
        %v1087 = vrot.slane %v1085, 4
        %v1088 = vor.u32 %v1087, %v1083
        %v1089 = vrot.slane %v1088, 4
        %v1091 = vshll.u32 %v896, 16
        %v1093 = vrot.slane %v1091, 5
        %v1094 = vsel %vm926, %v1089, %v1093
        %v1096 = vshrl.u32 %v897, 16
        %v1098 = vrot.slane %v1096, 4
        %v1099 = vshll.u32 %v897, 16
        %v1101 = vrot.slane %v1099, 5
        %v1102 = vor.u32 %v1098, %v1101
        %v1103 = vrot.slane %v1102, 4
        %v1105 = vshll.u32 %v898, 16
        %v1107 = vrot.slane %v1105, 5
        %v1108 = vsel %vm926, %v1103, %v1107
        %v1109 = vshrl.u32 %v898, 16
        %v1111 = vrot.slane %v1109, 4
        %v1112 = vor.u32 %v1111, %v1107
        %v1113 = vrot.slane %v1112, 4
        %v1115 = vshll.u32 %v899, 16
        %v1117 = vrot.slane %v1115, 5
        %v1118 = vsel %vm926, %v1113, %v1117
        %v1120 = vshrl.u32 %v900, 16
        %v1122 = vrot.slane %v1120, 4
        %v1123 = vshll.u32 %v900, 16
        %v1125 = vrot.slane %v1123, 5
        %v1126 = vor.u32 %v1122, %v1125
        %v1127 = vrot.slane %v1126, 4
        %v1129 = vshll.u32 %v901, 16
        %v1131 = vrot.slane %v1129, 5
        %v1132 = vsel %vm926, %v1127, %v1131
        %v1133 = vshrl.u32 %v901, 16
        %v1135 = vrot.slane %v1133, 4
        %v1136 = vor.u32 %v1135, %v1131
        %v1137 = vrot.slane %v1136, 4
        %v1139 = vshll.u32 %v902, 16
        %v1141 = vrot.slane %v1139, 5
        %v1142 = vsel %vm926, %v1137, %v1141
        %v1144 = vshrl.u32 %v903, 16
        %v1146 = vrot.slane %v1144, 4
        %v1147 = vshll.u32 %v903, 16
        %v1149 = vrot.slane %v1147, 5
        %v1150 = vor.u32 %v1146, %v1149
        %v1151 = vrot.slane %v1150, 4
        %v1153 = vshll.u32 %v904, 16
        %v1155 = vrot.slane %v1153, 5
        %v1156 = vsel %vm926, %v1151, %v1155
        %v1157 = vshrl.u32 %v904, 16
        %v1159 = vrot.slane %v1157, 4
        %v1160 = vor.u32 %v1159, %v1155
        %v1161 = vrot.slane %v1160, 4
        %v1163 = vshll.u32 %v905, 16
        %v1165 = vrot.slane %v1163, 5
        %v1166 = vsel %vm926, %v1161, %v1165
        %v1168 = vshrl.u32 %v906, 16
        %v1170 = vrot.slane %v1168, 4
        %v1171 = vshll.u32 %v906, 16
        %v1173 = vrot.slane %v1171, 5
        %v1174 = vor.u32 %v1170, %v1173
        %v1175 = vrot.slane %v1174, 4
        %v1177 = vshll.u32 %v907, 16
        %v1179 = vrot.slane %v1177, 5
        %v1180 = vsel %vm926, %v1175, %v1179
        %v1181 = vshrl.u32 %v907, 16
        %v1183 = vrot.slane %v1181, 4
        %v1184 = vor.u32 %v1183, %v1179
        %v1185 = vrot.slane %v1184, 4
        %v1187 = vshll.u32 %v908, 16
        %v1189 = vrot.slane %v1187, 5
        %v1190 = vsel %vm926, %v1185, %v1189
        %v1192 = vshrl.u32 %v909, 16
        %v1194 = vrot.slane %v1192, 4
        %v1195 = vshll.u32 %v909, 16
        %v1197 = vrot.slane %v1195, 5
        %v1198 = vor.u32 %v1194, %v1197
        %v1199 = vrot.slane %v1198, 4
        %v1201 = vshll.u32 %v910, 16
        %v1203 = vrot.slane %v1201, 5
        %v1204 = vsel %vm926, %v1199, %v1203
        %v1205 = vshrl.u32 %v910, 16
        %v1207 = vrot.slane %v1205, 4
        %v1208 = vor.u32 %v1207, %v1203
        %v1209 = vrot.slane %v1208, 4
        %v1211 = vshll.u32 %v911, 16
        %v1213 = vrot.slane %v1211, 5
        %v1214 = vsel %vm926, %v1209, %v1213
        %v1216 = vshrl.u32 %v912, 16
        %v1218 = vrot.slane %v1216, 4
        %v1219 = vshll.u32 %v912, 16
        %v1221 = vrot.slane %v1219, 5
        %v1222 = vor.u32 %v1218, %v1221
        %v1223 = vrot.slane %v1222, 4
        %v1225 = vshll.u32 %v913, 16
        %v1227 = vrot.slane %v1225, 5
        %v1228 = vsel %vm926, %v1223, %v1227
        %v1229 = vshrl.u32 %v913, 16
        %v1231 = vrot.slane %v1229, 4
        %v1232 = vor.u32 %v1231, %v1227
        %v1233 = vrot.slane %v1232, 4
        %v1235 = vshll.u32 %v914, 16
        %v1237 = vrot.slane %v1235, 5
        %v1238 = vsel %vm926, %v1233, %v1237
        %v1240 = vshrl.u32 %v915, 16
        %v1242 = vrot.slane %v1240, 4
        %v1243 = vshll.u32 %v915, 16
        %v1245 = vrot.slane %v1243, 5
        %v1246 = vor.u32 %v1242, %v1245
        %v1247 = vrot.slane %v1246, 4
        %v1249 = vshll.u32 %v916, 16
        %v1251 = vrot.slane %v1249, 5
        %v1252 = vsel %vm926, %v1247, %v1251
        %v1253 = vshrl.u32 %v916, 16
        %v1255 = vrot.slane %v1253, 4
        %v1256 = vor.u32 %v1255, %v1251
        %v1257 = vrot.slane %v1256, 4
        %v1259 = vshll.u32 %v917, 16
        %v1261 = vrot.slane %v1259, 5
        %v1262 = vsel %vm926, %v1257, %v1261
        %v1264 = vshrl.u32 %v918, 16
        %v1266 = vrot.slane %v1264, 4
        %v1267 = vshll.u32 %v918, 16
        %v1269 = vrot.slane %v1267, 5
        %v1270 = vor.u32 %v1266, %v1269
        %v1271 = vrot.slane %v1270, 4
        %v1273 = vshll.u32 %v919, 16
        %v1275 = vrot.slane %v1273, 5
        %v1276 = vsel %vm926, %v1271, %v1275
        %v1277 = vshrl.u32 %v919, 16
        %v1279 = vrot.slane %v1277, 4
        %v1280 = vor.u32 %v1279, %v1275
        %v1281 = vrot.slane %v1280, 4
        %v1283 = vshll.u32 %v920, 16
        %v1285 = vrot.slane %v1283, 5
        %v1286 = vsel %vm926, %v1281, %v1285
        %v1288 = vshrl.u32 %v921, 16
        %v1290 = vrot.slane %v1288, 4
        %v1291 = vshll.u32 %v921, 16
        %v1293 = vrot.slane %v1291, 5
        %v1294 = vor.u32 %v1290, %v1293
        %v1295 = vrot.slane %v1294, 4
        %v1297 = vshll.u32 %v922, 16
        %v1299 = vrot.slane %v1297, 5
        %v1300 = vsel %vm926, %v1295, %v1299
        %v1301 = vshrl.u32 %v922, 16
        %v1303 = vrot.slane %v1301, 4
        %v1304 = vor.u32 %v1303, %v1299
        %v1305 = vrot.slane %v1304, 4
        %v1307 = vshll.u32 %v923, 16
        %v1309 = vrot.slane %v1307, 5
        %v1310 = vsel %vm926, %v1305, %v1309
        %v1311 = vunpack.c.l.b16 %v940
        %v1312 = vunpack.c.l.b16 %v950
        %v1313 = vunpack.c.l.b16 %v964
        %v1314 = vunpack.c.l.b16 %v974
        %v1315 = vunpack.c.l.b16 %v988
        %v1316 = vunpack.c.l.b16 %v998
        %v1317 = vunpack.c.l.b16 %v1012
        %v1318 = vunpack.c.l.b16 %v1022
        %v1319 = vunpack.c.l.b16 %v1036
        %v1320 = vunpack.c.l.b16 %v1046
        %v1321 = vunpack.c.l.b16 %v1060
        %v1322 = vunpack.c.l.b16 %v1070
        %v1323 = vunpack.c.l.b16 %v1084
        %v1324 = vunpack.c.l.b16 %v1094
        %v1325 = vunpack.c.l.b16 %v1108
        %v1326 = vunpack.c.l.b16 %v1118
        %v1327 = vunpack.c.l.b16 %v1132
        %v1328 = vunpack.c.l.b16 %v1142
        %v1329 = vunpack.c.l.b16 %v1156
        %v1330 = vunpack.c.l.b16 %v1166
        %v1331 = vunpack.c.l.b16 %v1180
        %v1332 = vunpack.c.l.b16 %v1190
        %v1333 = vunpack.c.l.b16 %v1204
        %v1334 = vunpack.c.l.b16 %v1214
        %v1335 = vunpack.c.l.b16 %v1228
        %v1336 = vunpack.c.l.b16 %v1238
        %v1337 = vunpack.c.l.b16 %v1252
        %v1338 = vunpack.c.l.b16 %v1262
        %v1339 = vunpack.c.l.b16 %v1276
        %v1340 = vunpack.c.l.b16 %v1286
        %v1341 = vunpack.c.l.b16 %v1300
        %v1342 = vunpack.c.l.b16 %v1310
        %v1343 = vpack.c.b16 %v1312, %v1311
        %v1344 = vpack.c.b16 %v1314, %v1313
        %v1345 = vpack.c.b16 %v1316, %v1315
        %v1346 = vpack.c.b16 %v1318, %v1317
        %v1347 = vpack.c.b16 %v1320, %v1319
        %v1348 = vpack.c.b16 %v1322, %v1321
        %v1349 = vpack.c.b16 %v1324, %v1323
        %v1350 = vpack.c.b16 %v1326, %v1325
        %v1351 = vpack.c.b16 %v1328, %v1327
        %v1352 = vpack.c.b16 %v1330, %v1329
        %v1353 = vpack.c.b16 %v1332, %v1331
        %v1354 = vpack.c.b16 %v1334, %v1333
        %v1355 = vpack.c.b16 %v1336, %v1335
        %v1356 = vpack.c.b16 %v1338, %v1337
        %v1357 = vpack.c.b16 %v1340, %v1339
        %v1358 = vpack.c.b16 %v1342, %v1341
        %1375 = vst [vmem:[#allocation3 + $0x8] sm:$0xff] %v1343
        %1376 = vst [vmem:[#allocation3 + $0x50] sm:$0xff] %v1344
        %1377 = vst [vmem:[#allocation3 + $0x98] sm:$0xff] %v1345
        %1378 = vst [vmem:[#allocation3 + $0xe0] sm:$0xff] %v1346
        %1379 = vst [vmem:[#allocation3 + $0x128] sm:$0xff] %v1347
        %1380 = vst [vmem:[#allocation3 + $0x170] sm:$0xff] %v1348
        %1381 = vst [vmem:[#allocation3 + $0x1b8] sm:$0xff] %v1349
        %1382 = vst [vmem:[#allocation3 + $0x200] sm:$0xff] %v1350
        %1383 = vst [vmem:[#allocation3 + $0x248] sm:$0xff] %v1351
        %1384 = vst [vmem:[#allocation3 + $0x290] sm:$0xff] %v1352
        %1385 = vst [vmem:[#allocation3 + $0x2d8] sm:$0xff] %v1353
        %1386 = vst [vmem:[#allocation3 + $0x320] sm:$0xff] %v1354
        %1387 = vst [vmem:[#allocation3 + $0x368] sm:$0xff] %v1355
        %1388 = vst [vmem:[#allocation3 + $0x3b0] sm:$0xff] %v1356
        %1389 = vst [vmem:[#allocation3 + $0x3f8] sm:$0xff] %v1357
        %1390 = vst [vmem:[#allocation3 + $0x440] sm:$0xff] %v1358
        %v1391 = vld [vmem:[#allocation2] sm:$0xe]
        %v1392 = vld [vmem:[#allocation2 + $0x4] sm:$0xf]
        %v1393 = vld [vmem:[#allocation2 + $0x8] sm:$0x1]
        %v1394 = vld [vmem:[#allocation2 + $0xc] sm:$0xe]
        %v1395 = vld [vmem:[#allocation2 + $0x10] sm:$0xf]
        %v1396 = vld [vmem:[#allocation2 + $0x14] sm:$0x1]
        %v1397 = vld [vmem:[#allocation2 + $0x18] sm:$0xe]
        %v1398 = vld [vmem:[#allocation2 + $0x1c] sm:$0xf]
        %v1399 = vld [vmem:[#allocation2 + $0x20] sm:$0x1]
        %v1400 = vld [vmem:[#allocation2 + $0x24] sm:$0xe]
        %v1401 = vld [vmem:[#allocation2 + $0x28] sm:$0xf]
        %v1402 = vld [vmem:[#allocation2 + $0x2c] sm:$0x1]
        %v1403 = vld [vmem:[#allocation2 + $0x30] sm:$0xe]
        %v1404 = vld [vmem:[#allocation2 + $0x34] sm:$0xf]
        %v1405 = vld [vmem:[#allocation2 + $0x38] sm:$0x1]
        %v1406 = vld [vmem:[#allocation2 + $0x3c] sm:$0xe]
        %v1407 = vld [vmem:[#allocation2 + $0x40] sm:$0xf]
        %v1408 = vld [vmem:[#allocation2 + $0x44] sm:$0x1]
        %v1409 = vld [vmem:[#allocation2 + $0x48] sm:$0xe]
        %v1410 = vld [vmem:[#allocation2 + $0x4c] sm:$0xf]
        %v1411 = vld [vmem:[#allocation2 + $0x50] sm:$0x1]
        %v1412 = vld [vmem:[#allocation2 + $0x54] sm:$0xe]
        %v1413 = vld [vmem:[#allocation2 + $0x58] sm:$0xf]
        %v1414 = vld [vmem:[#allocation2 + $0x5c] sm:$0x1]
        %v1415 = vld [vmem:[#allocation2 + $0x60] sm:$0xe]
        %v1416 = vld [vmem:[#allocation2 + $0x64] sm:$0xf]
        %v1417 = vld [vmem:[#allocation2 + $0x68] sm:$0x1]
        %v1418 = vld [vmem:[#allocation2 + $0x6c] sm:$0xe]
        %v1419 = vld [vmem:[#allocation2 + $0x70] sm:$0xf]
        %v1420 = vld [vmem:[#allocation2 + $0x74] sm:$0x1]
        %v1421 = vld [vmem:[#allocation2 + $0x78] sm:$0xe]
        %v1422 = vld [vmem:[#allocation2 + $0x7c] sm:$0xf]
        %v1423 = vld [vmem:[#allocation2 + $0x80] sm:$0x1]
        %v1424 = vld [vmem:[#allocation2 + $0x84] sm:$0xe]
        %v1425 = vld [vmem:[#allocation2 + $0x88] sm:$0xf]
        %v1426 = vld [vmem:[#allocation2 + $0x8c] sm:$0x1]
        %v1427 = vld [vmem:[#allocation2 + $0x90] sm:$0xe]
        %v1428 = vld [vmem:[#allocation2 + $0x94] sm:$0xf]
        %v1429 = vld [vmem:[#allocation2 + $0x98] sm:$0x1]
        %v1430 = vld [vmem:[#allocation2 + $0x9c] sm:$0xe]
        %v1431 = vld [vmem:[#allocation2 + $0xa0] sm:$0xf]
        %v1432 = vld [vmem:[#allocation2 + $0xa4] sm:$0x1]
        %v1433 = vld [vmem:[#allocation2 + $0xa8] sm:$0xe]
        %v1434 = vld [vmem:[#allocation2 + $0xac] sm:$0xf]
        %v1435 = vld [vmem:[#allocation2 + $0xb0] sm:$0x1]
        %v1436 = vld [vmem:[#allocation2 + $0xb4] sm:$0xe]
        %v1437 = vld [vmem:[#allocation2 + $0xb8] sm:$0xf]
        %v1438 = vld [vmem:[#allocation2 + $0xbc] sm:$0x1]
        %vm1487 = vcmask 1042432
        %vm1488 = vcmask 1046532
        %vm1489 = vmor %vm1487, %vm1488
        %v1490 = vrot.slane %v1391, 5
        %v1491 = vrot.slane %v1490, 4
        %v1492 = vrot.slane %v1392, 5
        %v1493 = vsel %vm1489, %v1491, %v1492
        %v1494 = vrot.slane %v1492, 4
        %v1495 = vrot.slane %v1393, 5
        %v1496 = vsel %vm1489, %v1494, %v1495
        %v1497 = vrot.slane %v1394, 5
        %v1498 = vrot.slane %v1497, 4
        %v1499 = vrot.slane %v1395, 5
        %v1500 = vsel %vm1489, %v1498, %v1499
        %v1501 = vrot.slane %v1499, 4
        %v1502 = vrot.slane %v1396, 5
        %v1503 = vsel %vm1489, %v1501, %v1502
        %v1504 = vrot.slane %v1397, 5
        %v1505 = vrot.slane %v1504, 4
        %v1506 = vrot.slane %v1398, 5
        %v1507 = vsel %vm1489, %v1505, %v1506
        %v1508 = vrot.slane %v1506, 4
        %v1509 = vrot.slane %v1399, 5
        %v1510 = vsel %vm1489, %v1508, %v1509
        %v1511 = vrot.slane %v1400, 5
        %v1512 = vrot.slane %v1511, 4
        %v1513 = vrot.slane %v1401, 5
        %v1514 = vsel %vm1489, %v1512, %v1513
        %v1515 = vrot.slane %v1513, 4
        %v1516 = vrot.slane %v1402, 5
        %v1517 = vsel %vm1489, %v1515, %v1516
        %v1518 = vrot.slane %v1403, 5
        %v1519 = vrot.slane %v1518, 4
        %v1520 = vrot.slane %v1404, 5
        %v1521 = vsel %vm1489, %v1519, %v1520
        %v1522 = vrot.slane %v1520, 4
        %v1523 = vrot.slane %v1405, 5
        %v1524 = vsel %vm1489, %v1522, %v1523
        %v1525 = vrot.slane %v1406, 5
        %v1526 = vrot.slane %v1525, 4
        %v1527 = vrot.slane %v1407, 5
        %v1528 = vsel %vm1489, %v1526, %v1527
        %v1529 = vrot.slane %v1527, 4
        %v1530 = vrot.slane %v1408, 5
        %v1531 = vsel %vm1489, %v1529, %v1530
        %v1532 = vrot.slane %v1409, 5
        %v1533 = vrot.slane %v1532, 4
        %v1534 = vrot.slane %v1410, 5
        %v1535 = vsel %vm1489, %v1533, %v1534
        %v1536 = vrot.slane %v1534, 4
        %v1537 = vrot.slane %v1411, 5
        %v1538 = vsel %vm1489, %v1536, %v1537
        %v1539 = vrot.slane %v1412, 5
        %v1540 = vrot.slane %v1539, 4
        %v1541 = vrot.slane %v1413, 5
        %v1542 = vsel %vm1489, %v1540, %v1541
        %v1543 = vrot.slane %v1541, 4
        %v1544 = vrot.slane %v1414, 5
        %v1545 = vsel %vm1489, %v1543, %v1544
        %v1546 = vrot.slane %v1415, 5
        %v1547 = vrot.slane %v1546, 4
        %v1548 = vrot.slane %v1416, 5
        %v1549 = vsel %vm1489, %v1547, %v1548
        %v1550 = vrot.slane %v1548, 4
        %v1551 = vrot.slane %v1417, 5
        %v1552 = vsel %vm1489, %v1550, %v1551
        %v1553 = vrot.slane %v1418, 5
        %v1554 = vrot.slane %v1553, 4
        %v1555 = vrot.slane %v1419, 5
        %v1556 = vsel %vm1489, %v1554, %v1555
        %v1557 = vrot.slane %v1555, 4
        %v1558 = vrot.slane %v1420, 5
        %v1559 = vsel %vm1489, %v1557, %v1558
        %v1560 = vrot.slane %v1421, 5
        %v1561 = vrot.slane %v1560, 4
        %v1562 = vrot.slane %v1422, 5
        %v1563 = vsel %vm1489, %v1561, %v1562
        %v1564 = vrot.slane %v1562, 4
        %v1565 = vrot.slane %v1423, 5
        %v1566 = vsel %vm1489, %v1564, %v1565
        %v1567 = vrot.slane %v1424, 5
        %v1568 = vrot.slane %v1567, 4
        %v1569 = vrot.slane %v1425, 5
        %v1570 = vsel %vm1489, %v1568, %v1569
        %v1571 = vrot.slane %v1569, 4
        %v1572 = vrot.slane %v1426, 5
        %v1573 = vsel %vm1489, %v1571, %v1572
        %v1574 = vrot.slane %v1427, 5
        %v1575 = vrot.slane %v1574, 4
        %v1576 = vrot.slane %v1428, 5
        %v1577 = vsel %vm1489, %v1575, %v1576
        %v1578 = vrot.slane %v1576, 4
        %v1579 = vrot.slane %v1429, 5
        %v1580 = vsel %vm1489, %v1578, %v1579
        %v1581 = vrot.slane %v1430, 5
        %v1582 = vrot.slane %v1581, 4
        %v1583 = vrot.slane %v1431, 5
        %v1584 = vsel %vm1489, %v1582, %v1583
        %v1585 = vrot.slane %v1583, 4
        %v1586 = vrot.slane %v1432, 5
        %v1587 = vsel %vm1489, %v1585, %v1586
        %v1588 = vrot.slane %v1433, 5
        %v1589 = vrot.slane %v1588, 4
        %v1590 = vrot.slane %v1434, 5
        %v1591 = vsel %vm1489, %v1589, %v1590
        %v1592 = vrot.slane %v1590, 4
        %v1593 = vrot.slane %v1435, 5
        %v1594 = vsel %vm1489, %v1592, %v1593
        %v1595 = vrot.slane %v1436, 5
        %v1596 = vrot.slane %v1595, 4
        %v1597 = vrot.slane %v1437, 5
        %v1598 = vsel %vm1489, %v1596, %v1597
        %v1599 = vrot.slane %v1597, 4
        %v1600 = vrot.slane %v1438, 5
        %v1601 = vsel %vm1489, %v1599, %v1600
        %v1602 = vunpack.c.l.b16 %v1493
        %v1603 = vunpack.c.l.b16 %v1496
        %v1604 = vunpack.c.l.b16 %v1500
        %v1605 = vunpack.c.l.b16 %v1503
        %v1606 = vunpack.c.l.b16 %v1507
        %v1607 = vunpack.c.l.b16 %v1510
        %v1608 = vunpack.c.l.b16 %v1514
        %v1609 = vunpack.c.l.b16 %v1517
        %v1610 = vunpack.c.l.b16 %v1521
        %v1611 = vunpack.c.l.b16 %v1524
        %v1612 = vunpack.c.l.b16 %v1528
        %v1613 = vunpack.c.l.b16 %v1531
        %v1614 = vunpack.c.l.b16 %v1535
        %v1615 = vunpack.c.l.b16 %v1538
        %v1616 = vunpack.c.l.b16 %v1542
        %v1617 = vunpack.c.l.b16 %v1545
        %v1618 = vunpack.c.l.b16 %v1549
        %v1619 = vunpack.c.l.b16 %v1552
        %v1620 = vunpack.c.l.b16 %v1556
        %v1621 = vunpack.c.l.b16 %v1559
        %v1622 = vunpack.c.l.b16 %v1563
        %v1623 = vunpack.c.l.b16 %v1566
        %v1624 = vunpack.c.l.b16 %v1570
        %v1625 = vunpack.c.l.b16 %v1573
        %v1626 = vunpack.c.l.b16 %v1577
        %v1627 = vunpack.c.l.b16 %v1580
        %v1628 = vunpack.c.l.b16 %v1584
        %v1629 = vunpack.c.l.b16 %v1587
        %v1630 = vunpack.c.l.b16 %v1591
        %v1631 = vunpack.c.l.b16 %v1594
        %v1632 = vunpack.c.l.b16 %v1598
        %v1633 = vunpack.c.l.b16 %v1601
        %v1634 = vpack.c.b16 %v1603, %v1602
        %v1635 = vpack.c.b16 %v1605, %v1604
        %v1636 = vpack.c.b16 %v1607, %v1606
        %v1637 = vpack.c.b16 %v1609, %v1608
        %v1638 = vpack.c.b16 %v1611, %v1610
        %v1639 = vpack.c.b16 %v1613, %v1612
        %v1640 = vpack.c.b16 %v1615, %v1614
        %v1641 = vpack.c.b16 %v1617, %v1616
        %v1642 = vpack.c.b16 %v1619, %v1618
        %v1643 = vpack.c.b16 %v1621, %v1620
        %v1644 = vpack.c.b16 %v1623, %v1622
        %v1645 = vpack.c.b16 %v1625, %v1624
        %v1646 = vpack.c.b16 %v1627, %v1626
        %v1647 = vpack.c.b16 %v1629, %v1628
        %v1648 = vpack.c.b16 %v1631, %v1630
        %v1649 = vpack.c.b16 %v1633, %v1632
        %1666 = vst [vmem:[#allocation3 + $0x10] sm:$0xff] %v1634
        %1667 = vst [vmem:[#allocation3 + $0x58] sm:$0xff] %v1635
        %1668 = vst [vmem:[#allocation3 + $0xa0] sm:$0xff] %v1636
        %1669 = vst [vmem:[#allocation3 + $0xe8] sm:$0xff] %v1637
        %1670 = vst [vmem:[#allocation3 + $0x130] sm:$0xff] %v1638
        %1671 = vst [vmem:[#allocation3 + $0x178] sm:$0xff] %v1639
        %1672 = vst [vmem:[#allocation3 + $0x1c0] sm:$0xff] %v1640
        %1673 = vst [vmem:[#allocation3 + $0x208] sm:$0xff] %v1641
        %1674 = vst [vmem:[#allocation3 + $0x250] sm:$0xff] %v1642
        %1675 = vst [vmem:[#allocation3 + $0x298] sm:$0xff] %v1643
        %1676 = vst [vmem:[#allocation3 + $0x2e0] sm:$0xff] %v1644
        %1677 = vst [vmem:[#allocation3 + $0x328] sm:$0xff] %v1645
        %1678 = vst [vmem:[#allocation3 + $0x370] sm:$0xff] %v1646
        %1679 = vst [vmem:[#allocation3 + $0x3b8] sm:$0xff] %v1647
        %1680 = vst [vmem:[#allocation3 + $0x400] sm:$0xff] %v1648
        %1681 = vst [vmem:[#allocation3 + $0x448] sm:$0xff] %v1649
        %v1682 = vld [vmem:[%s614] sm:$0xf]
        %v1683 = vld [vmem:[%s614 + $0x4] sm:$0xf]
        %v1684 = vld [vmem:[%s614 + $0xc] sm:$0xf]
        %v1685 = vld [vmem:[%s614 + $0x10] sm:$0xf]
        %v1686 = vld [vmem:[%s614 + $0x18] sm:$0xf]
        %v1687 = vld [vmem:[%s614 + $0x1c] sm:$0xf]
        %v1688 = vld [vmem:[%s614 + $0x24] sm:$0xf]
        %v1689 = vld [vmem:[%s614 + $0x28] sm:$0xf]
        %v1690 = vld [vmem:[%s614 + $0x30] sm:$0xf]
        %v1691 = vld [vmem:[%s614 + $0x34] sm:$0xf]
        %v1692 = vld [vmem:[%s614 + $0x3c] sm:$0xf]
        %v1693 = vld [vmem:[%s614 + $0x40] sm:$0xf]
        %v1694 = vld [vmem:[%s614 + $0x48] sm:$0xf]
        %v1695 = vld [vmem:[%s614 + $0x4c] sm:$0xf]
        %v1696 = vld [vmem:[%s614 + $0x54] sm:$0xf]
        %v1697 = vld [vmem:[%s614 + $0x58] sm:$0xf]
        %v1698 = vld [vmem:[%s614 + $0x60] sm:$0xf]
        %v1699 = vld [vmem:[%s614 + $0x64] sm:$0xf]
        %v1700 = vld [vmem:[%s614 + $0x6c] sm:$0xf]
        %v1701 = vld [vmem:[%s614 + $0x70] sm:$0xf]
        %v1702 = vld [vmem:[%s614 + $0x78] sm:$0xf]
        %v1703 = vld [vmem:[%s614 + $0x7c] sm:$0xf]
        %v1704 = vld [vmem:[%s614 + $0x84] sm:$0xf]
        %v1705 = vld [vmem:[%s614 + $0x88] sm:$0xf]
        %v1706 = vld [vmem:[%s614 + $0x90] sm:$0xf]
        %v1707 = vld [vmem:[%s614 + $0x94] sm:$0xf]
        %v1708 = vld [vmem:[%s614 + $0x9c] sm:$0xf]
        %v1709 = vld [vmem:[%s614 + $0xa0] sm:$0xf]
        %v1710 = vld [vmem:[%s614 + $0xa8] sm:$0xf]
        %v1711 = vld [vmem:[%s614 + $0xac] sm:$0xf]
        %v1712 = vld [vmem:[%s614 + $0xb4] sm:$0xf]
        %v1713 = vld [vmem:[%s614 + $0xb8] sm:$0xf]
        %v1746 = vunpack.c.l.b16 %v1682
        %v1747 = vunpack.c.l.b16 %v1683
        %v1748 = vunpack.c.l.b16 %v1684
        %v1749 = vunpack.c.l.b16 %v1685
        %v1750 = vunpack.c.l.b16 %v1686
        %v1751 = vunpack.c.l.b16 %v1687
        %v1752 = vunpack.c.l.b16 %v1688
        %v1753 = vunpack.c.l.b16 %v1689
        %v1754 = vunpack.c.l.b16 %v1690
        %v1755 = vunpack.c.l.b16 %v1691
        %v1756 = vunpack.c.l.b16 %v1692
        %v1757 = vunpack.c.l.b16 %v1693
        %v1758 = vunpack.c.l.b16 %v1694
        %v1759 = vunpack.c.l.b16 %v1695
        %v1760 = vunpack.c.l.b16 %v1696
        %v1761 = vunpack.c.l.b16 %v1697
        %v1762 = vunpack.c.l.b16 %v1698
        %v1763 = vunpack.c.l.b16 %v1699
        %v1764 = vunpack.c.l.b16 %v1700
        %v1765 = vunpack.c.l.b16 %v1701
        %v1766 = vunpack.c.l.b16 %v1702
        %v1767 = vunpack.c.l.b16 %v1703
        %v1768 = vunpack.c.l.b16 %v1704
        %v1769 = vunpack.c.l.b16 %v1705
        %v1770 = vunpack.c.l.b16 %v1706
        %v1771 = vunpack.c.l.b16 %v1707
        %v1772 = vunpack.c.l.b16 %v1708
        %v1773 = vunpack.c.l.b16 %v1709
        %v1774 = vunpack.c.l.b16 %v1710
        %v1775 = vunpack.c.l.b16 %v1711
        %v1776 = vunpack.c.l.b16 %v1712
        %v1777 = vunpack.c.l.b16 %v1713
        %v1778 = vpack.c.b16 %v1747, %v1746
        %v1779 = vpack.c.b16 %v1749, %v1748
        %v1780 = vpack.c.b16 %v1751, %v1750
        %v1781 = vpack.c.b16 %v1753, %v1752
        %v1782 = vpack.c.b16 %v1755, %v1754
        %v1783 = vpack.c.b16 %v1757, %v1756
        %v1784 = vpack.c.b16 %v1759, %v1758
        %v1785 = vpack.c.b16 %v1761, %v1760
        %v1786 = vpack.c.b16 %v1763, %v1762
        %v1787 = vpack.c.b16 %v1765, %v1764
        %v1788 = vpack.c.b16 %v1767, %v1766
        %v1789 = vpack.c.b16 %v1769, %v1768
        %v1790 = vpack.c.b16 %v1771, %v1770
        %v1791 = vpack.c.b16 %v1773, %v1772
        %v1792 = vpack.c.b16 %v1775, %v1774
        %v1793 = vpack.c.b16 %v1777, %v1776
        %1810 = vst [vmem:[#allocation3 + $0x18] sm:$0xff] %v1778
        %1811 = vst [vmem:[#allocation3 + $0x60] sm:$0xff] %v1779
        %1812 = vst [vmem:[#allocation3 + $0xa8] sm:$0xff] %v1780
        %1813 = vst [vmem:[#allocation3 + $0xf0] sm:$0xff] %v1781
        %1814 = vst [vmem:[#allocation3 + $0x138] sm:$0xff] %v1782
        %1815 = vst [vmem:[#allocation3 + $0x180] sm:$0xff] %v1783
        %1816 = vst [vmem:[#allocation3 + $0x1c8] sm:$0xff] %v1784
        %1817 = vst [vmem:[#allocation3 + $0x210] sm:$0xff] %v1785
        %1818 = vst [vmem:[#allocation3 + $0x258] sm:$0xff] %v1786
        %1819 = vst [vmem:[#allocation3 + $0x2a0] sm:$0xff] %v1787
        %1820 = vst [vmem:[#allocation3 + $0x2e8] sm:$0xff] %v1788
        %1821 = vst [vmem:[#allocation3 + $0x330] sm:$0xff] %v1789
        %1822 = vst [vmem:[#allocation3 + $0x378] sm:$0xff] %v1790
        %1823 = vst [vmem:[#allocation3 + $0x3c0] sm:$0xff] %v1791
        %1824 = vst [vmem:[#allocation3 + $0x408] sm:$0xff] %v1792
        %1825 = vst [vmem:[#allocation3 + $0x450] sm:$0xff] %v1793
        %v1826 = vld [vmem:[%s614] sm:$0xf]
        %v1827 = vld [vmem:[%s614 + $0x4] sm:$0xf]
        %v1828 = vld [vmem:[%s614 + $0x8] sm:$0x1]
        %v1829 = vld [vmem:[%s614 + $0xc] sm:$0xf]
        %v1830 = vld [vmem:[%s614 + $0x10] sm:$0xf]
        %v1831 = vld [vmem:[%s614 + $0x14] sm:$0x1]
        %v1832 = vld [vmem:[%s614 + $0x18] sm:$0xf]
        %v1833 = vld [vmem:[%s614 + $0x1c] sm:$0xf]
        %v1834 = vld [vmem:[%s614 + $0x20] sm:$0x1]
        %v1835 = vld [vmem:[%s614 + $0x24] sm:$0xf]
        %v1836 = vld [vmem:[%s614 + $0x28] sm:$0xf]
        %v1837 = vld [vmem:[%s614 + $0x2c] sm:$0x1]
        %v1838 = vld [vmem:[%s614 + $0x30] sm:$0xf]
        %v1839 = vld [vmem:[%s614 + $0x34] sm:$0xf]
        %v1840 = vld [vmem:[%s614 + $0x38] sm:$0x1]
        %v1841 = vld [vmem:[%s614 + $0x3c] sm:$0xf]
        %v1842 = vld [vmem:[%s614 + $0x40] sm:$0xf]
        %v1843 = vld [vmem:[%s614 + $0x44] sm:$0x1]
        %v1844 = vld [vmem:[%s614 + $0x48] sm:$0xf]
        %v1845 = vld [vmem:[%s614 + $0x4c] sm:$0xf]
        %v1846 = vld [vmem:[%s614 + $0x50] sm:$0x1]
        %v1847 = vld [vmem:[%s614 + $0x54] sm:$0xf]
        %v1848 = vld [vmem:[%s614 + $0x58] sm:$0xf]
        %v1849 = vld [vmem:[%s614 + $0x5c] sm:$0x1]
        %v1850 = vld [vmem:[%s614 + $0x60] sm:$0xf]
        %v1851 = vld [vmem:[%s614 + $0x64] sm:$0xf]
        %v1852 = vld [vmem:[%s614 + $0x68] sm:$0x1]
        %v1853 = vld [vmem:[%s614 + $0x6c] sm:$0xf]
        %v1854 = vld [vmem:[%s614 + $0x70] sm:$0xf]
        %v1855 = vld [vmem:[%s614 + $0x74] sm:$0x1]
        %v1856 = vld [vmem:[%s614 + $0x78] sm:$0xf]
        %v1857 = vld [vmem:[%s614 + $0x7c] sm:$0xf]
        %v1858 = vld [vmem:[%s614 + $0x80] sm:$0x1]
        %v1859 = vld [vmem:[%s614 + $0x84] sm:$0xf]
        %v1860 = vld [vmem:[%s614 + $0x88] sm:$0xf]
        %v1861 = vld [vmem:[%s614 + $0x8c] sm:$0x1]
        %v1862 = vld [vmem:[%s614 + $0x90] sm:$0xf]
        %v1863 = vld [vmem:[%s614 + $0x94] sm:$0xf]
        %v1864 = vld [vmem:[%s614 + $0x98] sm:$0x1]
        %v1865 = vld [vmem:[%s614 + $0x9c] sm:$0xf]
        %v1866 = vld [vmem:[%s614 + $0xa0] sm:$0xf]
        %v1867 = vld [vmem:[%s614 + $0xa4] sm:$0x1]
        %v1868 = vld [vmem:[%s614 + $0xa8] sm:$0xf]
        %v1869 = vld [vmem:[%s614 + $0xac] sm:$0xf]
        %v1870 = vld [vmem:[%s614 + $0xb0] sm:$0x1]
        %v1871 = vld [vmem:[%s614 + $0xb4] sm:$0xf]
        %v1872 = vld [vmem:[%s614 + $0xb8] sm:$0xf]
        %v1873 = vld [vmem:[%s614 + $0xbc] sm:$0x1]
        %v1875 = vshrl.u32 %v1826, 16
        %v1877 = vrot.slane %v1875, 4
        %v1878 = vshll.u32 %v1826, 16
        %v1880 = vrot.slane %v1878, 5
        %v1881 = vor.u32 %v1877, %v1880
        %v1882 = vrot.slane %v1881, 4
        %v1884 = vshll.u32 %v1827, 16
        %v1886 = vrot.slane %v1884, 5
        %v1887 = vsel %vm926, %v1882, %v1886
        %v1888 = vshrl.u32 %v1827, 16
        %v1890 = vrot.slane %v1888, 4
        %v1891 = vor.u32 %v1890, %v1886
        %v1892 = vrot.slane %v1891, 4
        %v1894 = vshll.u32 %v1828, 16
        %v1896 = vrot.slane %v1894, 5
        %v1897 = vsel %vm926, %v1892, %v1896
        %v1899 = vshrl.u32 %v1829, 16
        %v1901 = vrot.slane %v1899, 4
        %v1902 = vshll.u32 %v1829, 16
        %v1904 = vrot.slane %v1902, 5
        %v1905 = vor.u32 %v1901, %v1904
        %v1906 = vrot.slane %v1905, 4
        %v1908 = vshll.u32 %v1830, 16
        %v1910 = vrot.slane %v1908, 5
        %v1911 = vsel %vm926, %v1906, %v1910
        %v1912 = vshrl.u32 %v1830, 16
        %v1914 = vrot.slane %v1912, 4
        %v1915 = vor.u32 %v1914, %v1910
        %v1916 = vrot.slane %v1915, 4
        %v1918 = vshll.u32 %v1831, 16
        %v1920 = vrot.slane %v1918, 5
        %v1921 = vsel %vm926, %v1916, %v1920
        %v1923 = vshrl.u32 %v1832, 16
        %v1925 = vrot.slane %v1923, 4
        %v1926 = vshll.u32 %v1832, 16
        %v1928 = vrot.slane %v1926, 5
        %v1929 = vor.u32 %v1925, %v1928
        %v1930 = vrot.slane %v1929, 4
        %v1932 = vshll.u32 %v1833, 16
        %v1934 = vrot.slane %v1932, 5
        %v1935 = vsel %vm926, %v1930, %v1934
        %v1936 = vshrl.u32 %v1833, 16
        %v1938 = vrot.slane %v1936, 4
        %v1939 = vor.u32 %v1938, %v1934
        %v1940 = vrot.slane %v1939, 4
        %v1942 = vshll.u32 %v1834, 16
        %v1944 = vrot.slane %v1942, 5
        %v1945 = vsel %vm926, %v1940, %v1944
        %v1947 = vshrl.u32 %v1835, 16
        %v1949 = vrot.slane %v1947, 4
        %v1950 = vshll.u32 %v1835, 16
        %v1952 = vrot.slane %v1950, 5
        %v1953 = vor.u32 %v1949, %v1952
        %v1954 = vrot.slane %v1953, 4
        %v1956 = vshll.u32 %v1836, 16
        %v1958 = vrot.slane %v1956, 5
        %v1959 = vsel %vm926, %v1954, %v1958
        %v1960 = vshrl.u32 %v1836, 16
        %v1962 = vrot.slane %v1960, 4
        %v1963 = vor.u32 %v1962, %v1958
        %v1964 = vrot.slane %v1963, 4
        %v1966 = vshll.u32 %v1837, 16
        %v1968 = vrot.slane %v1966, 5
        %v1969 = vsel %vm926, %v1964, %v1968
        %v1971 = vshrl.u32 %v1838, 16
        %v1973 = vrot.slane %v1971, 4
        %v1974 = vshll.u32 %v1838, 16
        %v1976 = vrot.slane %v1974, 5
        %v1977 = vor.u32 %v1973, %v1976
        %v1978 = vrot.slane %v1977, 4
        %v1980 = vshll.u32 %v1839, 16
        %v1982 = vrot.slane %v1980, 5
        %v1983 = vsel %vm926, %v1978, %v1982
        %v1984 = vshrl.u32 %v1839, 16
        %v1986 = vrot.slane %v1984, 4
        %v1987 = vor.u32 %v1986, %v1982
        %v1988 = vrot.slane %v1987, 4
        %v1990 = vshll.u32 %v1840, 16
        %v1992 = vrot.slane %v1990, 5
        %v1993 = vsel %vm926, %v1988, %v1992
        %v1995 = vshrl.u32 %v1841, 16
        %v1997 = vrot.slane %v1995, 4
        %v1998 = vshll.u32 %v1841, 16
        %v2000 = vrot.slane %v1998, 5
        %v2001 = vor.u32 %v1997, %v2000
        %v2002 = vrot.slane %v2001, 4
        %v2004 = vshll.u32 %v1842, 16
        %v2006 = vrot.slane %v2004, 5
        %v2007 = vsel %vm926, %v2002, %v2006
        %v2008 = vshrl.u32 %v1842, 16
        %v2010 = vrot.slane %v2008, 4
        %v2011 = vor.u32 %v2010, %v2006
        %v2012 = vrot.slane %v2011, 4
        %v2014 = vshll.u32 %v1843, 16
        %v2016 = vrot.slane %v2014, 5
        %v2017 = vsel %vm926, %v2012, %v2016
        %v2019 = vshrl.u32 %v1844, 16
        %v2021 = vrot.slane %v2019, 4
        %v2022 = vshll.u32 %v1844, 16
        %v2024 = vrot.slane %v2022, 5
        %v2025 = vor.u32 %v2021, %v2024
        %v2026 = vrot.slane %v2025, 4
        %v2028 = vshll.u32 %v1845, 16
        %v2030 = vrot.slane %v2028, 5
        %v2031 = vsel %vm926, %v2026, %v2030
        %v2032 = vshrl.u32 %v1845, 16
        %v2034 = vrot.slane %v2032, 4
        %v2035 = vor.u32 %v2034, %v2030
        %v2036 = vrot.slane %v2035, 4
        %v2038 = vshll.u32 %v1846, 16
        %v2040 = vrot.slane %v2038, 5
        %v2041 = vsel %vm926, %v2036, %v2040
        %v2043 = vshrl.u32 %v1847, 16
        %v2045 = vrot.slane %v2043, 4
        %v2046 = vshll.u32 %v1847, 16
        %v2048 = vrot.slane %v2046, 5
        %v2049 = vor.u32 %v2045, %v2048
        %v2050 = vrot.slane %v2049, 4
        %v2052 = vshll.u32 %v1848, 16
        %v2054 = vrot.slane %v2052, 5
        %v2055 = vsel %vm926, %v2050, %v2054
        %v2056 = vshrl.u32 %v1848, 16
        %v2058 = vrot.slane %v2056, 4
        %v2059 = vor.u32 %v2058, %v2054
        %v2060 = vrot.slane %v2059, 4
        %v2062 = vshll.u32 %v1849, 16
        %v2064 = vrot.slane %v2062, 5
        %v2065 = vsel %vm926, %v2060, %v2064
        %v2067 = vshrl.u32 %v1850, 16
        %v2069 = vrot.slane %v2067, 4
        %v2070 = vshll.u32 %v1850, 16
        %v2072 = vrot.slane %v2070, 5
        %v2073 = vor.u32 %v2069, %v2072
        %v2074 = vrot.slane %v2073, 4
        %v2076 = vshll.u32 %v1851, 16
        %v2078 = vrot.slane %v2076, 5
        %v2079 = vsel %vm926, %v2074, %v2078
        %v2080 = vshrl.u32 %v1851, 16
        %v2082 = vrot.slane %v2080, 4
        %v2083 = vor.u32 %v2082, %v2078
        %v2084 = vrot.slane %v2083, 4
        %v2086 = vshll.u32 %v1852, 16
        %v2088 = vrot.slane %v2086, 5
        %v2089 = vsel %vm926, %v2084, %v2088
        %v2091 = vshrl.u32 %v1853, 16
        %v2093 = vrot.slane %v2091, 4
        %v2094 = vshll.u32 %v1853, 16
        %v2096 = vrot.slane %v2094, 5
        %v2097 = vor.u32 %v2093, %v2096
        %v2098 = vrot.slane %v2097, 4
        %v2100 = vshll.u32 %v1854, 16
        %v2102 = vrot.slane %v2100, 5
        %v2103 = vsel %vm926, %v2098, %v2102
        %v2104 = vshrl.u32 %v1854, 16
        %v2106 = vrot.slane %v2104, 4
        %v2107 = vor.u32 %v2106, %v2102
        %v2108 = vrot.slane %v2107, 4
        %v2110 = vshll.u32 %v1855, 16
        %v2112 = vrot.slane %v2110, 5
        %v2113 = vsel %vm926, %v2108, %v2112
        %v2115 = vshrl.u32 %v1856, 16
        %v2117 = vrot.slane %v2115, 4
        %v2118 = vshll.u32 %v1856, 16
        %v2120 = vrot.slane %v2118, 5
        %v2121 = vor.u32 %v2117, %v2120
        %v2122 = vrot.slane %v2121, 4
        %v2124 = vshll.u32 %v1857, 16
        %v2126 = vrot.slane %v2124, 5
        %v2127 = vsel %vm926, %v2122, %v2126
        %v2128 = vshrl.u32 %v1857, 16
        %v2130 = vrot.slane %v2128, 4
        %v2131 = vor.u32 %v2130, %v2126
        %v2132 = vrot.slane %v2131, 4
        %v2134 = vshll.u32 %v1858, 16
        %v2136 = vrot.slane %v2134, 5
        %v2137 = vsel %vm926, %v2132, %v2136
        %v2139 = vshrl.u32 %v1859, 16
        %v2141 = vrot.slane %v2139, 4
        %v2142 = vshll.u32 %v1859, 16
        %v2144 = vrot.slane %v2142, 5
        %v2145 = vor.u32 %v2141, %v2144
        %v2146 = vrot.slane %v2145, 4
        %v2148 = vshll.u32 %v1860, 16
        %v2150 = vrot.slane %v2148, 5
        %v2151 = vsel %vm926, %v2146, %v2150
        %v2152 = vshrl.u32 %v1860, 16
        %v2154 = vrot.slane %v2152, 4
        %v2155 = vor.u32 %v2154, %v2150
        %v2156 = vrot.slane %v2155, 4
        %v2158 = vshll.u32 %v1861, 16
        %v2160 = vrot.slane %v2158, 5
        %v2161 = vsel %vm926, %v2156, %v2160
        %v2163 = vshrl.u32 %v1862, 16
        %v2165 = vrot.slane %v2163, 4
        %v2166 = vshll.u32 %v1862, 16
        %v2168 = vrot.slane %v2166, 5
        %v2169 = vor.u32 %v2165, %v2168
        %v2170 = vrot.slane %v2169, 4
        %v2172 = vshll.u32 %v1863, 16
        %v2174 = vrot.slane %v2172, 5
        %v2175 = vsel %vm926, %v2170, %v2174
        %v2176 = vshrl.u32 %v1863, 16
        %v2178 = vrot.slane %v2176, 4
        %v2179 = vor.u32 %v2178, %v2174
        %v2180 = vrot.slane %v2179, 4
        %v2182 = vshll.u32 %v1864, 16
        %v2184 = vrot.slane %v2182, 5
        %v2185 = vsel %vm926, %v2180, %v2184
        %v2187 = vshrl.u32 %v1865, 16
        %v2189 = vrot.slane %v2187, 4
        %v2190 = vshll.u32 %v1865, 16
        %v2192 = vrot.slane %v2190, 5
        %v2193 = vor.u32 %v2189, %v2192
        %v2194 = vrot.slane %v2193, 4
        %v2196 = vshll.u32 %v1866, 16
        %v2198 = vrot.slane %v2196, 5
        %v2199 = vsel %vm926, %v2194, %v2198
        %v2200 = vshrl.u32 %v1866, 16
        %v2202 = vrot.slane %v2200, 4
        %v2203 = vor.u32 %v2202, %v2198
        %v2204 = vrot.slane %v2203, 4
        %v2206 = vshll.u32 %v1867, 16
        %v2208 = vrot.slane %v2206, 5
        %v2209 = vsel %vm926, %v2204, %v2208
        %v2211 = vshrl.u32 %v1868, 16
        %v2213 = vrot.slane %v2211, 4
        %v2214 = vshll.u32 %v1868, 16
        %v2216 = vrot.slane %v2214, 5
        %v2217 = vor.u32 %v2213, %v2216
        %v2218 = vrot.slane %v2217, 4
        %v2220 = vshll.u32 %v1869, 16
        %v2222 = vrot.slane %v2220, 5
        %v2223 = vsel %vm926, %v2218, %v2222
        %v2224 = vshrl.u32 %v1869, 16
        %v2226 = vrot.slane %v2224, 4
        %v2227 = vor.u32 %v2226, %v2222
        %v2228 = vrot.slane %v2227, 4
        %v2230 = vshll.u32 %v1870, 16
        %v2232 = vrot.slane %v2230, 5
        %v2233 = vsel %vm926, %v2228, %v2232
        %v2235 = vshrl.u32 %v1871, 16
        %v2237 = vrot.slane %v2235, 4
        %v2238 = vshll.u32 %v1871, 16
        %v2240 = vrot.slane %v2238, 5
        %v2241 = vor.u32 %v2237, %v2240
        %v2242 = vrot.slane %v2241, 4
        %v2244 = vshll.u32 %v1872, 16
        %v2246 = vrot.slane %v2244, 5
        %v2247 = vsel %vm926, %v2242, %v2246
        %v2248 = vshrl.u32 %v1872, 16
        %v2250 = vrot.slane %v2248, 4
        %v2251 = vor.u32 %v2250, %v2246
        %v2252 = vrot.slane %v2251, 4
        %v2254 = vshll.u32 %v1873, 16
        %v2256 = vrot.slane %v2254, 5
        %v2257 = vsel %vm926, %v2252, %v2256
        %v2258 = vunpack.c.l.b16 %v1887
        %v2259 = vunpack.c.l.b16 %v1897
        %v2260 = vunpack.c.l.b16 %v1911
        %v2261 = vunpack.c.l.b16 %v1921
        %v2262 = vunpack.c.l.b16 %v1935
        %v2263 = vunpack.c.l.b16 %v1945
        %v2264 = vunpack.c.l.b16 %v1959
        %v2265 = vunpack.c.l.b16 %v1969
        %v2266 = vunpack.c.l.b16 %v1983
        %v2267 = vunpack.c.l.b16 %v1993
        %v2268 = vunpack.c.l.b16 %v2007
        %v2269 = vunpack.c.l.b16 %v2017
        %v2270 = vunpack.c.l.b16 %v2031
        %v2271 = vunpack.c.l.b16 %v2041
        %v2272 = vunpack.c.l.b16 %v2055
        %v2273 = vunpack.c.l.b16 %v2065
        %v2274 = vunpack.c.l.b16 %v2079
        %v2275 = vunpack.c.l.b16 %v2089
        %v2276 = vunpack.c.l.b16 %v2103
        %v2277 = vunpack.c.l.b16 %v2113
        %v2278 = vunpack.c.l.b16 %v2127
        %v2279 = vunpack.c.l.b16 %v2137
        %v2280 = vunpack.c.l.b16 %v2151
        %v2281 = vunpack.c.l.b16 %v2161
        %v2282 = vunpack.c.l.b16 %v2175
        %v2283 = vunpack.c.l.b16 %v2185
        %v2284 = vunpack.c.l.b16 %v2199
        %v2285 = vunpack.c.l.b16 %v2209
        %v2286 = vunpack.c.l.b16 %v2223
        %v2287 = vunpack.c.l.b16 %v2233
        %v2288 = vunpack.c.l.b16 %v2247
        %v2289 = vunpack.c.l.b16 %v2257
        %v2290 = vpack.c.b16 %v2259, %v2258
        %v2291 = vpack.c.b16 %v2261, %v2260
        %v2292 = vpack.c.b16 %v2263, %v2262
        %v2293 = vpack.c.b16 %v2265, %v2264
        %v2294 = vpack.c.b16 %v2267, %v2266
        %v2295 = vpack.c.b16 %v2269, %v2268
        %v2296 = vpack.c.b16 %v2271, %v2270
        %v2297 = vpack.c.b16 %v2273, %v2272
        %v2298 = vpack.c.b16 %v2275, %v2274
        %v2299 = vpack.c.b16 %v2277, %v2276
        %v2300 = vpack.c.b16 %v2279, %v2278
        %v2301 = vpack.c.b16 %v2281, %v2280
        %v2302 = vpack.c.b16 %v2283, %v2282
        %v2303 = vpack.c.b16 %v2285, %v2284
        %v2304 = vpack.c.b16 %v2287, %v2286
        %v2305 = vpack.c.b16 %v2289, %v2288
        %2322 = vst [vmem:[#allocation3 + $0x20] sm:$0xff] %v2290
        %2323 = vst [vmem:[#allocation3 + $0x68] sm:$0xff] %v2291
        %2324 = vst [vmem:[#allocation3 + $0xb0] sm:$0xff] %v2292
        %2325 = vst [vmem:[#allocation3 + $0xf8] sm:$0xff] %v2293
        %2326 = vst [vmem:[#allocation3 + $0x140] sm:$0xff] %v2294
        %2327 = vst [vmem:[#allocation3 + $0x188] sm:$0xff] %v2295
        %2328 = vst [vmem:[#allocation3 + $0x1d0] sm:$0xff] %v2296
        %2329 = vst [vmem:[#allocation3 + $0x218] sm:$0xff] %v2297
        %2330 = vst [vmem:[#allocation3 + $0x260] sm:$0xff] %v2298
        %2331 = vst [vmem:[#allocation3 + $0x2a8] sm:$0xff] %v2299
        %2332 = vst [vmem:[#allocation3 + $0x2f0] sm:$0xff] %v2300
        %2333 = vst [vmem:[#allocation3 + $0x338] sm:$0xff] %v2301
        %2334 = vst [vmem:[#allocation3 + $0x380] sm:$0xff] %v2302
        %2335 = vst [vmem:[#allocation3 + $0x3c8] sm:$0xff] %v2303
        %2336 = vst [vmem:[#allocation3 + $0x410] sm:$0xff] %v2304
        %2337 = vst [vmem:[#allocation3 + $0x458] sm:$0xff] %v2305
        %v2338 = vld [vmem:[%s614] sm:$0xe]
        %v2339 = vld [vmem:[%s614 + $0x4] sm:$0xf]
        %v2340 = vld [vmem:[%s614 + $0x8] sm:$0x1]
        %v2341 = vld [vmem:[%s614 + $0xc] sm:$0xe]
        %v2342 = vld [vmem:[%s614 + $0x10] sm:$0xf]
        %v2343 = vld [vmem:[%s614 + $0x14] sm:$0x1]
        %v2344 = vld [vmem:[%s614 + $0x18] sm:$0xe]
        %v2345 = vld [vmem:[%s614 + $0x1c] sm:$0xf]
        %v2346 = vld [vmem:[%s614 + $0x20] sm:$0x1]
        %v2347 = vld [vmem:[%s614 + $0x24] sm:$0xe]
        %v2348 = vld [vmem:[%s614 + $0x28] sm:$0xf]
        %v2349 = vld [vmem:[%s614 + $0x2c] sm:$0x1]
        %v2350 = vld [vmem:[%s614 + $0x30] sm:$0xe]
        %v2351 = vld [vmem:[%s614 + $0x34] sm:$0xf]
        %v2352 = vld [vmem:[%s614 + $0x38] sm:$0x1]
        %v2353 = vld [vmem:[%s614 + $0x3c] sm:$0xe]
        %v2354 = vld [vmem:[%s614 + $0x40] sm:$0xf]
        %v2355 = vld [vmem:[%s614 + $0x44] sm:$0x1]
        %v2356 = vld [vmem:[%s614 + $0x48] sm:$0xe]
        %v2357 = vld [vmem:[%s614 + $0x4c] sm:$0xf]
        %v2358 = vld [vmem:[%s614 + $0x50] sm:$0x1]
        %v2359 = vld [vmem:[%s614 + $0x54] sm:$0xe]
        %v2360 = vld [vmem:[%s614 + $0x58] sm:$0xf]
        %v2361 = vld [vmem:[%s614 + $0x5c] sm:$0x1]
        %v2362 = vld [vmem:[%s614 + $0x60] sm:$0xe]
        %v2363 = vld [vmem:[%s614 + $0x64] sm:$0xf]
        %v2364 = vld [vmem:[%s614 + $0x68] sm:$0x1]
        %v2365 = vld [vmem:[%s614 + $0x6c] sm:$0xe]
        %v2366 = vld [vmem:[%s614 + $0x70] sm:$0xf]
        %v2367 = vld [vmem:[%s614 + $0x74] sm:$0x1]
        %v2368 = vld [vmem:[%s614 + $0x78] sm:$0xe]
        %v2369 = vld [vmem:[%s614 + $0x7c] sm:$0xf]
        %v2370 = vld [vmem:[%s614 + $0x80] sm:$0x1]
        %v2371 = vld [vmem:[%s614 + $0x84] sm:$0xe]
        %v2372 = vld [vmem:[%s614 + $0x88] sm:$0xf]
        %v2373 = vld [vmem:[%s614 + $0x8c] sm:$0x1]
        %v2374 = vld [vmem:[%s614 + $0x90] sm:$0xe]
        %v2375 = vld [vmem:[%s614 + $0x94] sm:$0xf]
        %v2376 = vld [vmem:[%s614 + $0x98] sm:$0x1]
        %v2377 = vld [vmem:[%s614 + $0x9c] sm:$0xe]
        %v2378 = vld [vmem:[%s614 + $0xa0] sm:$0xf]
        %v2379 = vld [vmem:[%s614 + $0xa4] sm:$0x1]
        %v2380 = vld [vmem:[%s614 + $0xa8] sm:$0xe]
        %v2381 = vld [vmem:[%s614 + $0xac] sm:$0xf]
        %v2382 = vld [vmem:[%s614 + $0xb0] sm:$0x1]
        %v2383 = vld [vmem:[%s614 + $0xb4] sm:$0xe]
        %v2384 = vld [vmem:[%s614 + $0xb8] sm:$0xf]
        %v2385 = vld [vmem:[%s614 + $0xbc] sm:$0x1]
        %v2434 = vrot.slane %v2338, 5
        %v2435 = vrot.slane %v2434, 4
        %v2436 = vrot.slane %v2339, 5
        %v2437 = vsel %vm1489, %v2435, %v2436
        %v2438 = vrot.slane %v2436, 4
        %v2439 = vrot.slane %v2340, 5
        %v2440 = vsel %vm1489, %v2438, %v2439
        %v2441 = vrot.slane %v2341, 5
        %v2442 = vrot.slane %v2441, 4
        %v2443 = vrot.slane %v2342, 5
        %v2444 = vsel %vm1489, %v2442, %v2443
        %v2445 = vrot.slane %v2443, 4
        %v2446 = vrot.slane %v2343, 5
        %v2447 = vsel %vm1489, %v2445, %v2446
        %v2448 = vrot.slane %v2344, 5
        %v2449 = vrot.slane %v2448, 4
        %v2450 = vrot.slane %v2345, 5
        %v2451 = vsel %vm1489, %v2449, %v2450
        %v2452 = vrot.slane %v2450, 4
        %v2453 = vrot.slane %v2346, 5
        %v2454 = vsel %vm1489, %v2452, %v2453
        %v2455 = vrot.slane %v2347, 5
        %v2456 = vrot.slane %v2455, 4
        %v2457 = vrot.slane %v2348, 5
        %v2458 = vsel %vm1489, %v2456, %v2457
        %v2459 = vrot.slane %v2457, 4
        %v2460 = vrot.slane %v2349, 5
        %v2461 = vsel %vm1489, %v2459, %v2460
        %v2462 = vrot.slane %v2350, 5
        %v2463 = vrot.slane %v2462, 4
        %v2464 = vrot.slane %v2351, 5
        %v2465 = vsel %vm1489, %v2463, %v2464
        %v2466 = vrot.slane %v2464, 4
        %v2467 = vrot.slane %v2352, 5
        %v2468 = vsel %vm1489, %v2466, %v2467
        %v2469 = vrot.slane %v2353, 5
        %v2470 = vrot.slane %v2469, 4
        %v2471 = vrot.slane %v2354, 5
        %v2472 = vsel %vm1489, %v2470, %v2471
        %v2473 = vrot.slane %v2471, 4
        %v2474 = vrot.slane %v2355, 5
        %v2475 = vsel %vm1489, %v2473, %v2474
        %v2476 = vrot.slane %v2356, 5
        %v2477 = vrot.slane %v2476, 4
        %v2478 = vrot.slane %v2357, 5
        %v2479 = vsel %vm1489, %v2477, %v2478
        %v2480 = vrot.slane %v2478, 4
        %v2481 = vrot.slane %v2358, 5
        %v2482 = vsel %vm1489, %v2480, %v2481
        %v2483 = vrot.slane %v2359, 5
        %v2484 = vrot.slane %v2483, 4
        %v2485 = vrot.slane %v2360, 5
        %v2486 = vsel %vm1489, %v2484, %v2485
        %v2487 = vrot.slane %v2485, 4
        %v2488 = vrot.slane %v2361, 5
        %v2489 = vsel %vm1489, %v2487, %v2488
        %v2490 = vrot.slane %v2362, 5
        %v2491 = vrot.slane %v2490, 4
        %v2492 = vrot.slane %v2363, 5
        %v2493 = vsel %vm1489, %v2491, %v2492
        %v2494 = vrot.slane %v2492, 4
        %v2495 = vrot.slane %v2364, 5
        %v2496 = vsel %vm1489, %v2494, %v2495
        %v2497 = vrot.slane %v2365, 5
        %v2498 = vrot.slane %v2497, 4
        %v2499 = vrot.slane %v2366, 5
        %v2500 = vsel %vm1489, %v2498, %v2499
        %v2501 = vrot.slane %v2499, 4
        %v2502 = vrot.slane %v2367, 5
        %v2503 = vsel %vm1489, %v2501, %v2502
        %v2504 = vrot.slane %v2368, 5
        %v2505 = vrot.slane %v2504, 4
        %v2506 = vrot.slane %v2369, 5
        %v2507 = vsel %vm1489, %v2505, %v2506
        %v2508 = vrot.slane %v2506, 4
        %v2509 = vrot.slane %v2370, 5
        %v2510 = vsel %vm1489, %v2508, %v2509
        %v2511 = vrot.slane %v2371, 5
        %v2512 = vrot.slane %v2511, 4
        %v2513 = vrot.slane %v2372, 5
        %v2514 = vsel %vm1489, %v2512, %v2513
        %v2515 = vrot.slane %v2513, 4
        %v2516 = vrot.slane %v2373, 5
        %v2517 = vsel %vm1489, %v2515, %v2516
        %v2518 = vrot.slane %v2374, 5
        %v2519 = vrot.slane %v2518, 4
        %v2520 = vrot.slane %v2375, 5
        %v2521 = vsel %vm1489, %v2519, %v2520
        %v2522 = vrot.slane %v2520, 4
        %v2523 = vrot.slane %v2376, 5
        %v2524 = vsel %vm1489, %v2522, %v2523
        %v2525 = vrot.slane %v2377, 5
        %v2526 = vrot.slane %v2525, 4
        %v2527 = vrot.slane %v2378, 5
        %v2528 = vsel %vm1489, %v2526, %v2527
        %v2529 = vrot.slane %v2527, 4
        %v2530 = vrot.slane %v2379, 5
        %v2531 = vsel %vm1489, %v2529, %v2530
        %v2532 = vrot.slane %v2380, 5
        %v2533 = vrot.slane %v2532, 4
        %v2534 = vrot.slane %v2381, 5
        %v2535 = vsel %vm1489, %v2533, %v2534
        %v2536 = vrot.slane %v2534, 4
        %v2537 = vrot.slane %v2382, 5
        %v2538 = vsel %vm1489, %v2536, %v2537
        %v2539 = vrot.slane %v2383, 5
        %v2540 = vrot.slane %v2539, 4
        %v2541 = vrot.slane %v2384, 5
        %v2542 = vsel %vm1489, %v2540, %v2541
        %v2543 = vrot.slane %v2541, 4
        %v2544 = vrot.slane %v2385, 5
        %v2545 = vsel %vm1489, %v2543, %v2544
        %v2546 = vunpack.c.l.b16 %v2437
        %v2547 = vunpack.c.l.b16 %v2440
        %v2548 = vunpack.c.l.b16 %v2444
        %v2549 = vunpack.c.l.b16 %v2447
        %v2550 = vunpack.c.l.b16 %v2451
        %v2551 = vunpack.c.l.b16 %v2454
        %v2552 = vunpack.c.l.b16 %v2458
        %v2553 = vunpack.c.l.b16 %v2461
        %v2554 = vunpack.c.l.b16 %v2465
        %v2555 = vunpack.c.l.b16 %v2468
        %v2556 = vunpack.c.l.b16 %v2472
        %v2557 = vunpack.c.l.b16 %v2475
        %v2558 = vunpack.c.l.b16 %v2479
        %v2559 = vunpack.c.l.b16 %v2482
        %v2560 = vunpack.c.l.b16 %v2486
        %v2561 = vunpack.c.l.b16 %v2489
        %v2562 = vunpack.c.l.b16 %v2493
        %v2563 = vunpack.c.l.b16 %v2496
        %v2564 = vunpack.c.l.b16 %v2500
        %v2565 = vunpack.c.l.b16 %v2503
        %v2566 = vunpack.c.l.b16 %v2507
        %v2567 = vunpack.c.l.b16 %v2510
        %v2568 = vunpack.c.l.b16 %v2514
        %v2569 = vunpack.c.l.b16 %v2517
        %v2570 = vunpack.c.l.b16 %v2521
        %v2571 = vunpack.c.l.b16 %v2524
        %v2572 = vunpack.c.l.b16 %v2528
        %v2573 = vunpack.c.l.b16 %v2531
        %v2574 = vunpack.c.l.b16 %v2535
        %v2575 = vunpack.c.l.b16 %v2538
        %v2576 = vunpack.c.l.b16 %v2542
        %v2577 = vunpack.c.l.b16 %v2545
        %v2578 = vpack.c.b16 %v2547, %v2546
        %v2579 = vpack.c.b16 %v2549, %v2548
        %v2580 = vpack.c.b16 %v2551, %v2550
        %v2581 = vpack.c.b16 %v2553, %v2552
        %v2582 = vpack.c.b16 %v2555, %v2554
        %v2583 = vpack.c.b16 %v2557, %v2556
        %v2584 = vpack.c.b16 %v2559, %v2558
        %v2585 = vpack.c.b16 %v2561, %v2560
        %v2586 = vpack.c.b16 %v2563, %v2562
        %v2587 = vpack.c.b16 %v2565, %v2564
        %v2588 = vpack.c.b16 %v2567, %v2566
        %v2589 = vpack.c.b16 %v2569, %v2568
        %v2590 = vpack.c.b16 %v2571, %v2570
        %v2591 = vpack.c.b16 %v2573, %v2572
        %v2592 = vpack.c.b16 %v2575, %v2574
        %v2593 = vpack.c.b16 %v2577, %v2576
        %2610 = vst [vmem:[#allocation3 + $0x28] sm:$0xff] %v2578
        %2611 = vst [vmem:[#allocation3 + $0x70] sm:$0xff] %v2579
        %2612 = vst [vmem:[#allocation3 + $0xb8] sm:$0xff] %v2580
        %2613 = vst [vmem:[#allocation3 + $0x100] sm:$0xff] %v2581
        %2614 = vst [vmem:[#allocation3 + $0x148] sm:$0xff] %v2582
        %2615 = vst [vmem:[#allocation3 + $0x190] sm:$0xff] %v2583
        %2616 = vst [vmem:[#allocation3 + $0x1d8] sm:$0xff] %v2584
        %2617 = vst [vmem:[#allocation3 + $0x220] sm:$0xff] %v2585
        %2618 = vst [vmem:[#allocation3 + $0x268] sm:$0xff] %v2586
        %2619 = vst [vmem:[#allocation3 + $0x2b0] sm:$0xff] %v2587
        %2620 = vst [vmem:[#allocation3 + $0x2f8] sm:$0xff] %v2588
        %2621 = vst [vmem:[#allocation3 + $0x340] sm:$0xff] %v2589
        %2622 = vst [vmem:[#allocation3 + $0x388] sm:$0xff] %v2590
        %2623 = vst [vmem:[#allocation3 + $0x3d0] sm:$0xff] %v2591
        %2624 = vst [vmem:[#allocation3 + $0x418] sm:$0xff] %v2592
        %2625 = vst [vmem:[#allocation3 + $0x460] sm:$0xff] %v2593
        %s2626 = scalar_lea.vmem [#allocation2], 24
        %v2627 = vld [vmem:[%s2626] sm:$0xf]
        %v2628 = vld [vmem:[%s2626 + $0x4] sm:$0xf]
        %v2629 = vld [vmem:[%s2626 + $0xc] sm:$0xf]
        %v2630 = vld [vmem:[%s2626 + $0x10] sm:$0xf]
        %v2631 = vld [vmem:[%s2626 + $0x18] sm:$0xf]
        %v2632 = vld [vmem:[%s2626 + $0x1c] sm:$0xf]
        %v2633 = vld [vmem:[%s2626 + $0x24] sm:$0xf]
        %v2634 = vld [vmem:[%s2626 + $0x28] sm:$0xf]
        %v2635 = vld [vmem:[%s2626 + $0x30] sm:$0xf]
        %v2636 = vld [vmem:[%s2626 + $0x34] sm:$0xf]
        %v2637 = vld [vmem:[%s2626 + $0x3c] sm:$0xf]
        %v2638 = vld [vmem:[%s2626 + $0x40] sm:$0xf]
        %v2639 = vld [vmem:[%s2626 + $0x48] sm:$0xf]
        %v2640 = vld [vmem:[%s2626 + $0x4c] sm:$0xf]
        %v2641 = vld [vmem:[%s2626 + $0x54] sm:$0xf]
        %v2642 = vld [vmem:[%s2626 + $0x58] sm:$0xf]
        %v2643 = vld [vmem:[%s2626 + $0x60] sm:$0xf]
        %v2644 = vld [vmem:[%s2626 + $0x64] sm:$0xf]
        %v2645 = vld [vmem:[%s2626 + $0x6c] sm:$0xf]
        %v2646 = vld [vmem:[%s2626 + $0x70] sm:$0xf]
        %v2647 = vld [vmem:[%s2626 + $0x78] sm:$0xf]
        %v2648 = vld [vmem:[%s2626 + $0x7c] sm:$0xf]
        %v2649 = vld [vmem:[%s2626 + $0x84] sm:$0xf]
        %v2650 = vld [vmem:[%s2626 + $0x88] sm:$0xf]
        %v2651 = vld [vmem:[%s2626 + $0x90] sm:$0xf]
        %v2652 = vld [vmem:[%s2626 + $0x94] sm:$0xf]
        %v2653 = vld [vmem:[%s2626 + $0x9c] sm:$0xf]
        %v2654 = vld [vmem:[%s2626 + $0xa0] sm:$0xf]
        %v2655 = vld [vmem:[%s2626 + $0xa8] sm:$0xf]
        %v2656 = vld [vmem:[%s2626 + $0xac] sm:$0xf]
        %v2657 = vld [vmem:[%s2626 + $0xb4] sm:$0xf]
        %v2658 = vld [vmem:[%s2626 + $0xb8] sm:$0xf]
        %v2691 = vunpack.c.l.b16 %v2627
        %v2692 = vunpack.c.l.b16 %v2628
        %v2693 = vunpack.c.l.b16 %v2629
        %v2694 = vunpack.c.l.b16 %v2630
        %v2695 = vunpack.c.l.b16 %v2631
        %v2696 = vunpack.c.l.b16 %v2632
        %v2697 = vunpack.c.l.b16 %v2633
        %v2698 = vunpack.c.l.b16 %v2634
        %v2699 = vunpack.c.l.b16 %v2635
        %v2700 = vunpack.c.l.b16 %v2636
        %v2701 = vunpack.c.l.b16 %v2637
        %v2702 = vunpack.c.l.b16 %v2638
        %v2703 = vunpack.c.l.b16 %v2639
        %v2704 = vunpack.c.l.b16 %v2640
        %v2705 = vunpack.c.l.b16 %v2641
        %v2706 = vunpack.c.l.b16 %v2642
        %v2707 = vunpack.c.l.b16 %v2643
        %v2708 = vunpack.c.l.b16 %v2644
        %v2709 = vunpack.c.l.b16 %v2645
        %v2710 = vunpack.c.l.b16 %v2646
        %v2711 = vunpack.c.l.b16 %v2647
        %v2712 = vunpack.c.l.b16 %v2648
        %v2713 = vunpack.c.l.b16 %v2649
        %v2714 = vunpack.c.l.b16 %v2650
        %v2715 = vunpack.c.l.b16 %v2651
        %v2716 = vunpack.c.l.b16 %v2652
        %v2717 = vunpack.c.l.b16 %v2653
        %v2718 = vunpack.c.l.b16 %v2654
        %v2719 = vunpack.c.l.b16 %v2655
        %v2720 = vunpack.c.l.b16 %v2656
        %v2721 = vunpack.c.l.b16 %v2657
        %v2722 = vunpack.c.l.b16 %v2658
        %v2723 = vpack.c.b16 %v2692, %v2691
        %v2724 = vpack.c.b16 %v2694, %v2693
        %v2725 = vpack.c.b16 %v2696, %v2695
        %v2726 = vpack.c.b16 %v2698, %v2697
        %v2727 = vpack.c.b16 %v2700, %v2699
        %v2728 = vpack.c.b16 %v2702, %v2701
        %v2729 = vpack.c.b16 %v2704, %v2703
        %v2730 = vpack.c.b16 %v2706, %v2705
        %v2731 = vpack.c.b16 %v2708, %v2707
        %v2732 = vpack.c.b16 %v2710, %v2709
        %v2733 = vpack.c.b16 %v2712, %v2711
        %v2734 = vpack.c.b16 %v2714, %v2713
        %v2735 = vpack.c.b16 %v2716, %v2715
        %v2736 = vpack.c.b16 %v2718, %v2717
        %v2737 = vpack.c.b16 %v2720, %v2719
        %v2738 = vpack.c.b16 %v2722, %v2721
        %2755 = vst [vmem:[#allocation3 + $0x30] sm:$0xff] %v2723
        %2756 = vst [vmem:[#allocation3 + $0x78] sm:$0xff] %v2724
        %2757 = vst [vmem:[#allocation3 + $0xc0] sm:$0xff] %v2725
        %2758 = vst [vmem:[#allocation3 + $0x108] sm:$0xff] %v2726
        %2759 = vst [vmem:[#allocation3 + $0x150] sm:$0xff] %v2727
        %2760 = vst [vmem:[#allocation3 + $0x198] sm:$0xff] %v2728
        %2761 = vst [vmem:[#allocation3 + $0x1e0] sm:$0xff] %v2729
        %2762 = vst [vmem:[#allocation3 + $0x228] sm:$0xff] %v2730
        %2763 = vst [vmem:[#allocation3 + $0x270] sm:$0xff] %v2731
        %2764 = vst [vmem:[#allocation3 + $0x2b8] sm:$0xff] %v2732
        %2765 = vst [vmem:[#allocation3 + $0x300] sm:$0xff] %v2733
        %2766 = vst [vmem:[#allocation3 + $0x348] sm:$0xff] %v2734
        %2767 = vst [vmem:[#allocation3 + $0x390] sm:$0xff] %v2735
        %2768 = vst [vmem:[#allocation3 + $0x3d8] sm:$0xff] %v2736
        %2769 = vst [vmem:[#allocation3 + $0x420] sm:$0xff] %v2737
        %2770 = vst [vmem:[#allocation3 + $0x468] sm:$0xff] %v2738
        %v2771 = vld [vmem:[%s2626] sm:$0xf]
        %v2772 = vld [vmem:[%s2626 + $0x4] sm:$0xf]
        %v2773 = vld [vmem:[%s2626 + $0x8] sm:$0x1]
        %v2774 = vld [vmem:[%s2626 + $0xc] sm:$0xf]
        %v2775 = vld [vmem:[%s2626 + $0x10] sm:$0xf]
        %v2776 = vld [vmem:[%s2626 + $0x14] sm:$0x1]
        %v2777 = vld [vmem:[%s2626 + $0x18] sm:$0xf]
        %v2778 = vld [vmem:[%s2626 + $0x1c] sm:$0xf]
        %v2779 = vld [vmem:[%s2626 + $0x20] sm:$0x1]
        %v2780 = vld [vmem:[%s2626 + $0x24] sm:$0xf]
        %v2781 = vld [vmem:[%s2626 + $0x28] sm:$0xf]
        %v2782 = vld [vmem:[%s2626 + $0x2c] sm:$0x1]
        %v2783 = vld [vmem:[%s2626 + $0x30] sm:$0xf]
        %v2784 = vld [vmem:[%s2626 + $0x34] sm:$0xf]
        %v2785 = vld [vmem:[%s2626 + $0x38] sm:$0x1]
        %v2786 = vld [vmem:[%s2626 + $0x3c] sm:$0xf]
        %v2787 = vld [vmem:[%s2626 + $0x40] sm:$0xf]
        %v2788 = vld [vmem:[%s2626 + $0x44] sm:$0x1]
        %v2789 = vld [vmem:[%s2626 + $0x48] sm:$0xf]
        %v2790 = vld [vmem:[%s2626 + $0x4c] sm:$0xf]
        %v2791 = vld [vmem:[%s2626 + $0x50] sm:$0x1]
        %v2792 = vld [vmem:[%s2626 + $0x54] sm:$0xf]
        %v2793 = vld [vmem:[%s2626 + $0x58] sm:$0xf]
        %v2794 = vld [vmem:[%s2626 + $0x5c] sm:$0x1]
        %v2795 = vld [vmem:[%s2626 + $0x60] sm:$0xf]
        %v2796 = vld [vmem:[%s2626 + $0x64] sm:$0xf]
        %v2797 = vld [vmem:[%s2626 + $0x68] sm:$0x1]
        %v2798 = vld [vmem:[%s2626 + $0x6c] sm:$0xf]
        %v2799 = vld [vmem:[%s2626 + $0x70] sm:$0xf]
        %v2800 = vld [vmem:[%s2626 + $0x74] sm:$0x1]
        %v2801 = vld [vmem:[%s2626 + $0x78] sm:$0xf]
        %v2802 = vld [vmem:[%s2626 + $0x7c] sm:$0xf]
        %v2803 = vld [vmem:[%s2626 + $0x80] sm:$0x1]
        %v2804 = vld [vmem:[%s2626 + $0x84] sm:$0xf]
        %v2805 = vld [vmem:[%s2626 + $0x88] sm:$0xf]
        %v2806 = vld [vmem:[%s2626 + $0x8c] sm:$0x1]
        %v2807 = vld [vmem:[%s2626 + $0x90] sm:$0xf]
        %v2808 = vld [vmem:[%s2626 + $0x94] sm:$0xf]
        %v2809 = vld [vmem:[%s2626 + $0x98] sm:$0x1]
        %v2810 = vld [vmem:[%s2626 + $0x9c] sm:$0xf]
        %v2811 = vld [vmem:[%s2626 + $0xa0] sm:$0xf]
        %v2812 = vld [vmem:[%s2626 + $0xa4] sm:$0x1]
        %v2813 = vld [vmem:[%s2626 + $0xa8] sm:$0xf]
        %v2814 = vld [vmem:[%s2626 + $0xac] sm:$0xf]
        %v2815 = vld [vmem:[%s2626 + $0xb0] sm:$0x1]
        %v2816 = vld [vmem:[%s2626 + $0xb4] sm:$0xf]
        %v2817 = vld [vmem:[%s2626 + $0xb8] sm:$0xf]
        %v2818 = vld [vmem:[%s2626 + $0xbc] sm:$0x1]
        %v2820 = vshrl.u32 %v2771, 16
        %v2822 = vrot.slane %v2820, 4
        %v2823 = vshll.u32 %v2771, 16
        %v2825 = vrot.slane %v2823, 5
        %v2826 = vor.u32 %v2822, %v2825
        %v2827 = vrot.slane %v2826, 4
        %v2829 = vshll.u32 %v2772, 16
        %v2831 = vrot.slane %v2829, 5
        %v2832 = vsel %vm926, %v2827, %v2831
        %v2833 = vshrl.u32 %v2772, 16
        %v2835 = vrot.slane %v2833, 4
        %v2836 = vor.u32 %v2835, %v2831
        %v2837 = vrot.slane %v2836, 4
        %v2839 = vshll.u32 %v2773, 16
        %v2841 = vrot.slane %v2839, 5
        %v2842 = vsel %vm926, %v2837, %v2841
        %v2844 = vshrl.u32 %v2774, 16
        %v2846 = vrot.slane %v2844, 4
        %v2847 = vshll.u32 %v2774, 16
        %v2849 = vrot.slane %v2847, 5
        %v2850 = vor.u32 %v2846, %v2849
        %v2851 = vrot.slane %v2850, 4
        %v2853 = vshll.u32 %v2775, 16
        %v2855 = vrot.slane %v2853, 5
        %v2856 = vsel %vm926, %v2851, %v2855
        %v2857 = vshrl.u32 %v2775, 16
        %v2859 = vrot.slane %v2857, 4
        %v2860 = vor.u32 %v2859, %v2855
        %v2861 = vrot.slane %v2860, 4
        %v2863 = vshll.u32 %v2776, 16
        %v2865 = vrot.slane %v2863, 5
        %v2866 = vsel %vm926, %v2861, %v2865
        %v2868 = vshrl.u32 %v2777, 16
        %v2870 = vrot.slane %v2868, 4
        %v2871 = vshll.u32 %v2777, 16
        %v2873 = vrot.slane %v2871, 5
        %v2874 = vor.u32 %v2870, %v2873
        %v2875 = vrot.slane %v2874, 4
        %v2877 = vshll.u32 %v2778, 16
        %v2879 = vrot.slane %v2877, 5
        %v2880 = vsel %vm926, %v2875, %v2879
        %v2881 = vshrl.u32 %v2778, 16
        %v2883 = vrot.slane %v2881, 4
        %v2884 = vor.u32 %v2883, %v2879
        %v2885 = vrot.slane %v2884, 4
        %v2887 = vshll.u32 %v2779, 16
        %v2889 = vrot.slane %v2887, 5
        %v2890 = vsel %vm926, %v2885, %v2889
        %v2892 = vshrl.u32 %v2780, 16
        %v2894 = vrot.slane %v2892, 4
        %v2895 = vshll.u32 %v2780, 16
        %v2897 = vrot.slane %v2895, 5
        %v2898 = vor.u32 %v2894, %v2897
        %v2899 = vrot.slane %v2898, 4
        %v2901 = vshll.u32 %v2781, 16
        %v2903 = vrot.slane %v2901, 5
        %v2904 = vsel %vm926, %v2899, %v2903
        %v2905 = vshrl.u32 %v2781, 16
        %v2907 = vrot.slane %v2905, 4
        %v2908 = vor.u32 %v2907, %v2903
        %v2909 = vrot.slane %v2908, 4
        %v2911 = vshll.u32 %v2782, 16
        %v2913 = vrot.slane %v2911, 5
        %v2914 = vsel %vm926, %v2909, %v2913
        %v2916 = vshrl.u32 %v2783, 16
        %v2918 = vrot.slane %v2916, 4
        %v2919 = vshll.u32 %v2783, 16
        %v2921 = vrot.slane %v2919, 5
        %v2922 = vor.u32 %v2918, %v2921
        %v2923 = vrot.slane %v2922, 4
        %v2925 = vshll.u32 %v2784, 16
        %v2927 = vrot.slane %v2925, 5
        %v2928 = vsel %vm926, %v2923, %v2927
        %v2929 = vshrl.u32 %v2784, 16
        %v2931 = vrot.slane %v2929, 4
        %v2932 = vor.u32 %v2931, %v2927
        %v2933 = vrot.slane %v2932, 4
        %v2935 = vshll.u32 %v2785, 16
        %v2937 = vrot.slane %v2935, 5
        %v2938 = vsel %vm926, %v2933, %v2937
        %v2940 = vshrl.u32 %v2786, 16
        %v2942 = vrot.slane %v2940, 4
        %v2943 = vshll.u32 %v2786, 16
        %v2945 = vrot.slane %v2943, 5
        %v2946 = vor.u32 %v2942, %v2945
        %v2947 = vrot.slane %v2946, 4
        %v2949 = vshll.u32 %v2787, 16
        %v2951 = vrot.slane %v2949, 5
        %v2952 = vsel %vm926, %v2947, %v2951
        %v2953 = vshrl.u32 %v2787, 16
        %v2955 = vrot.slane %v2953, 4
        %v2956 = vor.u32 %v2955, %v2951
        %v2957 = vrot.slane %v2956, 4
        %v2959 = vshll.u32 %v2788, 16
        %v2961 = vrot.slane %v2959, 5
        %v2962 = vsel %vm926, %v2957, %v2961
        %v2964 = vshrl.u32 %v2789, 16
        %v2966 = vrot.slane %v2964, 4
        %v2967 = vshll.u32 %v2789, 16
        %v2969 = vrot.slane %v2967, 5
        %v2970 = vor.u32 %v2966, %v2969
        %v2971 = vrot.slane %v2970, 4
        %v2973 = vshll.u32 %v2790, 16
        %v2975 = vrot.slane %v2973, 5
        %v2976 = vsel %vm926, %v2971, %v2975
        %v2977 = vshrl.u32 %v2790, 16
        %v2979 = vrot.slane %v2977, 4
        %v2980 = vor.u32 %v2979, %v2975
        %v2981 = vrot.slane %v2980, 4
        %v2983 = vshll.u32 %v2791, 16
        %v2985 = vrot.slane %v2983, 5
        %v2986 = vsel %vm926, %v2981, %v2985
        %v2988 = vshrl.u32 %v2792, 16
        %v2990 = vrot.slane %v2988, 4
        %v2991 = vshll.u32 %v2792, 16
        %v2993 = vrot.slane %v2991, 5
        %v2994 = vor.u32 %v2990, %v2993
        %v2995 = vrot.slane %v2994, 4
        %v2997 = vshll.u32 %v2793, 16
        %v2999 = vrot.slane %v2997, 5
        %v3000 = vsel %vm926, %v2995, %v2999
        %v3001 = vshrl.u32 %v2793, 16
        %v3003 = vrot.slane %v3001, 4
        %v3004 = vor.u32 %v3003, %v2999
        %v3005 = vrot.slane %v3004, 4
        %v3007 = vshll.u32 %v2794, 16
        %v3009 = vrot.slane %v3007, 5
        %v3010 = vsel %vm926, %v3005, %v3009
        %v3012 = vshrl.u32 %v2795, 16
        %v3014 = vrot.slane %v3012, 4
        %v3015 = vshll.u32 %v2795, 16
        %v3017 = vrot.slane %v3015, 5
        %v3018 = vor.u32 %v3014, %v3017
        %v3019 = vrot.slane %v3018, 4
        %v3021 = vshll.u32 %v2796, 16
        %v3023 = vrot.slane %v3021, 5
        %v3024 = vsel %vm926, %v3019, %v3023
        %v3025 = vshrl.u32 %v2796, 16
        %v3027 = vrot.slane %v3025, 4
        %v3028 = vor.u32 %v3027, %v3023
        %v3029 = vrot.slane %v3028, 4
        %v3031 = vshll.u32 %v2797, 16
        %v3033 = vrot.slane %v3031, 5
        %v3034 = vsel %vm926, %v3029, %v3033
        %v3036 = vshrl.u32 %v2798, 16
        %v3038 = vrot.slane %v3036, 4
        %v3039 = vshll.u32 %v2798, 16
        %v3041 = vrot.slane %v3039, 5
        %v3042 = vor.u32 %v3038, %v3041
        %v3043 = vrot.slane %v3042, 4
        %v3045 = vshll.u32 %v2799, 16
        %v3047 = vrot.slane %v3045, 5
        %v3048 = vsel %vm926, %v3043, %v3047
        %v3049 = vshrl.u32 %v2799, 16
        %v3051 = vrot.slane %v3049, 4
        %v3052 = vor.u32 %v3051, %v3047
        %v3053 = vrot.slane %v3052, 4
        %v3055 = vshll.u32 %v2800, 16
        %v3057 = vrot.slane %v3055, 5
        %v3058 = vsel %vm926, %v3053, %v3057
        %v3060 = vshrl.u32 %v2801, 16
        %v3062 = vrot.slane %v3060, 4
        %v3063 = vshll.u32 %v2801, 16
        %v3065 = vrot.slane %v3063, 5
        %v3066 = vor.u32 %v3062, %v3065
        %v3067 = vrot.slane %v3066, 4
        %v3069 = vshll.u32 %v2802, 16
        %v3071 = vrot.slane %v3069, 5
        %v3072 = vsel %vm926, %v3067, %v3071
        %v3073 = vshrl.u32 %v2802, 16
        %v3075 = vrot.slane %v3073, 4
        %v3076 = vor.u32 %v3075, %v3071
        %v3077 = vrot.slane %v3076, 4
        %v3079 = vshll.u32 %v2803, 16
        %v3081 = vrot.slane %v3079, 5
        %v3082 = vsel %vm926, %v3077, %v3081
        %v3084 = vshrl.u32 %v2804, 16
        %v3086 = vrot.slane %v3084, 4
        %v3087 = vshll.u32 %v2804, 16
        %v3089 = vrot.slane %v3087, 5
        %v3090 = vor.u32 %v3086, %v3089
        %v3091 = vrot.slane %v3090, 4
        %v3093 = vshll.u32 %v2805, 16
        %v3095 = vrot.slane %v3093, 5
        %v3096 = vsel %vm926, %v3091, %v3095
        %v3097 = vshrl.u32 %v2805, 16
        %v3099 = vrot.slane %v3097, 4
        %v3100 = vor.u32 %v3099, %v3095
        %v3101 = vrot.slane %v3100, 4
        %v3103 = vshll.u32 %v2806, 16
        %v3105 = vrot.slane %v3103, 5
        %v3106 = vsel %vm926, %v3101, %v3105
        %v3108 = vshrl.u32 %v2807, 16
        %v3110 = vrot.slane %v3108, 4
        %v3111 = vshll.u32 %v2807, 16
        %v3113 = vrot.slane %v3111, 5
        %v3114 = vor.u32 %v3110, %v3113
        %v3115 = vrot.slane %v3114, 4
        %v3117 = vshll.u32 %v2808, 16
        %v3119 = vrot.slane %v3117, 5
        %v3120 = vsel %vm926, %v3115, %v3119
        %v3121 = vshrl.u32 %v2808, 16
        %v3123 = vrot.slane %v3121, 4
        %v3124 = vor.u32 %v3123, %v3119
        %v3125 = vrot.slane %v3124, 4
        %v3127 = vshll.u32 %v2809, 16
        %v3129 = vrot.slane %v3127, 5
        %v3130 = vsel %vm926, %v3125, %v3129
        %v3132 = vshrl.u32 %v2810, 16
        %v3134 = vrot.slane %v3132, 4
        %v3135 = vshll.u32 %v2810, 16
        %v3137 = vrot.slane %v3135, 5
        %v3138 = vor.u32 %v3134, %v3137
        %v3139 = vrot.slane %v3138, 4
        %v3141 = vshll.u32 %v2811, 16
        %v3143 = vrot.slane %v3141, 5
        %v3144 = vsel %vm926, %v3139, %v3143
        %v3145 = vshrl.u32 %v2811, 16
        %v3147 = vrot.slane %v3145, 4
        %v3148 = vor.u32 %v3147, %v3143
        %v3149 = vrot.slane %v3148, 4
        %v3151 = vshll.u32 %v2812, 16
        %v3153 = vrot.slane %v3151, 5
        %v3154 = vsel %vm926, %v3149, %v3153
        %v3156 = vshrl.u32 %v2813, 16
        %v3158 = vrot.slane %v3156, 4
        %v3159 = vshll.u32 %v2813, 16
        %v3161 = vrot.slane %v3159, 5
        %v3162 = vor.u32 %v3158, %v3161
        %v3163 = vrot.slane %v3162, 4
        %v3165 = vshll.u32 %v2814, 16
        %v3167 = vrot.slane %v3165, 5
        %v3168 = vsel %vm926, %v3163, %v3167
        %v3169 = vshrl.u32 %v2814, 16
        %v3171 = vrot.slane %v3169, 4
        %v3172 = vor.u32 %v3171, %v3167
        %v3173 = vrot.slane %v3172, 4
        %v3175 = vshll.u32 %v2815, 16
        %v3177 = vrot.slane %v3175, 5
        %v3178 = vsel %vm926, %v3173, %v3177
        %v3180 = vshrl.u32 %v2816, 16
        %v3182 = vrot.slane %v3180, 4
        %v3183 = vshll.u32 %v2816, 16
        %v3185 = vrot.slane %v3183, 5
        %v3186 = vor.u32 %v3182, %v3185
        %v3187 = vrot.slane %v3186, 4
        %v3189 = vshll.u32 %v2817, 16
        %v3191 = vrot.slane %v3189, 5
        %v3192 = vsel %vm926, %v3187, %v3191
        %v3193 = vshrl.u32 %v2817, 16
        %v3195 = vrot.slane %v3193, 4
        %v3196 = vor.u32 %v3195, %v3191
        %v3197 = vrot.slane %v3196, 4
        %v3199 = vshll.u32 %v2818, 16
        %v3201 = vrot.slane %v3199, 5
        %v3202 = vsel %vm926, %v3197, %v3201
        %v3203 = vunpack.c.l.b16 %v2832
        %v3204 = vunpack.c.l.b16 %v2842
        %v3205 = vunpack.c.l.b16 %v2856
        %v3206 = vunpack.c.l.b16 %v2866
        %v3207 = vunpack.c.l.b16 %v2880
        %v3208 = vunpack.c.l.b16 %v2890
        %v3209 = vunpack.c.l.b16 %v2904
        %v3210 = vunpack.c.l.b16 %v2914
        %v3211 = vunpack.c.l.b16 %v2928
        %v3212 = vunpack.c.l.b16 %v2938
        %v3213 = vunpack.c.l.b16 %v2952
        %v3214 = vunpack.c.l.b16 %v2962
        %v3215 = vunpack.c.l.b16 %v2976
        %v3216 = vunpack.c.l.b16 %v2986
        %v3217 = vunpack.c.l.b16 %v3000
        %v3218 = vunpack.c.l.b16 %v3010
        %v3219 = vunpack.c.l.b16 %v3024
        %v3220 = vunpack.c.l.b16 %v3034
        %v3221 = vunpack.c.l.b16 %v3048
        %v3222 = vunpack.c.l.b16 %v3058
        %v3223 = vunpack.c.l.b16 %v3072
        %v3224 = vunpack.c.l.b16 %v3082
        %v3225 = vunpack.c.l.b16 %v3096
        %v3226 = vunpack.c.l.b16 %v3106
        %v3227 = vunpack.c.l.b16 %v3120
        %v3228 = vunpack.c.l.b16 %v3130
        %v3229 = vunpack.c.l.b16 %v3144
        %v3230 = vunpack.c.l.b16 %v3154
        %v3231 = vunpack.c.l.b16 %v3168
        %v3232 = vunpack.c.l.b16 %v3178
        %v3233 = vunpack.c.l.b16 %v3192
        %v3234 = vunpack.c.l.b16 %v3202
        %v3235 = vpack.c.b16 %v3204, %v3203
        %v3236 = vpack.c.b16 %v3206, %v3205
        %v3237 = vpack.c.b16 %v3208, %v3207
        %v3238 = vpack.c.b16 %v3210, %v3209
        %v3239 = vpack.c.b16 %v3212, %v3211
        %v3240 = vpack.c.b16 %v3214, %v3213
        %v3241 = vpack.c.b16 %v3216, %v3215
        %v3242 = vpack.c.b16 %v3218, %v3217
        %v3243 = vpack.c.b16 %v3220, %v3219
        %v3244 = vpack.c.b16 %v3222, %v3221
        %v3245 = vpack.c.b16 %v3224, %v3223
        %v3246 = vpack.c.b16 %v3226, %v3225
        %v3247 = vpack.c.b16 %v3228, %v3227
        %v3248 = vpack.c.b16 %v3230, %v3229
        %v3249 = vpack.c.b16 %v3232, %v3231
        %v3250 = vpack.c.b16 %v3234, %v3233
        %3267 = vst [vmem:[#allocation3 + $0x38] sm:$0xff] %v3235
        %3268 = vst [vmem:[#allocation3 + $0x80] sm:$0xff] %v3236
        %3269 = vst [vmem:[#allocation3 + $0xc8] sm:$0xff] %v3237
        %3270 = vst [vmem:[#allocation3 + $0x110] sm:$0xff] %v3238
        %3271 = vst [vmem:[#allocation3 + $0x158] sm:$0xff] %v3239
        %3272 = vst [vmem:[#allocation3 + $0x1a0] sm:$0xff] %v3240
        %3273 = vst [vmem:[#allocation3 + $0x1e8] sm:$0xff] %v3241
        %3274 = vst [vmem:[#allocation3 + $0x230] sm:$0xff] %v3242
        %3275 = vst [vmem:[#allocation3 + $0x278] sm:$0xff] %v3243
        %3276 = vst [vmem:[#allocation3 + $0x2c0] sm:$0xff] %v3244
        %3277 = vst [vmem:[#allocation3 + $0x308] sm:$0xff] %v3245
        %3278 = vst [vmem:[#allocation3 + $0x350] sm:$0xff] %v3246
        %3279 = vst [vmem:[#allocation3 + $0x398] sm:$0xff] %v3247
        %3280 = vst [vmem:[#allocation3 + $0x3e0] sm:$0xff] %v3248
        %3281 = vst [vmem:[#allocation3 + $0x428] sm:$0xff] %v3249
        %3282 = vst [vmem:[#allocation3 + $0x470] sm:$0xff] %v3250
        %v3283 = vld [vmem:[%s2626] sm:$0xe]
        %v3284 = vld [vmem:[%s2626 + $0x4] sm:$0xf]
        %v3285 = vld [vmem:[%s2626 + $0x8] sm:$0x1]
        %v3286 = vld [vmem:[%s2626 + $0xc] sm:$0xe]
        %v3287 = vld [vmem:[%s2626 + $0x10] sm:$0xf]
        %v3288 = vld [vmem:[%s2626 + $0x14] sm:$0x1]
        %v3289 = vld [vmem:[%s2626 + $0x18] sm:$0xe]
        %v3290 = vld [vmem:[%s2626 + $0x1c] sm:$0xf]
        %v3291 = vld [vmem:[%s2626 + $0x20] sm:$0x1]
        %v3292 = vld [vmem:[%s2626 + $0x24] sm:$0xe]
        %v3293 = vld [vmem:[%s2626 + $0x28] sm:$0xf]
        %v3294 = vld [vmem:[%s2626 + $0x2c] sm:$0x1]
        %v3295 = vld [vmem:[%s2626 + $0x30] sm:$0xe]
        %v3296 = vld [vmem:[%s2626 + $0x34] sm:$0xf]
        %v3297 = vld [vmem:[%s2626 + $0x38] sm:$0x1]
        %v3298 = vld [vmem:[%s2626 + $0x3c] sm:$0xe]
        %v3299 = vld [vmem:[%s2626 + $0x40] sm:$0xf]
        %v3300 = vld [vmem:[%s2626 + $0x44] sm:$0x1]
        %v3301 = vld [vmem:[%s2626 + $0x48] sm:$0xe]
        %v3302 = vld [vmem:[%s2626 + $0x4c] sm:$0xf]
        %v3303 = vld [vmem:[%s2626 + $0x50] sm:$0x1]
        %v3304 = vld [vmem:[%s2626 + $0x54] sm:$0xe]
        %v3305 = vld [vmem:[%s2626 + $0x58] sm:$0xf]
        %v3306 = vld [vmem:[%s2626 + $0x5c] sm:$0x1]
        %v3307 = vld [vmem:[%s2626 + $0x60] sm:$0xe]
        %v3308 = vld [vmem:[%s2626 + $0x64] sm:$0xf]
        %v3309 = vld [vmem:[%s2626 + $0x68] sm:$0x1]
        %v3310 = vld [vmem:[%s2626 + $0x6c] sm:$0xe]
        %v3311 = vld [vmem:[%s2626 + $0x70] sm:$0xf]
        %v3312 = vld [vmem:[%s2626 + $0x74] sm:$0x1]
        %v3313 = vld [vmem:[%s2626 + $0x78] sm:$0xe]
        %v3314 = vld [vmem:[%s2626 + $0x7c] sm:$0xf]
        %v3315 = vld [vmem:[%s2626 + $0x80] sm:$0x1]
        %v3316 = vld [vmem:[%s2626 + $0x84] sm:$0xe]
        %v3317 = vld [vmem:[%s2626 + $0x88] sm:$0xf]
        %v3318 = vld [vmem:[%s2626 + $0x8c] sm:$0x1]
        %v3319 = vld [vmem:[%s2626 + $0x90] sm:$0xe]
        %v3320 = vld [vmem:[%s2626 + $0x94] sm:$0xf]
        %v3321 = vld [vmem:[%s2626 + $0x98] sm:$0x1]
        %v3322 = vld [vmem:[%s2626 + $0x9c] sm:$0xe]
        %v3323 = vld [vmem:[%s2626 + $0xa0] sm:$0xf]
        %v3324 = vld [vmem:[%s2626 + $0xa4] sm:$0x1]
        %v3325 = vld [vmem:[%s2626 + $0xa8] sm:$0xe]
        %v3326 = vld [vmem:[%s2626 + $0xac] sm:$0xf]
        %v3327 = vld [vmem:[%s2626 + $0xb0] sm:$0x1]
        %v3328 = vld [vmem:[%s2626 + $0xb4] sm:$0xe]
        %v3329 = vld [vmem:[%s2626 + $0xb8] sm:$0xf]
        %v3330 = vld [vmem:[%s2626 + $0xbc] sm:$0x1]
        %v3379 = vrot.slane %v3283, 5
        %v3380 = vrot.slane %v3379, 4
        %v3381 = vrot.slane %v3284, 5
        %v3382 = vsel %vm1489, %v3380, %v3381
        %v3383 = vrot.slane %v3381, 4
        %v3384 = vrot.slane %v3285, 5
        %v3385 = vsel %vm1489, %v3383, %v3384
        %v3386 = vrot.slane %v3286, 5
        %v3387 = vrot.slane %v3386, 4
        %v3388 = vrot.slane %v3287, 5
        %v3389 = vsel %vm1489, %v3387, %v3388
        %v3390 = vrot.slane %v3388, 4
        %v3391 = vrot.slane %v3288, 5
        %v3392 = vsel %vm1489, %v3390, %v3391
        %v3393 = vrot.slane %v3289, 5
        %v3394 = vrot.slane %v3393, 4
        %v3395 = vrot.slane %v3290, 5
        %v3396 = vsel %vm1489, %v3394, %v3395
        %v3397 = vrot.slane %v3395, 4
        %v3398 = vrot.slane %v3291, 5
        %v3399 = vsel %vm1489, %v3397, %v3398
        %v3400 = vrot.slane %v3292, 5
        %v3401 = vrot.slane %v3400, 4
        %v3402 = vrot.slane %v3293, 5
        %v3403 = vsel %vm1489, %v3401, %v3402
        %v3404 = vrot.slane %v3402, 4
        %v3405 = vrot.slane %v3294, 5
        %v3406 = vsel %vm1489, %v3404, %v3405
        %v3407 = vrot.slane %v3295, 5
        %v3408 = vrot.slane %v3407, 4
        %v3409 = vrot.slane %v3296, 5
        %v3410 = vsel %vm1489, %v3408, %v3409
        %v3411 = vrot.slane %v3409, 4
        %v3412 = vrot.slane %v3297, 5
        %v3413 = vsel %vm1489, %v3411, %v3412
        %v3414 = vrot.slane %v3298, 5
        %v3415 = vrot.slane %v3414, 4
        %v3416 = vrot.slane %v3299, 5
        %v3417 = vsel %vm1489, %v3415, %v3416
        %v3418 = vrot.slane %v3416, 4
        %v3419 = vrot.slane %v3300, 5
        %v3420 = vsel %vm1489, %v3418, %v3419
        %v3421 = vrot.slane %v3301, 5
        %v3422 = vrot.slane %v3421, 4
        %v3423 = vrot.slane %v3302, 5
        %v3424 = vsel %vm1489, %v3422, %v3423
        %v3425 = vrot.slane %v3423, 4
        %v3426 = vrot.slane %v3303, 5
        %v3427 = vsel %vm1489, %v3425, %v3426
        %v3428 = vrot.slane %v3304, 5
        %v3429 = vrot.slane %v3428, 4
        %v3430 = vrot.slane %v3305, 5
        %v3431 = vsel %vm1489, %v3429, %v3430
        %v3432 = vrot.slane %v3430, 4
        %v3433 = vrot.slane %v3306, 5
        %v3434 = vsel %vm1489, %v3432, %v3433
        %v3435 = vrot.slane %v3307, 5
        %v3436 = vrot.slane %v3435, 4
        %v3437 = vrot.slane %v3308, 5
        %v3438 = vsel %vm1489, %v3436, %v3437
        %v3439 = vrot.slane %v3437, 4
        %v3440 = vrot.slane %v3309, 5
        %v3441 = vsel %vm1489, %v3439, %v3440
        %v3442 = vrot.slane %v3310, 5
        %v3443 = vrot.slane %v3442, 4
        %v3444 = vrot.slane %v3311, 5
        %v3445 = vsel %vm1489, %v3443, %v3444
        %v3446 = vrot.slane %v3444, 4
        %v3447 = vrot.slane %v3312, 5
        %v3448 = vsel %vm1489, %v3446, %v3447
        %v3449 = vrot.slane %v3313, 5
        %v3450 = vrot.slane %v3449, 4
        %v3451 = vrot.slane %v3314, 5
        %v3452 = vsel %vm1489, %v3450, %v3451
        %v3453 = vrot.slane %v3451, 4
        %v3454 = vrot.slane %v3315, 5
        %v3455 = vsel %vm1489, %v3453, %v3454
        %v3456 = vrot.slane %v3316, 5
        %v3457 = vrot.slane %v3456, 4
        %v3458 = vrot.slane %v3317, 5
        %v3459 = vsel %vm1489, %v3457, %v3458
        %v3460 = vrot.slane %v3458, 4
        %v3461 = vrot.slane %v3318, 5
        %v3462 = vsel %vm1489, %v3460, %v3461
        %v3463 = vrot.slane %v3319, 5
        %v3464 = vrot.slane %v3463, 4
        %v3465 = vrot.slane %v3320, 5
        %v3466 = vsel %vm1489, %v3464, %v3465
        %v3467 = vrot.slane %v3465, 4
        %v3468 = vrot.slane %v3321, 5
        %v3469 = vsel %vm1489, %v3467, %v3468
        %v3470 = vrot.slane %v3322, 5
        %v3471 = vrot.slane %v3470, 4
        %v3472 = vrot.slane %v3323, 5
        %v3473 = vsel %vm1489, %v3471, %v3472
        %v3474 = vrot.slane %v3472, 4
        %v3475 = vrot.slane %v3324, 5
        %v3476 = vsel %vm1489, %v3474, %v3475
        %v3477 = vrot.slane %v3325, 5
        %v3478 = vrot.slane %v3477, 4
        %v3479 = vrot.slane %v3326, 5
        %v3480 = vsel %vm1489, %v3478, %v3479
        %v3481 = vrot.slane %v3479, 4
        %v3482 = vrot.slane %v3327, 5
        %v3483 = vsel %vm1489, %v3481, %v3482
        %v3484 = vrot.slane %v3328, 5
        %v3485 = vrot.slane %v3484, 4
        %v3486 = vrot.slane %v3329, 5
        %v3487 = vsel %vm1489, %v3485, %v3486
        %v3488 = vrot.slane %v3486, 4
        %v3489 = vrot.slane %v3330, 5
        %v3490 = vsel %vm1489, %v3488, %v3489
        %v3491 = vunpack.c.l.b16 %v3382
        %v3492 = vunpack.c.l.b16 %v3385
        %v3493 = vunpack.c.l.b16 %v3389
        %v3494 = vunpack.c.l.b16 %v3392
        %v3495 = vunpack.c.l.b16 %v3396
        %v3496 = vunpack.c.l.b16 %v3399
        %v3497 = vunpack.c.l.b16 %v3403
        %v3498 = vunpack.c.l.b16 %v3406
        %v3499 = vunpack.c.l.b16 %v3410
        %v3500 = vunpack.c.l.b16 %v3413
        %v3501 = vunpack.c.l.b16 %v3417
        %v3502 = vunpack.c.l.b16 %v3420
        %v3503 = vunpack.c.l.b16 %v3424
        %v3504 = vunpack.c.l.b16 %v3427
        %v3505 = vunpack.c.l.b16 %v3431
        %v3506 = vunpack.c.l.b16 %v3434
        %v3507 = vunpack.c.l.b16 %v3438
        %v3508 = vunpack.c.l.b16 %v3441
        %v3509 = vunpack.c.l.b16 %v3445
        %v3510 = vunpack.c.l.b16 %v3448
        %v3511 = vunpack.c.l.b16 %v3452
        %v3512 = vunpack.c.l.b16 %v3455
        %v3513 = vunpack.c.l.b16 %v3459
        %v3514 = vunpack.c.l.b16 %v3462
        %v3515 = vunpack.c.l.b16 %v3466
        %v3516 = vunpack.c.l.b16 %v3469
        %v3517 = vunpack.c.l.b16 %v3473
        %v3518 = vunpack.c.l.b16 %v3476
        %v3519 = vunpack.c.l.b16 %v3480
        %v3520 = vunpack.c.l.b16 %v3483
        %v3521 = vunpack.c.l.b16 %v3487
        %v3522 = vunpack.c.l.b16 %v3490
        %v3523 = vpack.c.b16 %v3492, %v3491
        %v3524 = vpack.c.b16 %v3494, %v3493
        %v3525 = vpack.c.b16 %v3496, %v3495
        %v3526 = vpack.c.b16 %v3498, %v3497
        %v3527 = vpack.c.b16 %v3500, %v3499
        %v3528 = vpack.c.b16 %v3502, %v3501
        %v3529 = vpack.c.b16 %v3504, %v3503
        %v3530 = vpack.c.b16 %v3506, %v3505
        %v3531 = vpack.c.b16 %v3508, %v3507
        %v3532 = vpack.c.b16 %v3510, %v3509
        %v3533 = vpack.c.b16 %v3512, %v3511
        %v3534 = vpack.c.b16 %v3514, %v3513
        %v3535 = vpack.c.b16 %v3516, %v3515
        %v3536 = vpack.c.b16 %v3518, %v3517
        %v3537 = vpack.c.b16 %v3520, %v3519
        %v3538 = vpack.c.b16 %v3522, %v3521
        %3555 = vst [vmem:[#allocation3 + $0x40] sm:$0xff] %v3523
        %3556 = vst [vmem:[#allocation3 + $0x88] sm:$0xff] %v3524
        %3557 = vst [vmem:[#allocation3 + $0xd0] sm:$0xff] %v3525
        %3558 = vst [vmem:[#allocation3 + $0x118] sm:$0xff] %v3526
        %3559 = vst [vmem:[#allocation3 + $0x160] sm:$0xff] %v3527
        %3560 = vst [vmem:[#allocation3 + $0x1a8] sm:$0xff] %v3528
        %3561 = vst [vmem:[#allocation3 + $0x1f0] sm:$0xff] %v3529
        %3562 = vst [vmem:[#allocation3 + $0x238] sm:$0xff] %v3530
        %3563 = vst [vmem:[#allocation3 + $0x280] sm:$0xff] %v3531
        %3564 = vst [vmem:[#allocation3 + $0x2c8] sm:$0xff] %v3532
        %3565 = vst [vmem:[#allocation3 + $0x310] sm:$0xff] %v3533
        %3566 = vst [vmem:[#allocation3 + $0x358] sm:$0xff] %v3534
        %3567 = vst [vmem:[#allocation3 + $0x3a0] sm:$0xff] %v3535
        %3568 = vst [vmem:[#allocation3 + $0x3e8] sm:$0xff] %v3536
        %3569 = vst [vmem:[#allocation3 + $0x430] sm:$0xff] %v3537
        %3570 = vst [vmem:[#allocation3 + $0x478] sm:$0xff] %v3538
        %v3571 = vld [vmem:[#allocation3] sm:$0xff]
        %v3572 = vld [vmem:[#allocation3 + $0x8] sm:$0xff]
        %v3573 = vld [vmem:[#allocation3 + $0x10] sm:$0xff]
        %v3574 = vld [vmem:[#allocation3 + $0x18] sm:$0xff]
        %v3575 = vld [vmem:[#allocation3 + $0x20] sm:$0xff]
        %v3576 = vld [vmem:[#allocation3 + $0x28] sm:$0xff]
        %v3577 = vld [vmem:[#allocation3 + $0x30] sm:$0xff]
        %v3578 = vld [vmem:[#allocation3 + $0x38] sm:$0xff]
        %v3579 = vld [vmem:[#allocation3 + $0x40] sm:$0xff]
        %v3580 = vld [vmem:[#allocation3 + $0x48] sm:$0xff]
        %v3581 = vld [vmem:[#allocation3 + $0x50] sm:$0xff]
        %v3582 = vld [vmem:[#allocation3 + $0x58] sm:$0xff]
        %v3583 = vld [vmem:[#allocation3 + $0x60] sm:$0xff]
        %v3584 = vld [vmem:[#allocation3 + $0x68] sm:$0xff]
        %v3585 = vld [vmem:[#allocation3 + $0x70] sm:$0xff]
        %v3586 = vld [vmem:[#allocation3 + $0x78] sm:$0xff]
        %v3587 = vld [vmem:[#allocation3 + $0x80] sm:$0xff]
        %v3588 = vld [vmem:[#allocation3 + $0x88] sm:$0xff]
        %v3589 = vld [vmem:[#allocation3 + $0x90] sm:$0xff]
        %v3590 = vld [vmem:[#allocation3 + $0x98] sm:$0xff]
        %v3591 = vld [vmem:[#allocation3 + $0xa0] sm:$0xff]
        %v3592 = vld [vmem:[#allocation3 + $0xa8] sm:$0xff]
        %v3593 = vld [vmem:[#allocation3 + $0xb0] sm:$0xff]
        %v3594 = vld [vmem:[#allocation3 + $0xb8] sm:$0xff]
        %v3595 = vld [vmem:[#allocation3 + $0xc0] sm:$0xff]
        %v3596 = vld [vmem:[#allocation3 + $0xc8] sm:$0xff]
        %v3597 = vld [vmem:[#allocation3 + $0xd0] sm:$0xff]
        %v3598 = vld [vmem:[#allocation3 + $0xd8] sm:$0xff]
        %v3599 = vld [vmem:[#allocation3 + $0xe0] sm:$0xff]
        %v3600 = vld [vmem:[#allocation3 + $0xe8] sm:$0xff]
        %v3601 = vld [vmem:[#allocation3 + $0xf0] sm:$0xff]
        %v3602 = vld [vmem:[#allocation3 + $0xf8] sm:$0xff]
        %v3603 = vld [vmem:[#allocation3 + $0x100] sm:$0xff]
        %v3604 = vld [vmem:[#allocation3 + $0x108] sm:$0xff]
        %v3605 = vld [vmem:[#allocation3 + $0x110] sm:$0xff]
        %v3606 = vld [vmem:[#allocation3 + $0x118] sm:$0xff]
        %v3607 = vld [vmem:[#allocation3 + $0x120] sm:$0xff]
        %v3608 = vld [vmem:[#allocation3 + $0x128] sm:$0xff]
        %v3609 = vld [vmem:[#allocation3 + $0x130] sm:$0xff]
        %v3610 = vld [vmem:[#allocation3 + $0x138] sm:$0xff]
        %v3611 = vld [vmem:[#allocation3 + $0x140] sm:$0xff]
        %v3612 = vld [vmem:[#allocation3 + $0x148] sm:$0xff]
        %v3613 = vld [vmem:[#allocation3 + $0x150] sm:$0xff]
        %v3614 = vld [vmem:[#allocation3 + $0x158] sm:$0xff]
        %v3615 = vld [vmem:[#allocation3 + $0x160] sm:$0xff]
        %v3616 = vld [vmem:[#allocation3 + $0x168] sm:$0xff]
        %v3617 = vld [vmem:[#allocation3 + $0x170] sm:$0xff]
        %v3618 = vld [vmem:[#allocation3 + $0x178] sm:$0xff]
        %v3619 = vld [vmem:[#allocation3 + $0x180] sm:$0xff]
        %v3620 = vld [vmem:[#allocation3 + $0x188] sm:$0xff]
        %v3621 = vld [vmem:[#allocation3 + $0x190] sm:$0xff]
        %v3622 = vld [vmem:[#allocation3 + $0x198] sm:$0xff]
        %v3623 = vld [vmem:[#allocation3 + $0x1a0] sm:$0xff]
        %v3624 = vld [vmem:[#allocation3 + $0x1a8] sm:$0xff]
        %v3625 = vld [vmem:[#allocation3 + $0x1b0] sm:$0xff]
        %v3626 = vld [vmem:[#allocation3 + $0x1b8] sm:$0xff]
        %v3627 = vld [vmem:[#allocation3 + $0x1c0] sm:$0xff]
        %v3628 = vld [vmem:[#allocation3 + $0x1c8] sm:$0xff]
        %v3629 = vld [vmem:[#allocation3 + $0x1d0] sm:$0xff]
        %v3630 = vld [vmem:[#allocation3 + $0x1d8] sm:$0xff]
        %v3631 = vld [vmem:[#allocation3 + $0x1e0] sm:$0xff]
        %v3632 = vld [vmem:[#allocation3 + $0x1e8] sm:$0xff]
        %v3633 = vld [vmem:[#allocation3 + $0x1f0] sm:$0xff]
        %v3634 = vld [vmem:[#allocation3 + $0x1f8] sm:$0xff]
        %v3635 = vld [vmem:[#allocation3 + $0x200] sm:$0xff]
        %v3636 = vld [vmem:[#allocation3 + $0x208] sm:$0xff]
        %v3637 = vld [vmem:[#allocation3 + $0x210] sm:$0xff]
        %v3638 = vld [vmem:[#allocation3 + $0x218] sm:$0xff]
        %v3639 = vld [vmem:[#allocation3 + $0x220] sm:$0xff]
        %v3640 = vld [vmem:[#allocation3 + $0x228] sm:$0xff]
        %v3641 = vld [vmem:[#allocation3 + $0x230] sm:$0xff]
        %v3642 = vld [vmem:[#allocation3 + $0x238] sm:$0xff]
        %v3643 = vld [vmem:[#allocation3 + $0x240] sm:$0xff]
        %v3644 = vld [vmem:[#allocation3 + $0x248] sm:$0xff]
        %v3645 = vld [vmem:[#allocation3 + $0x250] sm:$0xff]
        %v3646 = vld [vmem:[#allocation3 + $0x258] sm:$0xff]
        %v3647 = vld [vmem:[#allocation3 + $0x260] sm:$0xff]
        %v3648 = vld [vmem:[#allocation3 + $0x268] sm:$0xff]
        %v3649 = vld [vmem:[#allocation3 + $0x270] sm:$0xff]
        %v3650 = vld [vmem:[#allocation3 + $0x278] sm:$0xff]
        %v3651 = vld [vmem:[#allocation3 + $0x280] sm:$0xff]
        %v3652 = vld [vmem:[#allocation3 + $0x288] sm:$0xff]
        %v3653 = vld [vmem:[#allocation3 + $0x290] sm:$0xff]
        %v3654 = vld [vmem:[#allocation3 + $0x298] sm:$0xff]
        %v3655 = vld [vmem:[#allocation3 + $0x2a0] sm:$0xff]
        %v3656 = vld [vmem:[#allocation3 + $0x2a8] sm:$0xff]
        %v3657 = vld [vmem:[#allocation3 + $0x2b0] sm:$0xff]
        %v3658 = vld [vmem:[#allocation3 + $0x2b8] sm:$0xff]
        %v3659 = vld [vmem:[#allocation3 + $0x2c0] sm:$0xff]
        %v3660 = vld [vmem:[#allocation3 + $0x2c8] sm:$0xff]
        %v3661 = vld [vmem:[#allocation3 + $0x2d0] sm:$0xff]
        %v3662 = vld [vmem:[#allocation3 + $0x2d8] sm:$0xff]
        %v3663 = vld [vmem:[#allocation3 + $0x2e0] sm:$0xff]
        %v3664 = vld [vmem:[#allocation3 + $0x2e8] sm:$0xff]
        %v3665 = vld [vmem:[#allocation3 + $0x2f0] sm:$0xff]
        %v3666 = vld [vmem:[#allocation3 + $0x2f8] sm:$0xff]
        %v3667 = vld [vmem:[#allocation3 + $0x300] sm:$0xff]
        %v3668 = vld [vmem:[#allocation3 + $0x308] sm:$0xff]
        %v3669 = vld [vmem:[#allocation3 + $0x310] sm:$0xff]
        %v3670 = vld [vmem:[#allocation3 + $0x318] sm:$0xff]
        %v3671 = vld [vmem:[#allocation3 + $0x320] sm:$0xff]
        %v3672 = vld [vmem:[#allocation3 + $0x328] sm:$0xff]
        %v3673 = vld [vmem:[#allocation3 + $0x330] sm:$0xff]
        %v3674 = vld [vmem:[#allocation3 + $0x338] sm:$0xff]
        %v3675 = vld [vmem:[#allocation3 + $0x340] sm:$0xff]
        %v3676 = vld [vmem:[#allocation3 + $0x348] sm:$0xff]
        %v3677 = vld [vmem:[#allocation3 + $0x350] sm:$0xff]
        %v3678 = vld [vmem:[#allocation3 + $0x358] sm:$0xff]
        %v3679 = vld [vmem:[#allocation3 + $0x360] sm:$0xff]
        %v3680 = vld [vmem:[#allocation3 + $0x368] sm:$0xff]
        %v3681 = vld [vmem:[#allocation3 + $0x370] sm:$0xff]
        %v3682 = vld [vmem:[#allocation3 + $0x378] sm:$0xff]
        %v3683 = vld [vmem:[#allocation3 + $0x380] sm:$0xff]
        %v3684 = vld [vmem:[#allocation3 + $0x388] sm:$0xff]
        %v3685 = vld [vmem:[#allocation3 + $0x390] sm:$0xff]
        %v3686 = vld [vmem:[#allocation3 + $0x398] sm:$0xff]
        %v3687 = vld [vmem:[#allocation3 + $0x3a0] sm:$0xff]
        %v3688 = vld [vmem:[#allocation3 + $0x3a8] sm:$0xff]
        %v3689 = vld [vmem:[#allocation3 + $0x3b0] sm:$0xff]
        %v3690 = vld [vmem:[#allocation3 + $0x3b8] sm:$0xff]
        %v3691 = vld [vmem:[#allocation3 + $0x3c0] sm:$0xff]
        %v3692 = vld [vmem:[#allocation3 + $0x3c8] sm:$0xff]
        %v3693 = vld [vmem:[#allocation3 + $0x3d0] sm:$0xff]
        %v3694 = vld [vmem:[#allocation3 + $0x3d8] sm:$0xff]
        %v3695 = vld [vmem:[#allocation3 + $0x3e0] sm:$0xff]
        %v3696 = vld [vmem:[#allocation3 + $0x3e8] sm:$0xff]
        %v3697 = vld [vmem:[#allocation3 + $0x3f0] sm:$0xff]
        %v3698 = vld [vmem:[#allocation3 + $0x3f8] sm:$0xff]
        %v3699 = vld [vmem:[#allocation3 + $0x400] sm:$0xff]
        %v3700 = vld [vmem:[#allocation3 + $0x408] sm:$0xff]
        %v3701 = vld [vmem:[#allocation3 + $0x410] sm:$0xff]
        %v3702 = vld [vmem:[#allocation3 + $0x418] sm:$0xff]
        %v3703 = vld [vmem:[#allocation3 + $0x420] sm:$0xff]
        %v3704 = vld [vmem:[#allocation3 + $0x428] sm:$0xff]
        %v3705 = vld [vmem:[#allocation3 + $0x430] sm:$0xff]
        %v3706 = vld [vmem:[#allocation3 + $0x438] sm:$0xff]
        %v3707 = vld [vmem:[#allocation3 + $0x440] sm:$0xff]
        %v3708 = vld [vmem:[#allocation3 + $0x448] sm:$0xff]
        %v3709 = vld [vmem:[#allocation3 + $0x450] sm:$0xff]
        %v3710 = vld [vmem:[#allocation3 + $0x458] sm:$0xff]
        %v3711 = vld [vmem:[#allocation3 + $0x460] sm:$0xff]
        %v3712 = vld [vmem:[#allocation3 + $0x468] sm:$0xff]
        %v3713 = vld [vmem:[#allocation3 + $0x470] sm:$0xff]
        %v3714 = vld [vmem:[#allocation3 + $0x478] sm:$0xff]
        %v3715 = vld [vmem:[#allocation7] sm:$0xf]
        %v3716 = vld [vmem:[#allocation7 + $0x4] sm:$0xf]
        %v3717 = vld [vmem:[#allocation7 + $0x8] sm:$0xf]
        %v3718 = vld [vmem:[#allocation7 + $0xc] sm:$0xf]
        %v3719 = vld [vmem:[#allocation7 + $0x10] sm:$0xf]
        %v3720 = vld [vmem:[#allocation7 + $0x14] sm:$0xf]
        %v3721 = vld [vmem:[#allocation7 + $0x18] sm:$0xf]
        %v3722 = vld [vmem:[#allocation7 + $0x1c] sm:$0xf]
        %v3723 = vld [vmem:[#allocation7 + $0x20] sm:$0xf]
        %v3724 = vld [vmem:[#allocation7 + $0x24] sm:$0xf]
        %v3725 = vld [vmem:[#allocation7 + $0x28] sm:$0xf]
        %v3726 = vld [vmem:[#allocation7 + $0x2c] sm:$0xf]
        %v3727 = vld [vmem:[#allocation7 + $0x30] sm:$0xf]
        %v3728 = vld [vmem:[#allocation7 + $0x34] sm:$0xf]
        %v3729 = vld [vmem:[#allocation7 + $0x38] sm:$0xf]
        %v3730 = vld [vmem:[#allocation7 + $0x3c] sm:$0xf]
        %v3731 = vld [vmem:[#allocation7 + $0x40] sm:$0xf]
        %v3732 = vld [vmem:[#allocation7 + $0x44] sm:$0xf]
        %v3733 = vld [vmem:[#allocation7 + $0x48] sm:$0xf]
        %v3734 = vld [vmem:[#allocation7 + $0x4c] sm:$0xf]
        %v3735 = vld [vmem:[#allocation7 + $0x50] sm:$0xf]
        %v3736 = vld [vmem:[#allocation7 + $0x54] sm:$0xf]
        %v3737 = vld [vmem:[#allocation7 + $0x58] sm:$0xf]
        %v3738 = vld [vmem:[#allocation7 + $0x5c] sm:$0xf]
        %v3739 = vld [vmem:[#allocation7 + $0x60] sm:$0xf]
        %v3740 = vld [vmem:[#allocation7 + $0x64] sm:$0xf]
        %v3741 = vld [vmem:[#allocation7 + $0x68] sm:$0xf]
        %v3742 = vld [vmem:[#allocation7 + $0x6c] sm:$0xf]
        %v3743 = vld [vmem:[#allocation7 + $0x70] sm:$0xf]
        %v3744 = vld [vmem:[#allocation7 + $0x74] sm:$0xf]
        %v3745 = vld [vmem:[#allocation7 + $0x78] sm:$0xf]
        %v3746 = vld [vmem:[#allocation7 + $0x7c] sm:$0xf]
        %v3747 = vld [vmem:[#allocation7 + $0x80] sm:$0xf]
        %v3748 = vld [vmem:[#allocation7 + $0x84] sm:$0xf]
        %v3749 = vld [vmem:[#allocation7 + $0x88] sm:$0xf]
        %v3750 = vld [vmem:[#allocation7 + $0x8c] sm:$0xf]
        %v3751 = vld [vmem:[#allocation7 + $0x90] sm:$0xf]
        %v3752 = vld [vmem:[#allocation7 + $0x94] sm:$0xf]
        %v3753 = vld [vmem:[#allocation7 + $0x98] sm:$0xf]
        %v3754 = vld [vmem:[#allocation7 + $0x9c] sm:$0xf]
        %v3755 = vld [vmem:[#allocation7 + $0xa0] sm:$0xf]
        %v3756 = vld [vmem:[#allocation7 + $0xa4] sm:$0xf]
        %v3757 = vld [vmem:[#allocation7 + $0xa8] sm:$0xf]
        %v3758 = vld [vmem:[#allocation7 + $0xac] sm:$0xf]
        %v3759 = vld [vmem:[#allocation7 + $0xb0] sm:$0xf]
        %v3760 = vld [vmem:[#allocation7 + $0xb4] sm:$0xf]
        %v3761 = vld [vmem:[#allocation7 + $0xb8] sm:$0xf]
        %v3762 = vld [vmem:[#allocation7 + $0xbc] sm:$0xf]
        %v3763 = vld [vmem:[#allocation7 + $0xc0] sm:$0xf]
        %v3764 = vld [vmem:[#allocation7 + $0xc4] sm:$0xf]
        %v3765 = vld [vmem:[#allocation7 + $0xc8] sm:$0xf]
        %v3766 = vld [vmem:[#allocation7 + $0xcc] sm:$0xf]
        %v3767 = vld [vmem:[#allocation7 + $0xd0] sm:$0xf]
        %v3768 = vld [vmem:[#allocation7 + $0xd4] sm:$0xf]
        %v3769 = vld [vmem:[#allocation7 + $0xd8] sm:$0xf]
        %v3770 = vld [vmem:[#allocation7 + $0xdc] sm:$0xf]
        %v3771 = vld [vmem:[#allocation7 + $0xe0] sm:$0xf]
        %v3772 = vld [vmem:[#allocation7 + $0xe4] sm:$0xf]
        %v3773 = vld [vmem:[#allocation7 + $0xe8] sm:$0xf]
        %v3774 = vld [vmem:[#allocation7 + $0xec] sm:$0xf]
        %v3775 = vld [vmem:[#allocation7 + $0xf0] sm:$0xf]
        %v3776 = vld [vmem:[#allocation7 + $0xf4] sm:$0xf]
        %v3777 = vld [vmem:[#allocation7 + $0xf8] sm:$0xf]
        %v3778 = vld [vmem:[#allocation7 + $0xfc] sm:$0xf]
        %v3779 = vld [vmem:[#allocation7 + $0x100] sm:$0xf]
        %v3780 = vld [vmem:[#allocation7 + $0x104] sm:$0xf]
        %v3781 = vld [vmem:[#allocation7 + $0x108] sm:$0xf]
        %v3782 = vld [vmem:[#allocation7 + $0x10c] sm:$0xf]
        %v3783 = vld [vmem:[#allocation7 + $0x110] sm:$0xf]
        %v3784 = vld [vmem:[#allocation7 + $0x114] sm:$0xf]
        %v3785 = vld [vmem:[#allocation7 + $0x118] sm:$0xf]
        %v3786 = vld [vmem:[#allocation7 + $0x11c] sm:$0xf]
        %v3787 = vld [vmem:[#allocation7 + $0x120] sm:$0xf]
        %v3788 = vld [vmem:[#allocation7 + $0x124] sm:$0xf]
        %v3789 = vld [vmem:[#allocation7 + $0x128] sm:$0xf]
        %v3790 = vld [vmem:[#allocation7 + $0x12c] sm:$0xf]
        %v3791 = vld [vmem:[#allocation7 + $0x130] sm:$0xf]
        %v3792 = vld [vmem:[#allocation7 + $0x134] sm:$0xf]
        %v3793 = vld [vmem:[#allocation7 + $0x138] sm:$0xf]
        %v3794 = vld [vmem:[#allocation7 + $0x13c] sm:$0xf]
        %v3795 = vld [vmem:[#allocation7 + $0x140] sm:$0xf]
        %v3796 = vld [vmem:[#allocation7 + $0x144] sm:$0xf]
        %v3797 = vld [vmem:[#allocation7 + $0x148] sm:$0xf]
        %v3798 = vld [vmem:[#allocation7 + $0x14c] sm:$0xf]
        %v3799 = vld [vmem:[#allocation7 + $0x150] sm:$0xf]
        %v3800 = vld [vmem:[#allocation7 + $0x154] sm:$0xf]
        %v3801 = vld [vmem:[#allocation7 + $0x158] sm:$0xf]
        %v3802 = vld [vmem:[#allocation7 + $0x15c] sm:$0xf]
        %v3803 = vld [vmem:[#allocation7 + $0x160] sm:$0xf]
        %v3804 = vld [vmem:[#allocation7 + $0x164] sm:$0xf]
        %v3805 = vld [vmem:[#allocation7 + $0x168] sm:$0xf]
        %v3806 = vld [vmem:[#allocation7 + $0x16c] sm:$0xf]
        %v3807 = vld [vmem:[#allocation7 + $0x170] sm:$0xf]
        %v3808 = vld [vmem:[#allocation7 + $0x174] sm:$0xf]
        %v3809 = vld [vmem:[#allocation7 + $0x178] sm:$0xf]
        %v3810 = vld [vmem:[#allocation7 + $0x17c] sm:$0xf]
        %v3811 = vld [vmem:[#allocation7 + $0x180] sm:$0xf]
        %v3812 = vld [vmem:[#allocation7 + $0x184] sm:$0xf]
        %v3813 = vld [vmem:[#allocation7 + $0x188] sm:$0xf]
        %v3814 = vld [vmem:[#allocation7 + $0x18c] sm:$0xf]
        %v3815 = vld [vmem:[#allocation7 + $0x190] sm:$0xf]
        %v3816 = vld [vmem:[#allocation7 + $0x194] sm:$0xf]
        %v3817 = vld [vmem:[#allocation7 + $0x198] sm:$0xf]
        %v3818 = vld [vmem:[#allocation7 + $0x19c] sm:$0xf]
        %v3819 = vld [vmem:[#allocation7 + $0x1a0] sm:$0xf]
        %v3820 = vld [vmem:[#allocation7 + $0x1a4] sm:$0xf]
        %v3821 = vld [vmem:[#allocation7 + $0x1a8] sm:$0xf]
        %v3822 = vld [vmem:[#allocation7 + $0x1ac] sm:$0xf]
        %v3823 = vld [vmem:[#allocation7 + $0x1b0] sm:$0xf]
        %v3824 = vld [vmem:[#allocation7 + $0x1b4] sm:$0xf]
        %v3825 = vld [vmem:[#allocation7 + $0x1b8] sm:$0xf]
        %v3826 = vld [vmem:[#allocation7 + $0x1bc] sm:$0xf]
        %v3827 = vld [vmem:[#allocation7 + $0x1c0] sm:$0xf]
        %v3828 = vld [vmem:[#allocation7 + $0x1c4] sm:$0xf]
        %v3829 = vld [vmem:[#allocation7 + $0x1c8] sm:$0xf]
        %v3830 = vld [vmem:[#allocation7 + $0x1cc] sm:$0xf]
        %v3831 = vld [vmem:[#allocation7 + $0x1d0] sm:$0xf]
        %v3832 = vld [vmem:[#allocation7 + $0x1d4] sm:$0xf]
        %v3833 = vld [vmem:[#allocation7 + $0x1d8] sm:$0xf]
        %v3834 = vld [vmem:[#allocation7 + $0x1dc] sm:$0xf]
        %v3835 = vld [vmem:[#allocation7 + $0x1e0] sm:$0xf]
        %v3836 = vld [vmem:[#allocation7 + $0x1e4] sm:$0xf]
        %v3837 = vld [vmem:[#allocation7 + $0x1e8] sm:$0xf]
        %v3838 = vld [vmem:[#allocation7 + $0x1ec] sm:$0xf]
        %v3839 = vld [vmem:[#allocation7 + $0x1f0] sm:$0xf]
        %v3840 = vld [vmem:[#allocation7 + $0x1f4] sm:$0xf]
        %v3841 = vld [vmem:[#allocation7 + $0x1f8] sm:$0xf]
        %v3842 = vld [vmem:[#allocation7 + $0x1fc] sm:$0xf]
        %v3843 = vld [vmem:[#allocation7 + $0x200] sm:$0xf]
        %v3844 = vld [vmem:[#allocation7 + $0x204] sm:$0xf]
        %v3845 = vld [vmem:[#allocation7 + $0x208] sm:$0xf]
        %v3846 = vld [vmem:[#allocation7 + $0x20c] sm:$0xf]
        %v3847 = vld [vmem:[#allocation7 + $0x210] sm:$0xf]
        %v3848 = vld [vmem:[#allocation7 + $0x214] sm:$0xf]
        %v3849 = vld [vmem:[#allocation7 + $0x218] sm:$0xf]
        %v3850 = vld [vmem:[#allocation7 + $0x21c] sm:$0xf]
        %v3851 = vld [vmem:[#allocation7 + $0x220] sm:$0xf]
        %v3852 = vld [vmem:[#allocation7 + $0x224] sm:$0xf]
        %v3853 = vld [vmem:[#allocation7 + $0x228] sm:$0xf]
        %v3854 = vld [vmem:[#allocation7 + $0x22c] sm:$0xf]
        %v3855 = vld [vmem:[#allocation7 + $0x230] sm:$0xf]
        %v3856 = vld [vmem:[#allocation7 + $0x234] sm:$0xf]
        %v3857 = vld [vmem:[#allocation7 + $0x238] sm:$0xf]
        %v3858 = vld [vmem:[#allocation7 + $0x23c] sm:$0xf]
        %v3859 = vld [vmem:[%s2] sm:$0x1]
        %v3861 = vlaneseq
        %v3862 = vshrl.u32 %v3861, 7
        %v3863 = vsub.s32 0, %v3862
        %v3864 = vrot.slane %v3859, %v3863
        %v4010 = vunpack.c.l.b16 %v3715
        %v4011 = vunpack.c.l.b16 %v3716
        %v4012 = vunpack.c.l.b16 %v3717
        %v4013 = vunpack.c.l.b16 %v3718
        %v4014 = vunpack.c.l.b16 %v3719
        %v4015 = vunpack.c.l.b16 %v3720
        %v4016 = vunpack.c.l.b16 %v3721
        %v4017 = vunpack.c.l.b16 %v3722
        %v4018 = vunpack.c.l.b16 %v3723
        %v4019 = vunpack.c.l.b16 %v3724
        %v4020 = vunpack.c.l.b16 %v3725
        %v4021 = vunpack.c.l.b16 %v3726
        %v4022 = vunpack.c.l.b16 %v3727
        %v4023 = vunpack.c.l.b16 %v3728
        %v4024 = vunpack.c.l.b16 %v3729
        %v4025 = vunpack.c.l.b16 %v3730
        %v4026 = vunpack.c.l.b16 %v3731
        %v4027 = vunpack.c.l.b16 %v3732
        %v4028 = vunpack.c.l.b16 %v3733
        %v4029 = vunpack.c.l.b16 %v3734
        %v4030 = vunpack.c.l.b16 %v3735
        %v4031 = vunpack.c.l.b16 %v3736
        %v4032 = vunpack.c.l.b16 %v3737
        %v4033 = vunpack.c.l.b16 %v3738
        %v4034 = vunpack.c.l.b16 %v3739
        %v4035 = vunpack.c.l.b16 %v3740
        %v4036 = vunpack.c.l.b16 %v3741
        %v4037 = vunpack.c.l.b16 %v3742
        %v4038 = vunpack.c.l.b16 %v3743
        %v4039 = vunpack.c.l.b16 %v3744
        %v4040 = vunpack.c.l.b16 %v3745
        %v4041 = vunpack.c.l.b16 %v3746
        %v4042 = vunpack.c.l.b16 %v3747
        %v4043 = vunpack.c.l.b16 %v3748
        %v4044 = vunpack.c.l.b16 %v3749
        %v4045 = vunpack.c.l.b16 %v3750
        %v4046 = vunpack.c.l.b16 %v3751
        %v4047 = vunpack.c.l.b16 %v3752
        %v4048 = vunpack.c.l.b16 %v3753
        %v4049 = vunpack.c.l.b16 %v3754
        %v4050 = vunpack.c.l.b16 %v3755
        %v4051 = vunpack.c.l.b16 %v3756
        %v4052 = vunpack.c.l.b16 %v3757
        %v4053 = vunpack.c.l.b16 %v3758
        %v4054 = vunpack.c.l.b16 %v3759
        %v4055 = vunpack.c.l.b16 %v3760
        %v4056 = vunpack.c.l.b16 %v3761
        %v4057 = vunpack.c.l.b16 %v3762
        %v4058 = vunpack.c.l.b16 %v3763
        %v4059 = vunpack.c.l.b16 %v3764
        %v4060 = vunpack.c.l.b16 %v3765
        %v4061 = vunpack.c.l.b16 %v3766
        %v4062 = vunpack.c.l.b16 %v3767
        %v4063 = vunpack.c.l.b16 %v3768
        %v4064 = vunpack.c.l.b16 %v3769
        %v4065 = vunpack.c.l.b16 %v3770
        %v4066 = vunpack.c.l.b16 %v3771
        %v4067 = vunpack.c.l.b16 %v3772
        %v4068 = vunpack.c.l.b16 %v3773
        %v4069 = vunpack.c.l.b16 %v3774
        %v4070 = vunpack.c.l.b16 %v3775
        %v4071 = vunpack.c.l.b16 %v3776
        %v4072 = vunpack.c.l.b16 %v3777
        %v4073 = vunpack.c.l.b16 %v3778
        %v4074 = vunpack.c.l.b16 %v3779
        %v4075 = vunpack.c.l.b16 %v3780
        %v4076 = vunpack.c.l.b16 %v3781
        %v4077 = vunpack.c.l.b16 %v3782
        %v4078 = vunpack.c.l.b16 %v3783
        %v4079 = vunpack.c.l.b16 %v3784
        %v4080 = vunpack.c.l.b16 %v3785
        %v4081 = vunpack.c.l.b16 %v3786
        %v4082 = vunpack.c.l.b16 %v3787
        %v4083 = vunpack.c.l.b16 %v3788
        %v4084 = vunpack.c.l.b16 %v3789
        %v4085 = vunpack.c.l.b16 %v3790
        %v4086 = vunpack.c.l.b16 %v3791
        %v4087 = vunpack.c.l.b16 %v3792
        %v4088 = vunpack.c.l.b16 %v3793
        %v4089 = vunpack.c.l.b16 %v3794
        %v4090 = vunpack.c.l.b16 %v3795
        %v4091 = vunpack.c.l.b16 %v3796
        %v4092 = vunpack.c.l.b16 %v3797
        %v4093 = vunpack.c.l.b16 %v3798
        %v4094 = vunpack.c.l.b16 %v3799
        %v4095 = vunpack.c.l.b16 %v3800
        %v4096 = vunpack.c.l.b16 %v3801
        %v4097 = vunpack.c.l.b16 %v3802
        %v4098 = vunpack.c.l.b16 %v3803
        %v4099 = vunpack.c.l.b16 %v3804
        %v4100 = vunpack.c.l.b16 %v3805
        %v4101 = vunpack.c.l.b16 %v3806
        %v4102 = vunpack.c.l.b16 %v3807
        %v4103 = vunpack.c.l.b16 %v3808
        %v4104 = vunpack.c.l.b16 %v3809
        %v4105 = vunpack.c.l.b16 %v3810
        %v4106 = vunpack.c.l.b16 %v3811
        %v4107 = vunpack.c.l.b16 %v3812
        %v4108 = vunpack.c.l.b16 %v3813
        %v4109 = vunpack.c.l.b16 %v3814
        %v4110 = vunpack.c.l.b16 %v3815
        %v4111 = vunpack.c.l.b16 %v3816
        %v4112 = vunpack.c.l.b16 %v3817
        %v4113 = vunpack.c.l.b16 %v3818
        %v4114 = vunpack.c.l.b16 %v3819
        %v4115 = vunpack.c.l.b16 %v3820
        %v4116 = vunpack.c.l.b16 %v3821
        %v4117 = vunpack.c.l.b16 %v3822
        %v4118 = vunpack.c.l.b16 %v3823
        %v4119 = vunpack.c.l.b16 %v3824
        %v4120 = vunpack.c.l.b16 %v3825
        %v4121 = vunpack.c.l.b16 %v3826
        %v4122 = vunpack.c.l.b16 %v3827
        %v4123 = vunpack.c.l.b16 %v3828
        %v4124 = vunpack.c.l.b16 %v3829
        %v4125 = vunpack.c.l.b16 %v3830
        %v4126 = vunpack.c.l.b16 %v3831
        %v4127 = vunpack.c.l.b16 %v3832
        %v4128 = vunpack.c.l.b16 %v3833
        %v4129 = vunpack.c.l.b16 %v3834
        %v4130 = vunpack.c.l.b16 %v3835
        %v4131 = vunpack.c.l.b16 %v3836
        %v4132 = vunpack.c.l.b16 %v3837
        %v4133 = vunpack.c.l.b16 %v3838
        %v4134 = vunpack.c.l.b16 %v3839
        %v4135 = vunpack.c.l.b16 %v3840
        %v4136 = vunpack.c.l.b16 %v3841
        %v4137 = vunpack.c.l.b16 %v3842
        %v4138 = vunpack.c.l.b16 %v3843
        %v4139 = vunpack.c.l.b16 %v3844
        %v4140 = vunpack.c.l.b16 %v3845
        %v4141 = vunpack.c.l.b16 %v3846
        %v4142 = vunpack.c.l.b16 %v3847
        %v4143 = vunpack.c.l.b16 %v3848
        %v4144 = vunpack.c.l.b16 %v3849
        %v4145 = vunpack.c.l.b16 %v3850
        %v4146 = vunpack.c.l.b16 %v3851
        %v4147 = vunpack.c.l.b16 %v3852
        %v4148 = vunpack.c.l.b16 %v3853
        %v4149 = vunpack.c.l.b16 %v3854
        %v4150 = vunpack.c.l.b16 %v3855
        %v4151 = vunpack.c.l.b16 %v3856
        %v4152 = vunpack.c.l.b16 %v3857
        %v4153 = vunpack.c.l.b16 %v3858
        %v4154 = vpack.c.b16 %v4011, %v4010
        %v4155 = vpack.c.b16 %v4013, %v4012
        %v4156 = vpack.c.b16 %v4015, %v4014
        %v4157 = vpack.c.b16 %v4017, %v4016
        %v4158 = vpack.c.b16 %v4019, %v4018
        %v4159 = vpack.c.b16 %v4021, %v4020
        %v4160 = vpack.c.b16 %v4023, %v4022
        %v4161 = vpack.c.b16 %v4025, %v4024
        %v4162 = vpack.c.b16 %v4027, %v4026
        %v4163 = vpack.c.b16 %v4029, %v4028
        %v4164 = vpack.c.b16 %v4031, %v4030
        %v4165 = vpack.c.b16 %v4033, %v4032
        %v4166 = vpack.c.b16 %v4035, %v4034
        %v4167 = vpack.c.b16 %v4037, %v4036
        %v4168 = vpack.c.b16 %v4039, %v4038
        %v4169 = vpack.c.b16 %v4041, %v4040
        %v4170 = vpack.c.b16 %v4043, %v4042
        %v4171 = vpack.c.b16 %v4045, %v4044
        %v4172 = vpack.c.b16 %v4047, %v4046
        %v4173 = vpack.c.b16 %v4049, %v4048
        %v4174 = vpack.c.b16 %v4051, %v4050
        %v4175 = vpack.c.b16 %v4053, %v4052
        %v4176 = vpack.c.b16 %v4055, %v4054
        %v4177 = vpack.c.b16 %v4057, %v4056
        %v4178 = vpack.c.b16 %v4059, %v4058
        %v4179 = vpack.c.b16 %v4061, %v4060
        %v4180 = vpack.c.b16 %v4063, %v4062
        %v4181 = vpack.c.b16 %v4065, %v4064
        %v4182 = vpack.c.b16 %v4067, %v4066
        %v4183 = vpack.c.b16 %v4069, %v4068
        %v4184 = vpack.c.b16 %v4071, %v4070
        %v4185 = vpack.c.b16 %v4073, %v4072
        %v4186 = vpack.c.b16 %v4075, %v4074
        %v4187 = vpack.c.b16 %v4077, %v4076
        %v4188 = vpack.c.b16 %v4079, %v4078
        %v4189 = vpack.c.b16 %v4081, %v4080
        %v4190 = vpack.c.b16 %v4083, %v4082
        %v4191 = vpack.c.b16 %v4085, %v4084
        %v4192 = vpack.c.b16 %v4087, %v4086
        %v4193 = vpack.c.b16 %v4089, %v4088
        %v4194 = vpack.c.b16 %v4091, %v4090
        %v4195 = vpack.c.b16 %v4093, %v4092
        %v4196 = vpack.c.b16 %v4095, %v4094
        %v4197 = vpack.c.b16 %v4097, %v4096
        %v4198 = vpack.c.b16 %v4099, %v4098
        %v4199 = vpack.c.b16 %v4101, %v4100
        %v4200 = vpack.c.b16 %v4103, %v4102
        %v4201 = vpack.c.b16 %v4105, %v4104
        %v4202 = vpack.c.b16 %v4107, %v4106
        %v4203 = vpack.c.b16 %v4109, %v4108
        %v4204 = vpack.c.b16 %v4111, %v4110
        %v4205 = vpack.c.b16 %v4113, %v4112
        %v4206 = vpack.c.b16 %v4115, %v4114
        %v4207 = vpack.c.b16 %v4117, %v4116
        %v4208 = vpack.c.b16 %v4119, %v4118
        %v4209 = vpack.c.b16 %v4121, %v4120
        %v4210 = vpack.c.b16 %v4123, %v4122
        %v4211 = vpack.c.b16 %v4125, %v4124
        %v4212 = vpack.c.b16 %v4127, %v4126
        %v4213 = vpack.c.b16 %v4129, %v4128
        %v4214 = vpack.c.b16 %v4131, %v4130
        %v4215 = vpack.c.b16 %v4133, %v4132
        %v4216 = vpack.c.b16 %v4135, %v4134
        %v4217 = vpack.c.b16 %v4137, %v4136
        %v4218 = vpack.c.b16 %v4139, %v4138
        %v4219 = vpack.c.b16 %v4141, %v4140
        %v4220 = vpack.c.b16 %v4143, %v4142
        %v4221 = vpack.c.b16 %v4145, %v4144
        %v4222 = vpack.c.b16 %v4147, %v4146
        %v4223 = vpack.c.b16 %v4149, %v4148
        %v4224 = vpack.c.b16 %v4151, %v4150
        %v4225 = vpack.c.b16 %v4153, %v4152
        %4298 = vmatprep.subr.bf16.mxu0 0
        %4299 = vmatpush1.bf16.msra.mxu0 %v4154
        %4300 = vmatprep.subr.bf16.mxu0 0
        %4301 = vmatpush1.bf16.msra.mxu0 %v4155
        %4302 = vmatprep.subr.bf16.mxu0 0
        %4303 = vmatpush1.bf16.msra.mxu0 %v4156
        %4304 = vmatprep.subr.bf16.mxu0 0
        %4305 = vmatpush1.bf16.msra.mxu0 %v4157
        %4306 = vmatprep.subr.bf16.mxu0 0
        %4307 = vmatpush1.bf16.msra.mxu0 %v4158
        %4308 = vmatprep.subr.bf16.mxu0 0
        %4309 = vmatpush1.bf16.msra.mxu0 %v4159
        %4310 = vmatprep.subr.bf16.mxu0 0
        %4311 = vmatpush1.bf16.msra.mxu0 %v4160
        %4312 = vmatprep.subr.bf16.mxu0 0
        %4313 = vmatpush1.bf16.msra.mxu0 %v4161
        %4314 = vmatprep.subr.bf16.mxu0 0
        %4315 = vmatpush1.bf16.msra.mxu0 %v4162
        %4316 = vmatprep.subr.bf16.mxu0 0
        %4317 = vmatpush1.bf16.msra.mxu0 %v4163
        %4318 = vmatprep.subr.bf16.mxu0 0
        %4319 = vmatpush1.bf16.msra.mxu0 %v4164
        %4320 = vmatprep.subr.bf16.mxu0 0
        %4321 = vmatpush1.bf16.msra.mxu0 %v4165
        %4322 = vmatprep.subr.bf16.mxu0 0
        %4323 = vmatpush1.bf16.msra.mxu0 %v4166
        %4324 = vmatprep.subr.bf16.mxu0 0
        %4325 = vmatpush1.bf16.msra.mxu0 %v4167
        %4326 = vmatprep.subr.bf16.mxu0 0
        %4327 = vmatpush1.bf16.msra.mxu0 %v4168
        %4328 = vmatprep.subr.bf16.mxu0 0
        %4329 = vmatpush1.bf16.msra.mxu0 %v4169
        %4330 = vmatprep.mubr.bf16.mxu0 %v3572
        %4331 = vmatmul.mubr.bf16.gmra.mrb[0].mxu0 %v3571
        %v4332 = vpop.f32.mrb[0].mxu0
        %v4333 = vadd.f32 %v3864, %v4332
        %v4334 = vpop.f32.mrb[0].mxu0
        %v4335 = vpop.f32.mrb[0].mxu0
        %v4336 = vadd.f32 %v3864, %v4335
        %v4337 = vpop.f32.mrb[0].mxu0
        %4338 = vmatprep.mubr.bf16.mxu0 %v3581
        %4339 = vmatmul.mubr.bf16.gmra.mrb[0].mxu0 %v3580
        %v4340 = vpop.f32.mrb[0].mxu0
        %v4341 = vadd.f32 %v3864, %v4340
        %v4342 = vpop.f32.mrb[0].mxu0
        %v4343 = vpop.f32.mrb[0].mxu0
        %v4344 = vadd.f32 %v3864, %v4343
        %v4345 = vpop.f32.mrb[0].mxu0
        %4346 = vmatprep.mubr.bf16.mxu0 %v3590
        %4347 = vmatmul.mubr.bf16.gmra.mrb[0].mxu0 %v3589
        %v4348 = vpop.f32.mrb[0].mxu0
        %v4349 = vadd.f32 %v3864, %v4348
        %v4350 = vpop.f32.mrb[0].mxu0
        %v4351 = vpop.f32.mrb[0].mxu0
        %v4352 = vadd.f32 %v3864, %v4351
        %v4353 = vpop.f32.mrb[0].mxu0
        %4354 = vmatprep.mubr.bf16.mxu0 %v3599
        %4355 = vmatmul.mubr.bf16.gmra.mrb[0].mxu0 %v3598
        %v4356 = vpop.f32.mrb[0].mxu0
        %v4357 = vadd.f32 %v3864, %v4356
        %v4358 = vpop.f32.mrb[0].mxu0
        %v4359 = vpop.f32.mrb[0].mxu0
        %v4360 = vadd.f32 %v3864, %v4359
        %v4361 = vpop.f32.mrb[0].mxu0
        %4362 = vmatprep.mubr.bf16.mxu0 %v3608
        %4363 = vmatmul.mubr.bf16.gmra.mrb[0].mxu0 %v3607
        %v4364 = vpop.f32.mrb[0].mxu0
        %v4365 = vadd.f32 %v3864, %v4364
        %v4366 = vpop.f32.mrb[0].mxu0
        %v4367 = vpop.f32.mrb[0].mxu0
        %v4368 = vadd.f32 %v3864, %v4367
        %v4369 = vpop.f32.mrb[0].mxu0
        %4370 = vmatprep.mubr.bf16.mxu0 %v3617
        %4371 = vmatmul.mubr.bf16.gmra.mrb[0].mxu0 %v3616
        %v4372 = vpop.f32.mrb[0].mxu0
        %v4373 = vadd.f32 %v3864, %v4372
        %v4374 = vpop.f32.mrb[0].mxu0
        %v4375 = vpop.f32.mrb[0].mxu0
        %v4376 = vadd.f32 %v3864, %v4375
        %v4377 = vpop.f32.mrb[0].mxu0
        %4378 = vmatprep.mubr.bf16.mxu0 %v3626
        %4379 = vmatmul.mubr.bf16.gmra.mrb[0].mxu0 %v3625
        %v4380 = vpop.f32.mrb[0].mxu0
        %v4381 = vadd.f32 %v3864, %v4380
        %v4382 = vpop.f32.mrb[0].mxu0
        %v4383 = vpop.f32.mrb[0].mxu0
        %v4384 = vadd.f32 %v3864, %v4383
        %v4385 = vpop.f32.mrb[0].mxu0
        %4386 = vmatprep.mubr.bf16.mxu0 %v3635
        %4387 = vmatmul.mubr.bf16.gmra.mrb[0].mxu0 %v3634
        %v4388 = vpop.f32.mrb[0].mxu0
        %v4389 = vadd.f32 %v3864, %v4388
        %v4390 = vpop.f32.mrb[0].mxu0
        %v4391 = vpop.f32.mrb[0].mxu0
        %v4392 = vadd.f32 %v3864, %v4391
        %v4393 = vpop.f32.mrb[0].mxu0
        %4394 = vmatprep.mubr.bf16.mxu0 %v3644
        %4395 = vmatmul.mubr.bf16.gmra.mrb[0].mxu0 %v3643
        %v4396 = vpop.f32.mrb[0].mxu0
        %v4397 = vadd.f32 %v3864, %v4396
        %v4398 = vpop.f32.mrb[0].mxu0
        %v4399 = vpop.f32.mrb[0].mxu0
        %v4400 = vadd.f32 %v3864, %v4399
        %v4401 = vpop.f32.mrb[0].mxu0
        %4402 = vmatprep.mubr.bf16.mxu0 %v3653
        %4403 = vmatmul.mubr.bf16.gmra.mrb[0].mxu0 %v3652
        %v4404 = vpop.f32.mrb[0].mxu0
        %v4405 = vadd.f32 %v3864, %v4404
        %v4406 = vpop.f32.mrb[0].mxu0
        %v4407 = vpop.f32.mrb[0].mxu0
        %v4408 = vadd.f32 %v3864, %v4407
        %v4409 = vpop.f32.mrb[0].mxu0
        %4410 = vmatprep.mubr.bf16.mxu0 %v3662
        %4411 = vmatmul.mubr.bf16.gmra.mrb[0].mxu0 %v3661
        %v4412 = vpop.f32.mrb[0].mxu0
        %v4413 = vadd.f32 %v3864, %v4412
        %v4414 = vpop.f32.mrb[0].mxu0
        %v4415 = vpop.f32.mrb[0].mxu0
        %v4416 = vadd.f32 %v3864, %v4415
        %v4417 = vpop.f32.mrb[0].mxu0
        %4418 = vmatprep.mubr.bf16.mxu0 %v3671
        %4419 = vmatmul.mubr.bf16.gmra.mrb[0].mxu0 %v3670
        %v4420 = vpop.f32.mrb[0].mxu0
        %v4421 = vadd.f32 %v3864, %v4420
        %v4422 = vpop.f32.mrb[0].mxu0
        %v4423 = vpop.f32.mrb[0].mxu0
        %v4424 = vadd.f32 %v3864, %v4423
        %v4425 = vpop.f32.mrb[0].mxu0
        %4426 = vmatprep.mubr.bf16.mxu0 %v3680
        %4427 = vmatmul.mubr.bf16.gmra.mrb[0].mxu0 %v3679
        %v4428 = vpop.f32.mrb[0].mxu0
        %v4429 = vadd.f32 %v3864, %v4428
        %v4430 = vpop.f32.mrb[0].mxu0
        %v4431 = vpop.f32.mrb[0].mxu0
        %v4432 = vadd.f32 %v3864, %v4431
        %v4433 = vpop.f32.mrb[0].mxu0
        %4434 = vmatprep.mubr.bf16.mxu0 %v3689
        %4435 = vmatmul.mubr.bf16.gmra.mrb[0].mxu0 %v3688
        %v4436 = vpop.f32.mrb[0].mxu0
        %v4437 = vadd.f32 %v3864, %v4436
        %v4438 = vpop.f32.mrb[0].mxu0
        %v4439 = vpop.f32.mrb[0].mxu0
        %v4440 = vadd.f32 %v3864, %v4439
        %v4441 = vpop.f32.mrb[0].mxu0
        %4442 = vmatprep.mubr.bf16.mxu0 %v3698
        %4443 = vmatmul.mubr.bf16.gmra.mrb[0].mxu0 %v3697
        %v4444 = vpop.f32.mrb[0].mxu0
        %v4445 = vadd.f32 %v3864, %v4444
        %v4446 = vpop.f32.mrb[0].mxu0
        %v4447 = vpop.f32.mrb[0].mxu0
        %v4448 = vadd.f32 %v3864, %v4447
        %v4449 = vpop.f32.mrb[0].mxu0
        %4450 = vmatprep.mubr.bf16.mxu0 %v3707
        %4451 = vmatmul.mubr.bf16.gmra.mrb[0].mxu0 %v3706
        %v4452 = vpop.f32.mrb[0].mxu0
        %v4453 = vadd.f32 %v3864, %v4452
        %v4454 = vpop.f32.mrb[0].mxu0
        %v4455 = vpop.f32.mrb[0].mxu0
        %v4456 = vadd.f32 %v3864, %v4455
        %v4457 = vpop.f32.mrb[0].mxu0
        %4458 = vdwg.mxu0
        %4459 = vmatprep.subr.bf16.mxu0 0
        %4460 = vmatpush1.bf16.msra.mxu0 %v4170
        %4461 = vmatprep.subr.bf16.mxu0 0
        %4462 = vmatpush1.bf16.msra.mxu0 %v4171
        %4463 = vmatprep.subr.bf16.mxu0 0
        %4464 = vmatpush1.bf16.msra.mxu0 %v4172
        %4465 = vmatprep.subr.bf16.mxu0 0
        %4466 = vmatpush1.bf16.msra.mxu0 %v4173
        %4467 = vmatprep.subr.bf16.mxu0 0
        %4468 = vmatpush1.bf16.msra.mxu0 %v4174
        %4469 = vmatprep.subr.bf16.mxu0 0
        %4470 = vmatpush1.bf16.msra.mxu0 %v4175
        %4471 = vmatprep.subr.bf16.mxu0 0
        %4472 = vmatpush1.bf16.msra.mxu0 %v4176
        %4473 = vmatprep.subr.bf16.mxu0 0
        %4474 = vmatpush1.bf16.msra.mxu0 %v4177
        %4475 = vmatprep.subr.bf16.mxu0 0
        %4476 = vmatpush1.bf16.msra.mxu0 %v4178
        %4477 = vmatprep.subr.bf16.mxu0 0
        %4478 = vmatpush1.bf16.msra.mxu0 %v4179
        %4479 = vmatprep.subr.bf16.mxu0 0
        %4480 = vmatpush1.bf16.msra.mxu0 %v4180
        %4481 = vmatprep.subr.bf16.mxu0 0
        %4482 = vmatpush1.bf16.msra.mxu0 %v4181
        %4483 = vmatprep.subr.bf16.mxu0 0
        %4484 = vmatpush1.bf16.msra.mxu0 %v4182
        %4485 = vmatprep.subr.bf16.mxu0 0
        %4486 = vmatpush1.bf16.msra.mxu0 %v4183
        %4487 = vmatprep.subr.bf16.mxu0 0
        %4488 = vmatpush1.bf16.msra.mxu0 %v4184
        %4489 = vmatprep.subr.bf16.mxu0 0
        %4490 = vmatpush1.bf16.msra.mxu0 %v4185
        %4491 = vmatprep.mubr.bf16.mxu0 %v3574
        %4492 = vmatmul.mubr.bf16.gmra.mrb[0].mxu0 %v3573
        %v4493 = vpop.f32.mrb[0].mxu0
        %v4494 = vadd.f32 %v4333, %v4493
        %v4495 = vpop.f32.mrb[0].mxu0
        %v4496 = vpop.f32.mrb[0].mxu0
        %v4497 = vadd.f32 %v4336, %v4496
        %v4498 = vpop.f32.mrb[0].mxu0
        %4499 = vmatprep.mubr.bf16.mxu0 %v3583
        %4500 = vmatmul.mubr.bf16.gmra.mrb[0].mxu0 %v3582
        %v4501 = vpop.f32.mrb[0].mxu0
        %v4502 = vadd.f32 %v4341, %v4501
        %v4503 = vpop.f32.mrb[0].mxu0
        %v4504 = vpop.f32.mrb[0].mxu0
        %v4505 = vadd.f32 %v4344, %v4504
        %v4506 = vpop.f32.mrb[0].mxu0
        %4507 = vmatprep.mubr.bf16.mxu0 %v3592
        %4508 = vmatmul.mubr.bf16.gmra.mrb[0].mxu0 %v3591
        %v4509 = vpop.f32.mrb[0].mxu0
        %v4510 = vadd.f32 %v4349, %v4509
        %v4511 = vpop.f32.mrb[0].mxu0
        %v4512 = vpop.f32.mrb[0].mxu0
        %v4513 = vadd.f32 %v4352, %v4512
        %v4514 = vpop.f32.mrb[0].mxu0
        %4515 = vmatprep.mubr.bf16.mxu0 %v3601
        %4516 = vmatmul.mubr.bf16.gmra.mrb[0].mxu0 %v3600
        %v4517 = vpop.f32.mrb[0].mxu0
        %v4518 = vadd.f32 %v4357, %v4517
        %v4519 = vpop.f32.mrb[0].mxu0
        %v4520 = vpop.f32.mrb[0].mxu0
        %v4521 = vadd.f32 %v4360, %v4520
        %v4522 = vpop.f32.mrb[0].mxu0
        %4523 = vmatprep.mubr.bf16.mxu0 %v3610
        %4524 = vmatmul.mubr.bf16.gmra.mrb[0].mxu0 %v3609
        %v4525 = vpop.f32.mrb[0].mxu0
        %v4526 = vadd.f32 %v4365, %v4525
        %v4527 = vpop.f32.mrb[0].mxu0
        %v4528 = vpop.f32.mrb[0].mxu0
        %v4529 = vadd.f32 %v4368, %v4528
        %v4530 = vpop.f32.mrb[0].mxu0
        %4531 = vmatprep.mubr.bf16.mxu0 %v3619
        %4532 = vmatmul.mubr.bf16.gmra.mrb[0].mxu0 %v3618
        %v4533 = vpop.f32.mrb[0].mxu0
        %v4534 = vadd.f32 %v4373, %v4533
        %v4535 = vpop.f32.mrb[0].mxu0
        %v4536 = vpop.f32.mrb[0].mxu0
        %v4537 = vadd.f32 %v4376, %v4536
        %v4538 = vpop.f32.mrb[0].mxu0
        %4539 = vmatprep.mubr.bf16.mxu0 %v3628
        %4540 = vmatmul.mubr.bf16.gmra.mrb[0].mxu0 %v3627
        %v4541 = vpop.f32.mrb[0].mxu0
        %v4542 = vadd.f32 %v4381, %v4541
        %v4543 = vpop.f32.mrb[0].mxu0
        %v4544 = vpop.f32.mrb[0].mxu0
        %v4545 = vadd.f32 %v4384, %v4544
        %v4546 = vpop.f32.mrb[0].mxu0
        %4547 = vmatprep.mubr.bf16.mxu0 %v3637
        %4548 = vmatmul.mubr.bf16.gmra.mrb[0].mxu0 %v3636
        %v4549 = vpop.f32.mrb[0].mxu0
        %v4550 = vadd.f32 %v4389, %v4549
        %v4551 = vpop.f32.mrb[0].mxu0
        %v4552 = vpop.f32.mrb[0].mxu0
        %v4553 = vadd.f32 %v4392, %v4552
        %v4554 = vpop.f32.mrb[0].mxu0
        %4555 = vmatprep.mubr.bf16.mxu0 %v3646
        %4556 = vmatmul.mubr.bf16.gmra.mrb[0].mxu0 %v3645
        %v4557 = vpop.f32.mrb[0].mxu0
        %v4558 = vadd.f32 %v4397, %v4557
        %v4559 = vpop.f32.mrb[0].mxu0
        %v4560 = vpop.f32.mrb[0].mxu0
        %v4561 = vadd.f32 %v4400, %v4560
        %v4562 = vpop.f32.mrb[0].mxu0
        %4563 = vmatprep.mubr.bf16.mxu0 %v3655
        %4564 = vmatmul.mubr.bf16.gmra.mrb[0].mxu0 %v3654
        %v4565 = vpop.f32.mrb[0].mxu0
        %v4566 = vadd.f32 %v4405, %v4565
        %v4567 = vpop.f32.mrb[0].mxu0
        %v4568 = vpop.f32.mrb[0].mxu0
        %v4569 = vadd.f32 %v4408, %v4568
        %v4570 = vpop.f32.mrb[0].mxu0
        %4571 = vmatprep.mubr.bf16.mxu0 %v3664
        %4572 = vmatmul.mubr.bf16.gmra.mrb[0].mxu0 %v3663
        %v4573 = vpop.f32.mrb[0].mxu0
        %v4574 = vadd.f32 %v4413, %v4573
        %v4575 = vpop.f32.mrb[0].mxu0
        %v4576 = vpop.f32.mrb[0].mxu0
        %v4577 = vadd.f32 %v4416, %v4576
        %v4578 = vpop.f32.mrb[0].mxu0
        %4579 = vmatprep.mubr.bf16.mxu0 %v3673
        %4580 = vmatmul.mubr.bf16.gmra.mrb[0].mxu0 %v3672
        %v4581 = vpop.f32.mrb[0].mxu0
        %v4582 = vadd.f32 %v4421, %v4581
        %v4583 = vpop.f32.mrb[0].mxu0
        %v4584 = vpop.f32.mrb[0].mxu0
        %v4585 = vadd.f32 %v4424, %v4584
        %v4586 = vpop.f32.mrb[0].mxu0
        %4587 = vmatprep.mubr.bf16.mxu0 %v3682
        %4588 = vmatmul.mubr.bf16.gmra.mrb[0].mxu0 %v3681
        %v4589 = vpop.f32.mrb[0].mxu0
        %v4590 = vadd.f32 %v4429, %v4589
        %v4591 = vpop.f32.mrb[0].mxu0
        %v4592 = vpop.f32.mrb[0].mxu0
        %v4593 = vadd.f32 %v4432, %v4592
        %v4594 = vpop.f32.mrb[0].mxu0
        %4595 = vmatprep.mubr.bf16.mxu0 %v3691
        %4596 = vmatmul.mubr.bf16.gmra.mrb[0].mxu0 %v3690
        %v4597 = vpop.f32.mrb[0].mxu0
        %v4598 = vadd.f32 %v4437, %v4597
        %v4599 = vpop.f32.mrb[0].mxu0
        %v4600 = vpop.f32.mrb[0].mxu0
        %v4601 = vadd.f32 %v4440, %v4600
        %v4602 = vpop.f32.mrb[0].mxu0
        %4603 = vmatprep.mubr.bf16.mxu0 %v3700
        %4604 = vmatmul.mubr.bf16.gmra.mrb[0].mxu0 %v3699
        %v4605 = vpop.f32.mrb[0].mxu0
        %v4606 = vadd.f32 %v4445, %v4605
        %v4607 = vpop.f32.mrb[0].mxu0
        %v4608 = vpop.f32.mrb[0].mxu0
        %v4609 = vadd.f32 %v4448, %v4608
        %v4610 = vpop.f32.mrb[0].mxu0
        %4611 = vmatprep.mubr.bf16.mxu0 %v3709
        %4612 = vmatmul.mubr.bf16.gmra.mrb[0].mxu0 %v3708
        %v4613 = vpop.f32.mrb[0].mxu0
        %v4614 = vadd.f32 %v4453, %v4613
        %v4615 = vpop.f32.mrb[0].mxu0
        %v4616 = vpop.f32.mrb[0].mxu0
        %v4617 = vadd.f32 %v4456, %v4616
        %v4618 = vpop.f32.mrb[0].mxu0
        %4619 = vdwg.mxu0
        %4620 = vmatprep.subr.bf16.mxu0 0
        %4621 = vmatpush1.bf16.msra.mxu0 %v4186
        %4622 = vmatprep.subr.bf16.mxu0 0
        %4623 = vmatpush1.bf16.msra.mxu0 %v4187
        %4624 = vmatprep.subr.bf16.mxu0 0
        %4625 = vmatpush1.bf16.msra.mxu0 %v4188
        %4626 = vmatprep.subr.bf16.mxu0 0
        %4627 = vmatpush1.bf16.msra.mxu0 %v4189
        %4628 = vmatprep.subr.bf16.mxu0 0
        %4629 = vmatpush1.bf16.msra.mxu0 %v4190
        %4630 = vmatprep.subr.bf16.mxu0 0
        %4631 = vmatpush1.bf16.msra.mxu0 %v4191
        %4632 = vmatprep.subr.bf16.mxu0 0
        %4633 = vmatpush1.bf16.msra.mxu0 %v4192
        %4634 = vmatprep.subr.bf16.mxu0 0
        %4635 = vmatpush1.bf16.msra.mxu0 %v4193
        %4636 = vmatprep.subr.bf16.mxu0 0
        %4637 = vmatpush1.bf16.msra.mxu0 %v4194
        %4638 = vmatprep.subr.bf16.mxu0 0
        %4639 = vmatpush1.bf16.msra.mxu0 %v4195
        %4640 = vmatprep.subr.bf16.mxu0 0
        %4641 = vmatpush1.bf16.msra.mxu0 %v4196
        %4642 = vmatprep.subr.bf16.mxu0 0
        %4643 = vmatpush1.bf16.msra.mxu0 %v4197
        %4644 = vmatprep.subr.bf16.mxu0 0
        %4645 = vmatpush1.bf16.msra.mxu0 %v4198
        %4646 = vmatprep.subr.bf16.mxu0 0
        %4647 = vmatpush1.bf16.msra.mxu0 %v4199
        %4648 = vmatprep.subr.bf16.mxu0 0
        %4649 = vmatpush1.bf16.msra.mxu0 %v4200
        %4650 = vmatprep.subr.bf16.mxu0 0
        %4651 = vmatpush1.bf16.msra.mxu0 %v4201
        %4652 = vmatprep.mubr.bf16.mxu0 %v3576
        %4653 = vmatmul.mubr.bf16.gmra.mrb[0].mxu0 %v3575
        %v4654 = vpop.f32.mrb[0].mxu0
        %v4655 = vadd.f32 %v4494, %v4654
        %v4656 = vpop.f32.mrb[0].mxu0
        %v4657 = vpop.f32.mrb[0].mxu0
        %v4658 = vadd.f32 %v4497, %v4657
        %v4659 = vpop.f32.mrb[0].mxu0
        %4660 = vmatprep.mubr.bf16.mxu0 %v3585
        %4661 = vmatmul.mubr.bf16.gmra.mrb[0].mxu0 %v3584
        %v4662 = vpop.f32.mrb[0].mxu0
        %v4663 = vadd.f32 %v4502, %v4662
        %v4664 = vpop.f32.mrb[0].mxu0
        %v4665 = vpop.f32.mrb[0].mxu0
        %v4666 = vadd.f32 %v4505, %v4665
        %v4667 = vpop.f32.mrb[0].mxu0
        %4668 = vmatprep.mubr.bf16.mxu0 %v3594
        %4669 = vmatmul.mubr.bf16.gmra.mrb[0].mxu0 %v3593
        %v4670 = vpop.f32.mrb[0].mxu0
        %v4671 = vadd.f32 %v4510, %v4670
        %v4672 = vpop.f32.mrb[0].mxu0
        %v4673 = vpop.f32.mrb[0].mxu0
        %v4674 = vadd.f32 %v4513, %v4673
        %v4675 = vpop.f32.mrb[0].mxu0
        %4676 = vmatprep.mubr.bf16.mxu0 %v3603
        %4677 = vmatmul.mubr.bf16.gmra.mrb[0].mxu0 %v3602
        %v4678 = vpop.f32.mrb[0].mxu0
        %v4679 = vadd.f32 %v4518, %v4678
        %v4680 = vpop.f32.mrb[0].mxu0
        %v4681 = vpop.f32.mrb[0].mxu0
        %v4682 = vadd.f32 %v4521, %v4681
        %v4683 = vpop.f32.mrb[0].mxu0
        %4684 = vmatprep.mubr.bf16.mxu0 %v3612
        %4685 = vmatmul.mubr.bf16.gmra.mrb[0].mxu0 %v3611
        %v4686 = vpop.f32.mrb[0].mxu0
        %v4687 = vadd.f32 %v4526, %v4686
        %v4688 = vpop.f32.mrb[0].mxu0
        %v4689 = vpop.f32.mrb[0].mxu0
        %v4690 = vadd.f32 %v4529, %v4689
        %v4691 = vpop.f32.mrb[0].mxu0
        %4692 = vmatprep.mubr.bf16.mxu0 %v3621
        %4693 = vmatmul.mubr.bf16.gmra.mrb[0].mxu0 %v3620
        %v4694 = vpop.f32.mrb[0].mxu0
        %v4695 = vadd.f32 %v4534, %v4694
        %v4696 = vpop.f32.mrb[0].mxu0
        %v4697 = vpop.f32.mrb[0].mxu0
        %v4698 = vadd.f32 %v4537, %v4697
        %v4699 = vpop.f32.mrb[0].mxu0
        %4700 = vmatprep.mubr.bf16.mxu0 %v3630
        %4701 = vmatmul.mubr.bf16.gmra.mrb[0].mxu0 %v3629
        %v4702 = vpop.f32.mrb[0].mxu0
        %v4703 = vadd.f32 %v4542, %v4702
        %v4704 = vpop.f32.mrb[0].mxu0
        %v4705 = vpop.f32.mrb[0].mxu0
        %v4706 = vadd.f32 %v4545, %v4705
        %v4707 = vpop.f32.mrb[0].mxu0
        %4708 = vmatprep.mubr.bf16.mxu0 %v3639
        %4709 = vmatmul.mubr.bf16.gmra.mrb[0].mxu0 %v3638
        %v4710 = vpop.f32.mrb[0].mxu0
        %v4711 = vadd.f32 %v4550, %v4710
        %v4712 = vpop.f32.mrb[0].mxu0
        %v4713 = vpop.f32.mrb[0].mxu0
        %v4714 = vadd.f32 %v4553, %v4713
        %v4715 = vpop.f32.mrb[0].mxu0
        %4716 = vmatprep.mubr.bf16.mxu0 %v3648
        %4717 = vmatmul.mubr.bf16.gmra.mrb[0].mxu0 %v3647
        %v4718 = vpop.f32.mrb[0].mxu0
        %v4719 = vadd.f32 %v4558, %v4718
        %v4720 = vpop.f32.mrb[0].mxu0
        %v4721 = vpop.f32.mrb[0].mxu0
        %v4722 = vadd.f32 %v4561, %v4721
        %v4723 = vpop.f32.mrb[0].mxu0
        %4724 = vmatprep.mubr.bf16.mxu0 %v3657
        %4725 = vmatmul.mubr.bf16.gmra.mrb[0].mxu0 %v3656
        %v4726 = vpop.f32.mrb[0].mxu0
        %v4727 = vadd.f32 %v4566, %v4726
        %v4728 = vpop.f32.mrb[0].mxu0
        %v4729 = vpop.f32.mrb[0].mxu0
        %v4730 = vadd.f32 %v4569, %v4729
        %v4731 = vpop.f32.mrb[0].mxu0
        %4732 = vmatprep.mubr.bf16.mxu0 %v3666
        %4733 = vmatmul.mubr.bf16.gmra.mrb[0].mxu0 %v3665
        %v4734 = vpop.f32.mrb[0].mxu0
        %v4735 = vadd.f32 %v4574, %v4734
        %v4736 = vpop.f32.mrb[0].mxu0
        %v4737 = vpop.f32.mrb[0].mxu0
        %v4738 = vadd.f32 %v4577, %v4737
        %v4739 = vpop.f32.mrb[0].mxu0
        %4740 = vmatprep.mubr.bf16.mxu0 %v3675
        %4741 = vmatmul.mubr.bf16.gmra.mrb[0].mxu0 %v3674
        %v4742 = vpop.f32.mrb[0].mxu0
        %v4743 = vadd.f32 %v4582, %v4742
        %v4744 = vpop.f32.mrb[0].mxu0
        %v4745 = vpop.f32.mrb[0].mxu0
        %v4746 = vadd.f32 %v4585, %v4745
        %v4747 = vpop.f32.mrb[0].mxu0
        %4748 = vmatprep.mubr.bf16.mxu0 %v3684
        %4749 = vmatmul.mubr.bf16.gmra.mrb[0].mxu0 %v3683
        %v4750 = vpop.f32.mrb[0].mxu0
        %v4751 = vadd.f32 %v4590, %v4750
        %v4752 = vpop.f32.mrb[0].mxu0
        %v4753 = vpop.f32.mrb[0].mxu0
        %v4754 = vadd.f32 %v4593, %v4753
        %v4755 = vpop.f32.mrb[0].mxu0
        %4756 = vmatprep.mubr.bf16.mxu0 %v3693
        %4757 = vmatmul.mubr.bf16.gmra.mrb[0].mxu0 %v3692
        %v4758 = vpop.f32.mrb[0].mxu0
        %v4759 = vadd.f32 %v4598, %v4758
        %v4760 = vpop.f32.mrb[0].mxu0
        %v4761 = vpop.f32.mrb[0].mxu0
        %v4762 = vadd.f32 %v4601, %v4761
        %v4763 = vpop.f32.mrb[0].mxu0
        %4764 = vmatprep.mubr.bf16.mxu0 %v3702
        %4765 = vmatmul.mubr.bf16.gmra.mrb[0].mxu0 %v3701
        %v4766 = vpop.f32.mrb[0].mxu0
        %v4767 = vadd.f32 %v4606, %v4766
        %v4768 = vpop.f32.mrb[0].mxu0
        %v4769 = vpop.f32.mrb[0].mxu0
        %v4770 = vadd.f32 %v4609, %v4769
        %v4771 = vpop.f32.mrb[0].mxu0
        %4772 = vmatprep.mubr.bf16.mxu0 %v3711
        %4773 = vmatmul.mubr.bf16.gmra.mrb[0].mxu0 %v3710
        %v4774 = vpop.f32.mrb[0].mxu0
        %v4775 = vadd.f32 %v4614, %v4774
        %v4776 = vpop.f32.mrb[0].mxu0
        %v4777 = vpop.f32.mrb[0].mxu0
        %v4778 = vadd.f32 %v4617, %v4777
        %v4779 = vpop.f32.mrb[0].mxu0
        %4780 = vdwg.mxu0
        %4781 = vmatprep.subr.bf16.mxu0 0
        %4782 = vmatpush1.bf16.msra.mxu0 %v4202
        %4783 = vmatprep.subr.bf16.mxu0 0
        %4784 = vmatpush1.bf16.msra.mxu0 %v4203
        %4785 = vmatprep.subr.bf16.mxu0 0
        %4786 = vmatpush1.bf16.msra.mxu0 %v4204
        %4787 = vmatprep.subr.bf16.mxu0 0
        %4788 = vmatpush1.bf16.msra.mxu0 %v4205
        %4789 = vmatprep.subr.bf16.mxu0 0
        %4790 = vmatpush1.bf16.msra.mxu0 %v4206
        %4791 = vmatprep.subr.bf16.mxu0 0
        %4792 = vmatpush1.bf16.msra.mxu0 %v4207
        %4793 = vmatprep.subr.bf16.mxu0 0
        %4794 = vmatpush1.bf16.msra.mxu0 %v4208
        %4795 = vmatprep.subr.bf16.mxu0 0
        %4796 = vmatpush1.bf16.msra.mxu0 %v4209
        %4797 = vmatprep.subr.bf16.mxu0 0
        %4798 = vmatpush1.bf16.msra.mxu0 %v4210
        %4799 = vmatprep.subr.bf16.mxu0 0
        %4800 = vmatpush1.bf16.msra.mxu0 %v4211
        %4801 = vmatprep.subr.bf16.mxu0 0
        %4802 = vmatpush1.bf16.msra.mxu0 %v4212
        %4803 = vmatprep.subr.bf16.mxu0 0
        %4804 = vmatpush1.bf16.msra.mxu0 %v4213
        %4805 = vmatprep.subr.bf16.mxu0 0
        %4806 = vmatpush1.bf16.msra.mxu0 %v4214
        %4807 = vmatprep.subr.bf16.mxu0 0
        %4808 = vmatpush1.bf16.msra.mxu0 %v4215
        %4809 = vmatprep.subr.bf16.mxu0 0
        %4810 = vmatpush1.bf16.msra.mxu0 %v4216
        %4811 = vmatprep.subr.bf16.mxu0 0
        %4812 = vmatpush1.bf16.msra.mxu0 %v4217
        %4813 = vmatprep.mubr.bf16.mxu0 %v3578
        %4814 = vmatmul.mubr.bf16.gmra.mrb[0].mxu0 %v3577
        %v4815 = vpop.f32.mrb[0].mxu0
        %v4816 = vadd.f32 %v4655, %v4815
        %v4817 = vpop.f32.mrb[0].mxu0
        %v4818 = vpop.f32.mrb[0].mxu0
        %v4819 = vadd.f32 %v4658, %v4818
        %v4820 = vpop.f32.mrb[0].mxu0
        %4821 = vmatprep.mubr.bf16.mxu0 %v3587
        %4822 = vmatmul.mubr.bf16.gmra.mrb[0].mxu0 %v3586
        %v4823 = vpop.f32.mrb[0].mxu0
        %v4824 = vadd.f32 %v4663, %v4823
        %v4825 = vpop.f32.mrb[0].mxu0
        %v4826 = vpop.f32.mrb[0].mxu0
        %v4827 = vadd.f32 %v4666, %v4826
        %v4828 = vpop.f32.mrb[0].mxu0
        %4829 = vmatprep.mubr.bf16.mxu0 %v3596
        %4830 = vmatmul.mubr.bf16.gmra.mrb[0].mxu0 %v3595
        %v4831 = vpop.f32.mrb[0].mxu0
        %v4832 = vadd.f32 %v4671, %v4831
        %v4833 = vpop.f32.mrb[0].mxu0
        %v4834 = vpop.f32.mrb[0].mxu0
        %v4835 = vadd.f32 %v4674, %v4834
        %v4836 = vpop.f32.mrb[0].mxu0
        %4837 = vmatprep.mubr.bf16.mxu0 %v3605
        %4838 = vmatmul.mubr.bf16.gmra.mrb[0].mxu0 %v3604
        %v4839 = vpop.f32.mrb[0].mxu0
        %v4840 = vadd.f32 %v4679, %v4839
        %v4841 = vpop.f32.mrb[0].mxu0
        %v4842 = vpop.f32.mrb[0].mxu0
        %v4843 = vadd.f32 %v4682, %v4842
        %v4844 = vpop.f32.mrb[0].mxu0
        %4845 = vmatprep.mubr.bf16.mxu0 %v3614
        %4846 = vmatmul.mubr.bf16.gmra.mrb[0].mxu0 %v3613
        %v4847 = vpop.f32.mrb[0].mxu0
        %v4848 = vadd.f32 %v4687, %v4847
        %v4849 = vpop.f32.mrb[0].mxu0
        %v4850 = vpop.f32.mrb[0].mxu0
        %v4851 = vadd.f32 %v4690, %v4850
        %v4852 = vpop.f32.mrb[0].mxu0
        %4853 = vmatprep.mubr.bf16.mxu0 %v3623
        %4854 = vmatmul.mubr.bf16.gmra.mrb[0].mxu0 %v3622
        %v4855 = vpop.f32.mrb[0].mxu0
        %v4856 = vadd.f32 %v4695, %v4855
        %v4857 = vpop.f32.mrb[0].mxu0
        %v4858 = vpop.f32.mrb[0].mxu0
        %v4859 = vadd.f32 %v4698, %v4858
        %v4860 = vpop.f32.mrb[0].mxu0
        %4861 = vmatprep.mubr.bf16.mxu0 %v3632
        %4862 = vmatmul.mubr.bf16.gmra.mrb[0].mxu0 %v3631
        %v4863 = vpop.f32.mrb[0].mxu0
        %v4864 = vadd.f32 %v4703, %v4863
        %v4865 = vpop.f32.mrb[0].mxu0
        %v4866 = vpop.f32.mrb[0].mxu0
        %v4867 = vadd.f32 %v4706, %v4866
        %v4868 = vpop.f32.mrb[0].mxu0
        %4869 = vmatprep.mubr.bf16.mxu0 %v3641
        %4870 = vmatmul.mubr.bf16.gmra.mrb[0].mxu0 %v3640
        %v4871 = vpop.f32.mrb[0].mxu0
        %v4872 = vadd.f32 %v4711, %v4871
        %v4873 = vpop.f32.mrb[0].mxu0
        %v4874 = vpop.f32.mrb[0].mxu0
        %v4875 = vadd.f32 %v4714, %v4874
        %v4876 = vpop.f32.mrb[0].mxu0
        %4877 = vmatprep.mubr.bf16.mxu0 %v3650
        %4878 = vmatmul.mubr.bf16.gmra.mrb[0].mxu0 %v3649
        %v4879 = vpop.f32.mrb[0].mxu0
        %v4880 = vadd.f32 %v4719, %v4879
        %v4881 = vpop.f32.mrb[0].mxu0
        %v4882 = vpop.f32.mrb[0].mxu0
        %v4883 = vadd.f32 %v4722, %v4882
        %v4884 = vpop.f32.mrb[0].mxu0
        %4885 = vmatprep.mubr.bf16.mxu0 %v3659
        %4886 = vmatmul.mubr.bf16.gmra.mrb[0].mxu0 %v3658
        %v4887 = vpop.f32.mrb[0].mxu0
        %v4888 = vadd.f32 %v4727, %v4887
        %v4889 = vpop.f32.mrb[0].mxu0
        %v4890 = vpop.f32.mrb[0].mxu0
        %v4891 = vadd.f32 %v4730, %v4890
        %v4892 = vpop.f32.mrb[0].mxu0
        %4893 = vmatprep.mubr.bf16.mxu0 %v3668
        %4894 = vmatmul.mubr.bf16.gmra.mrb[0].mxu0 %v3667
        %v4895 = vpop.f32.mrb[0].mxu0
        %v4896 = vadd.f32 %v4735, %v4895
        %v4897 = vpop.f32.mrb[0].mxu0
        %v4898 = vpop.f32.mrb[0].mxu0
        %v4899 = vadd.f32 %v4738, %v4898
        %v4900 = vpop.f32.mrb[0].mxu0
        %4901 = vmatprep.mubr.bf16.mxu0 %v3677
        %4902 = vmatmul.mubr.bf16.gmra.mrb[0].mxu0 %v3676
        %v4903 = vpop.f32.mrb[0].mxu0
        %v4904 = vadd.f32 %v4743, %v4903
        %v4905 = vpop.f32.mrb[0].mxu0
        %v4906 = vpop.f32.mrb[0].mxu0
        %v4907 = vadd.f32 %v4746, %v4906
        %v4908 = vpop.f32.mrb[0].mxu0
        %4909 = vmatprep.mubr.bf16.mxu0 %v3686
        %4910 = vmatmul.mubr.bf16.gmra.mrb[0].mxu0 %v3685
        %v4911 = vpop.f32.mrb[0].mxu0
        %v4912 = vadd.f32 %v4751, %v4911
        %v4913 = vpop.f32.mrb[0].mxu0
        %v4914 = vpop.f32.mrb[0].mxu0
        %v4915 = vadd.f32 %v4754, %v4914
        %v4916 = vpop.f32.mrb[0].mxu0
        %4917 = vmatprep.mubr.bf16.mxu0 %v3695
        %4918 = vmatmul.mubr.bf16.gmra.mrb[0].mxu0 %v3694
        %v4919 = vpop.f32.mrb[0].mxu0
        %v4920 = vadd.f32 %v4759, %v4919
        %v4921 = vpop.f32.mrb[0].mxu0
        %v4922 = vpop.f32.mrb[0].mxu0
        %v4923 = vadd.f32 %v4762, %v4922
        %v4924 = vpop.f32.mrb[0].mxu0
        %4925 = vmatprep.mubr.bf16.mxu0 %v3704
        %4926 = vmatmul.mubr.bf16.gmra.mrb[0].mxu0 %v3703
        %v4927 = vpop.f32.mrb[0].mxu0
        %v4928 = vadd.f32 %v4767, %v4927
        %v4929 = vpop.f32.mrb[0].mxu0
        %v4930 = vpop.f32.mrb[0].mxu0
        %v4931 = vadd.f32 %v4770, %v4930
        %v4932 = vpop.f32.mrb[0].mxu0
        %4933 = vmatprep.mubr.bf16.mxu0 %v3713
        %4934 = vmatmul.mubr.bf16.gmra.mrb[0].mxu0 %v3712
        %v4935 = vpop.f32.mrb[0].mxu0
        %v4936 = vadd.f32 %v4775, %v4935
        %v4937 = vpop.f32.mrb[0].mxu0
        %v4938 = vpop.f32.mrb[0].mxu0
        %v4939 = vadd.f32 %v4778, %v4938
        %v4940 = vpop.f32.mrb[0].mxu0
        %4941 = vdwg.mxu0
        %4942 = vmatprep.subr.bf16.mxu0 0
        %4943 = vmatpush1.bf16.msra.mxu0 %v4218
        %4944 = vmatprep.subr.bf16.mxu0 0
        %4945 = vmatpush1.bf16.msra.mxu0 %v4219
        %4946 = vmatprep.subr.bf16.mxu0 0
        %4947 = vmatpush1.bf16.msra.mxu0 %v4220
        %4948 = vmatprep.subr.bf16.mxu0 0
        %4949 = vmatpush1.bf16.msra.mxu0 %v4221
        %4950 = vmatprep.subr.bf16.mxu0 0
        %4951 = vmatpush1.bf16.msra.mxu0 %v4222
        %4952 = vmatprep.subr.bf16.mxu0 0
        %4953 = vmatpush1.bf16.msra.mxu0 %v4223
        %4954 = vmatprep.subr.bf16.mxu0 0
        %4955 = vmatpush1.bf16.msra.mxu0 %v4224
        %4956 = vmatprep.subr.bf16.mxu0 0
        %4957 = vmatpush1.bf16.msra.mxu0 %v4225
        %4958 = vmatprep.subr.bf16.mxu0 0
        %4959 = vmatpush1.bf16.msra.mxu0 0
        %4960 = vmatprep.subr.bf16.mxu0 0
        %4961 = vmatpush1.bf16.msra.mxu0 0
        %4962 = vmatprep.subr.bf16.mxu0 0
        %4963 = vmatpush1.bf16.msra.mxu0 0
        %4964 = vmatprep.subr.bf16.mxu0 0
        %4965 = vmatpush1.bf16.msra.mxu0 0
        %4966 = vmatprep.subr.bf16.mxu0 0
        %4967 = vmatpush1.bf16.msra.mxu0 0
        %4968 = vmatprep.subr.bf16.mxu0 0
        %4969 = vmatpush1.bf16.msra.mxu0 0
        %4970 = vmatprep.subr.bf16.mxu0 0
        %4971 = vmatpush1.bf16.msra.mxu0 0
        %4972 = vmatprep.subr.bf16.mxu0 0
        %4973 = vmatpush1.bf16.msra.mxu0 0
        %4974 = vmatprep.mubr.bf16.mxu0 0
        %4975 = vmatmul.mubr.bf16.gmra.mrb[0].mxu0 %v3579
        %v4976 = vpop.f32.mrb[0].mxu0
        %v4977 = vadd.f32 %v4816, %v4976
        %v4978 = vpop.f32.mrb[0].mxu0
        %v4979 = vpop.f32.mrb[0].mxu0
        %v4980 = vadd.f32 %v4819, %v4979
        %v4981 = vpop.f32.mrb[0].mxu0
        %4982 = vmatprep.mubr.bf16.mxu0 0
        %4983 = vmatmul.mubr.bf16.gmra.mrb[0].mxu0 %v3588
        %v4984 = vpop.f32.mrb[0].mxu0
        %v4985 = vadd.f32 %v4824, %v4984
        %v4986 = vpop.f32.mrb[0].mxu0
        %v4987 = vpop.f32.mrb[0].mxu0
        %v4988 = vadd.f32 %v4827, %v4987
        %v4989 = vpop.f32.mrb[0].mxu0
        %4990 = vmatprep.mubr.bf16.mxu0 0
        %4991 = vmatmul.mubr.bf16.gmra.mrb[0].mxu0 %v3597
        %v4992 = vpop.f32.mrb[0].mxu0
        %v4993 = vadd.f32 %v4832, %v4992
        %v4994 = vpop.f32.mrb[0].mxu0
        %v4995 = vpop.f32.mrb[0].mxu0
        %v4996 = vadd.f32 %v4835, %v4995
        %v4997 = vpop.f32.mrb[0].mxu0
        %4998 = vmatprep.mubr.bf16.mxu0 0
        %4999 = vmatmul.mubr.bf16.gmra.mrb[0].mxu0 %v3606
        %v5000 = vpop.f32.mrb[0].mxu0
        %v5001 = vadd.f32 %v4840, %v5000
        %v5002 = vpop.f32.mrb[0].mxu0
        %v5003 = vpop.f32.mrb[0].mxu0
        %v5004 = vadd.f32 %v4843, %v5003
        %v5005 = vpop.f32.mrb[0].mxu0
        %5006 = vmatprep.mubr.bf16.mxu0 0
        %5007 = vmatmul.mubr.bf16.gmra.mrb[0].mxu0 %v3615
        %v5008 = vpop.f32.mrb[0].mxu0
        %v5009 = vadd.f32 %v4848, %v5008
        %v5010 = vpop.f32.mrb[0].mxu0
        %v5011 = vpop.f32.mrb[0].mxu0
        %v5012 = vadd.f32 %v4851, %v5011
        %v5013 = vpop.f32.mrb[0].mxu0
        %5014 = vmatprep.mubr.bf16.mxu0 0
        %5015 = vmatmul.mubr.bf16.gmra.mrb[0].mxu0 %v3624
        %v5016 = vpop.f32.mrb[0].mxu0
        %v5017 = vadd.f32 %v4856, %v5016
        %v5018 = vpop.f32.mrb[0].mxu0
        %v5019 = vpop.f32.mrb[0].mxu0
        %v5020 = vadd.f32 %v4859, %v5019
        %v5021 = vpop.f32.mrb[0].mxu0
        %5022 = vmatprep.mubr.bf16.mxu0 0
        %5023 = vmatmul.mubr.bf16.gmra.mrb[0].mxu0 %v3633
        %v5024 = vpop.f32.mrb[0].mxu0
        %v5025 = vadd.f32 %v4864, %v5024
        %v5026 = vpop.f32.mrb[0].mxu0
        %v5027 = vpop.f32.mrb[0].mxu0
        %v5028 = vadd.f32 %v4867, %v5027
        %v5029 = vpop.f32.mrb[0].mxu0
        %5030 = vmatprep.mubr.bf16.mxu0 0
        %5031 = vmatmul.mubr.bf16.gmra.mrb[0].mxu0 %v3642
        %v5032 = vpop.f32.mrb[0].mxu0
        %v5033 = vadd.f32 %v4872, %v5032
        %v5034 = vpop.f32.mrb[0].mxu0
        %v5035 = vpop.f32.mrb[0].mxu0
        %v5036 = vadd.f32 %v4875, %v5035
        %v5037 = vpop.f32.mrb[0].mxu0
        %5038 = vmatprep.mubr.bf16.mxu0 0
        %5039 = vmatmul.mubr.bf16.gmra.mrb[0].mxu0 %v3651
        %v5040 = vpop.f32.mrb[0].mxu0
        %v5041 = vadd.f32 %v4880, %v5040
        %v5042 = vpop.f32.mrb[0].mxu0
        %v5043 = vpop.f32.mrb[0].mxu0
        %v5044 = vadd.f32 %v4883, %v5043
        %v5045 = vpop.f32.mrb[0].mxu0
        %5046 = vmatprep.mubr.bf16.mxu0 0
        %5047 = vmatmul.mubr.bf16.gmra.mrb[0].mxu0 %v3660
        %v5048 = vpop.f32.mrb[0].mxu0
        %v5049 = vadd.f32 %v4888, %v5048
        %v5050 = vpop.f32.mrb[0].mxu0
        %v5051 = vpop.f32.mrb[0].mxu0
        %v5052 = vadd.f32 %v4891, %v5051
        %v5053 = vpop.f32.mrb[0].mxu0
        %5054 = vmatprep.mubr.bf16.mxu0 0
        %5055 = vmatmul.mubr.bf16.gmra.mrb[0].mxu0 %v3669
        %v5056 = vpop.f32.mrb[0].mxu0
        %v5057 = vadd.f32 %v4896, %v5056
        %v5058 = vpop.f32.mrb[0].mxu0
        %v5059 = vpop.f32.mrb[0].mxu0
        %v5060 = vadd.f32 %v4899, %v5059
        %v5061 = vpop.f32.mrb[0].mxu0
        %5062 = vmatprep.mubr.bf16.mxu0 0
        %5063 = vmatmul.mubr.bf16.gmra.mrb[0].mxu0 %v3678
        %v5064 = vpop.f32.mrb[0].mxu0
        %v5065 = vadd.f32 %v4904, %v5064
        %v5066 = vpop.f32.mrb[0].mxu0
        %v5067 = vpop.f32.mrb[0].mxu0
        %v5068 = vadd.f32 %v4907, %v5067
        %v5069 = vpop.f32.mrb[0].mxu0
        %5070 = vmatprep.mubr.bf16.mxu0 0
        %5071 = vmatmul.mubr.bf16.gmra.mrb[0].mxu0 %v3687
        %v5072 = vpop.f32.mrb[0].mxu0
        %v5073 = vadd.f32 %v4912, %v5072
        %v5074 = vpop.f32.mrb[0].mxu0
        %v5075 = vpop.f32.mrb[0].mxu0
        %v5076 = vadd.f32 %v4915, %v5075
        %v5077 = vpop.f32.mrb[0].mxu0
        %5078 = vmatprep.mubr.bf16.mxu0 0
        %5079 = vmatmul.mubr.bf16.gmra.mrb[0].mxu0 %v3696
        %v5080 = vpop.f32.mrb[0].mxu0
        %v5081 = vadd.f32 %v4920, %v5080
        %v5082 = vpop.f32.mrb[0].mxu0
        %v5083 = vpop.f32.mrb[0].mxu0
        %v5084 = vadd.f32 %v4923, %v5083
        %v5085 = vpop.f32.mrb[0].mxu0
        %5086 = vmatprep.mubr.bf16.mxu0 0
        %5087 = vmatmul.mubr.bf16.gmra.mrb[0].mxu0 %v3705
        %v5088 = vpop.f32.mrb[0].mxu0
        %v5089 = vadd.f32 %v4928, %v5088
        %v5090 = vpop.f32.mrb[0].mxu0
        %v5091 = vpop.f32.mrb[0].mxu0
        %v5092 = vadd.f32 %v4931, %v5091
        %v5093 = vpop.f32.mrb[0].mxu0
        %5094 = vmatprep.mubr.bf16.mxu0 0
        %5095 = vmatmul.mubr.bf16.gmra.mrb[0].mxu0 %v3714
        %v5096 = vpop.f32.mrb[0].mxu0
        %v5097 = vadd.f32 %v4936, %v5096
        %v5098 = vpop.f32.mrb[0].mxu0
        %v5099 = vpop.f32.mrb[0].mxu0
        %v5100 = vadd.f32 %v4939, %v5099
        %v5101 = vpop.f32.mrb[0].mxu0
        %5102 = vdwg.mxu0
        %5103 = vst [vmem:[%s203] sm:$0xff] %v4977
        %5104 = vst [vmem:[%s203 + $0x8] sm:$0xff] %v4980
        %5105 = vst [vmem:[%s203 + $0x10] sm:$0xff] %v4985
        %5106 = vst [vmem:[%s203 + $0x18] sm:$0xff] %v4988
        %5107 = vst [vmem:[%s203 + $0x20] sm:$0xff] %v4993
        %5108 = vst [vmem:[%s203 + $0x28] sm:$0xff] %v4996
        %5109 = vst [vmem:[%s203 + $0x30] sm:$0xff] %v5001
        %5110 = vst [vmem:[%s203 + $0x38] sm:$0xff] %v5004
        %5111 = vst [vmem:[%s203 + $0x40] sm:$0xff] %v5009
        %5112 = vst [vmem:[%s203 + $0x48] sm:$0xff] %v5012
        %5113 = vst [vmem:[%s203 + $0x50] sm:$0xff] %v5017
        %5114 = vst [vmem:[%s203 + $0x58] sm:$0xff] %v5020
        %5115 = vst [vmem:[%s203 + $0x60] sm:$0xff] %v5025
        %5116 = vst [vmem:[%s203 + $0x68] sm:$0xff] %v5028
        %5117 = vst [vmem:[%s203 + $0x70] sm:$0xff] %v5033
        %5118 = vst [vmem:[%s203 + $0x78] sm:$0xff] %v5036
        %5119 = vst [vmem:[%s203 + $0x80] sm:$0xff] %v5041
        %5120 = vst [vmem:[%s203 + $0x88] sm:$0xff] %v5044
        %5121 = vst [vmem:[%s203 + $0x90] sm:$0xff] %v5049
        %5122 = vst [vmem:[%s203 + $0x98] sm:$0xff] %v5052
        %5123 = vst [vmem:[%s203 + $0xa0] sm:$0xff] %v5057
        %5124 = vst [vmem:[%s203 + $0xa8] sm:$0xff] %v5060
        %5125 = vst [vmem:[%s203 + $0xb0] sm:$0xff] %v5065
        %5126 = vst [vmem:[%s203 + $0xb8] sm:$0xff] %v5068
        %5127 = vst [vmem:[%s203 + $0xc0] sm:$0xff] %v5073
        %5128 = vst [vmem:[%s203 + $0xc8] sm:$0xff] %v5076
        %5129 = vst [vmem:[%s203 + $0xd0] sm:$0xff] %v5081
        %5130 = vst [vmem:[%s203 + $0xd8] sm:$0xff] %v5084
        %5131 = vst [vmem:[%s203 + $0xe0] sm:$0xff] %v5089
        %5132 = vst [vmem:[%s203 + $0xe8] sm:$0xff] %v5092
        %5133 = vst [vmem:[%s203 + $0xf0] sm:$0xff] %v5097
        %5134 = vst [vmem:[%s203 + $0xf8] sm:$0xff] %v5100
        %s5135 = sand.u32 %s97, 1
        %s5136 = scalar_lea.sflag [#allocation6], %s5135
        %s5137 = sand.u32 %s97, 1
        %s5138 = smul.addr %s5137, 256
        %s5139 = scalar_lea.vmem [#allocation9], %s5138
        // Predicated region
        $region41: #{tpu_custom_call.1} parent=31 // pred_check
          %p5140 = pneg %p107
        $region42: #{tpu_custom_call.1} parent=31 // pred_check_branch
          %5142 = sbr.rel (%p5140) target = $region44
        $region43: #{tpu_custom_call.1} parent=31 // pred_region
          %s5144 = ssub.s32 4096, 4096
          %5145 = vsyncadd %s5136, %s5144
          %s5146 = smul.addr %s21, 32
          %s5147 = smul.addr %s5146, 128
          %s5148 = scalar_lea.hbm %s3, %s5147
          %s5149 = sshll.u32 %s5139, 4
          %s5150 = int_to_ptr.vmem [resolvable:$true] %s5149
          %5155 = dma.vmem_to_hbm [thread:$0]  %s5150, 4096, %s5148, %s5136, 128, 128, 8
        $region44: #{tpu_custom_call.1} parent=31 // pred_fallthru
          _
      $region32: #{tpu_custom_call.1} parent=5 // pred_fallthru
        _
      %p5156 = scmp.le.s32.totalorder 2, %s16
      // Predicated region
      $region45: #{tpu_custom_call.1} parent=5 // pred_check
        %p5157 = pneg %p5156
      $region46: #{tpu_custom_call.1} parent=5 // pred_check_branch
        %5159 = sbr.rel (%p5157) target = $region48
      $region47: #{tpu_custom_call.1} parent=5 // pred_region
        %s5160 = ssub.s32 %s16, 2
        // Predicated region
        $region49: #{tpu_custom_call.1} parent=47 // pred_check
          %p5161 = pneg %p113
        $region50: #{tpu_custom_call.1} parent=47 // pred_check_branch
          %5163 = sbr.rel (%p5161) target = $region52
        $region51: #{tpu_custom_call.1} parent=47 // pred_region
          %s5164 = sand.u32 %s98, 1
          %s5165 = scalar_lea.sflag [#allocation6], %s5164
          %s5166 = sand.u32 %s98, 1
          %s5167 = smul.addr %s5166, 256
          %s5168 = scalar_lea.vmem [#allocation9], %s5167
          %5169 = dma.done %s5165, 4096
        $region52: #{tpu_custom_call.1} parent=47 // pred_fallthru
          _
      $region48: #{tpu_custom_call.1} parent=5 // pred_fallthru
        _
    $region6: #{tpu_custom_call.1} parent=1 // loop_footer
      %s20 = sadd.s32 1, %s16
    $region7: #{tpu_custom_call.1} parent=1 // loop_footer_branch
      %15 = sbr.rel target = $region3
    $region8: #{tpu_custom_call.1} parent=1 // loop_exit
      _
    %5170 = vsyncpa [#allocation5], 1
    %s5171 = scalar_lea.sflag [#allocation5], 1
    %5172 = vsyncpa %s5171, 1
    %5173 = vsyncpa [#allocation8], 1
    %5174 = vsyncpa [#allocation6], 1
    %s5175 = scalar_lea.sflag [#allocation6], 1
    %5176 = vsyncpa %s5175, 1

</llo_original>
